<compile_context>
chip_gen: v5e
topology: v5e:2x2
jax: 0.10.0
libtpu: 0.0.40
codegen_flags: <defaults>
</compile_context>

<pallas_src>
import functools

import jax
import jax.numpy as jnp
from jax import lax
from jax.experimental import pallas as pl
from jax.experimental.pallas import tpu as pltpu


# ------------------------------ fused kernel ------------------------------- #

def _fused_block_kernel(*refs, H, W, stride, shortcut, pad):
    """expand 1x1+BN+ReLU -> depthwise 3x3+BN+ReLU (stride) -> project 1x1+BN (+shortcut)."""
    n_in = 13 if shortcut == "conv" else 10
    (x_ref, w1_ref, s1_ref, b1_ref,
     w2_ref, s2_ref, b2_ref,
     w3_ref, s3_ref, b3_ref) = refs[:10]
    if shortcut == "conv":
        ws_ref, ss_ref, bs_ref = refs[10:13]
    o_ref = refs[n_in]
    hflat_ref = refs[n_in + 1]

    HW = H * W
    P = w1_ref.shape[1]
    Ho = (H - 1) // stride + 1
    Wo = (W - 1) // stride + 1
    f32 = jnp.float32

    # ---- expand 1x1 + BN + ReLU (one MXU matmul over all H*W pixels) -------
    x2d = x_ref[0]                                           # (H*W, Cin)
    h1 = jnp.dot(x2d, w1_ref[...], preferred_element_type=f32)
    h1 = jnp.maximum(h1 * s1_ref[...] + b1_ref[...], 0.0)    # (H*W, P)

    # padded, flattened copy kept entirely in VMEM:
    # rows [pad, pad + H*W) hold the image, `pad` zero rows above/below emulate
    # the 3x3 conv's vertical zero padding (no external jnp.pad HBM pass).
    zeros_pad = jnp.zeros((pad, P), f32)
    hflat_ref[0:pad, :] = zeros_pad
    hflat_ref[pad + HW:2 * pad + HW, :] = zeros_pad
    hflat_ref[pad:pad + HW, :] = h1

    # ---- depthwise 3x3 + BN + ReLU on flat (H*W, P) rows --------------------
    # tap (kh, kw) for output pixel r = h*W + w lives at flat row
    # pad + r + (kh-1)*W + (kw-1); the horizontal wrap-around of the left/right
    # taps is masked with an iota-based column index.
    col = lax.broadcasted_iota(jnp.int32, (HW, P), 0) % W
    not_left = col != 0
    not_right = col != (W - 1)
    w2s = w2_ref[...] * s2_ref[...]                          # BN2 scale folded into taps, (9, P)
    acc = None
    for k in range(9):
        kh, kw = divmod(k, 3)
        start = pad + (kh - 1) * W + (kw - 1)
        tap = hflat_ref[start:start + HW, :] * w2s[k]
        if kw == 0:
            tap = jnp.where(not_left, tap, 0.0)
        elif kw == 2:
            tap = jnp.where(not_right, tap, 0.0)
        acc = tap if acc is None else acc + tap
    y = jnp.maximum(acc + b2_ref[...], 0.0)                  # (H*W, P)

    # ---- stride subsampling (stays in VMEM; single MXU selection matmul) ----
    if stride == 1:
        y2d = y                                              # (H*W, P)
    else:
        # one-hot selection matrix: row r picks input pixel
        # ((r // Wo) * stride, (r % Wo) * stride); iota-built, MXU-applied.
        ri = lax.broadcasted_iota(jnp.int32, (Ho * Wo, HW), 0)
        ci = lax.broadcasted_iota(jnp.int32, (Ho * Wo, HW), 1)
        src = (ri // Wo) * (stride * W) + (ri % Wo) * stride
        sel = (ci == src).astype(f32)                        # (Ho*Wo, H*W)
        y2d = jnp.dot(sel, y, preferred_element_type=f32)    # (Ho*Wo, P)

    # ---- project 1x1 + BN (+ fused shortcut) --------------------------------
    out = jnp.dot(y2d, w3_ref[...], preferred_element_type=f32)
    out = out * s3_ref[...] + b3_ref[...]
    if shortcut == "conv":        # stride == 1, cin != cout: fused 1x1+BN shortcut
        sc = jnp.dot(x2d, ws_ref[...], preferred_element_type=f32)
        out = out + (sc * ss_ref[...] + bs_ref[...])
    elif shortcut == "identity":  # stride == 1, cin == cout
        out = out + x2d
    o_ref[0] = out.astype(o_ref.dtype)


# ----------------------------- kernel wrapper ------------------------------ #

def fused_block(x_flat, p, *, H, W, stride, shortcut):
    """x_flat: (N, H*W, Cin) channels-last flattened input -> (N, Ho*Wo, Cout)."""
    N, HW, Cin = x_flat.shape
    assert HW == H * W
    P = p["w1"].shape[1]
    Cout = p["w3"].shape[1]
    Ho = (H - 1) // stride + 1
    Wo = (W - 1) // stride + 1
    pad = ((W + 1 + 7) // 8) * 8          # >= W+1 zero rows above/below, 8-aligned

    def full_spec(shape):
        rank = len(shape)
        return pl.BlockSpec(shape, lambda n: (0,) * rank)

    in_specs = [
        pl.BlockSpec((1, HW, Cin), lambda n: (n, 0, 0)),
        full_spec((Cin, P)), full_spec((1, P)), full_spec((1, P)),
        full_spec((9, P)), full_spec((1, P)), full_spec((1, P)),
        full_spec((P, Cout)), full_spec((1, Cout)), full_spec((1, Cout)),
    ]
    args = [x_flat, p["w1"], p["s1"], p["b1"], p["w2"], p["s2"], p["b2"],
            p["w3"], p["s3"], p["b3"]]
    if shortcut == "conv":
        in_specs += [full_spec((Cin, Cout)), full_spec((1, Cout)),
                     full_spec((1, Cout))]
        args += [p["ws"], p["ss"], p["bs"]]

    scratch_shapes = [pltpu.VMEM((2 * pad + HW, P), jnp.float32)]

    # Per-step working set with headroom; capped under v7x's 64 MiB physical VMEM.
    work = 4 * (2 * HW * Cin + 2 * Ho * Wo * Cout + (2 * pad + HW) * P
                + 4 * HW * P + P * Cout + Cin * P
                + (Ho * Wo * HW if stride > 1 else 0))
    vmem_limit = int(min(60 * 2 ** 20, max(32 * 2 ** 20, 2 * work)))

    kern = functools.partial(_fused_block_kernel, H=H, W=W, stride=stride,
                             shortcut=shortcut, pad=pad)
    return pl.pallas_call(
        kern,
        grid=(N,),
        in_specs=in_specs,
        out_specs=pl.BlockSpec((1, Ho * Wo, Cout), lambda n: (n, 0, 0)),
        out_shape=jax.ShapeDtypeStruct((N, Ho * Wo, Cout), jnp.float32),
        scratch_shapes=scratch_shapes,
        compiler_params=pltpu.CompilerParams(
            dimension_semantics=("parallel",),
            vmem_limit_bytes=vmem_limit),
    )(*args)


# ------------------------------- Block logic ------------------------------- #

def fold_bn(gamma, beta, mean, var, eps=1e-5):
    scale = gamma / jnp.sqrt(var + eps)
    bias = beta - mean * scale
    return (scale.reshape(1, -1).astype(jnp.float32),
            bias.reshape(1, -1).astype(jnp.float32))


def init_params(key, in_planes, out_planes, expansion, stride):
    planes = expansion * in_planes
    ks = jax.random.split(key, 8)

    def bn(k, c):
        k1, k2, k3, k4 = jax.random.split(k, 4)
        gamma = 1.0 + 0.1 * jax.random.normal(k1, (c,))
        beta = 0.1 * jax.random.normal(k2, (c,))
        mean = 0.1 * jax.random.normal(k3, (c,))
        var = jnp.abs(jax.random.normal(k4, (c,))) + 0.5
        return fold_bn(gamma, beta, mean, var)

    p = {"stride": stride}
    p["w1"] = 0.2 * jax.random.normal(ks[0], (in_planes, planes), jnp.float32)
    p["s1"], p["b1"] = bn(ks[1], planes)
    p["w2"] = 0.2 * jax.random.normal(ks[2], (9, planes), jnp.float32)   # 3x3 dw, row-major taps
    p["s2"], p["b2"] = bn(ks[3], planes)
    p["w3"] = 0.2 * jax.random.normal(ks[4], (planes, out_planes), jnp.float32)
    p["s3"], p["b3"] = bn(ks[5], out_planes)
    if stride == 1 and in_planes != out_planes:
        p["ws"] = 0.2 * jax.random.normal(ks[6], (in_planes, out_planes), jnp.float32)
        p["ss"], p["bs"] = bn(ks[7], out_planes)
    return p


def block_forward(x_nchw, p):
    stride = p["stride"]
    # NCHW -> NHWC (channels onto the lane dim).
    # TODO(synk): in a full NHWC model these two transposes disappear entirely.
    x = jnp.transpose(x_nchw, (0, 2, 3, 1)).astype(jnp.float32)
    n, h, w, cin = x.shape
    cout = p["w3"].shape[1]
    if stride > 1:
        assert h % stride == 0 and w % stride == 0
    ho = (h - 1) // stride + 1
    wo = (w - 1) // stride + 1
    if stride == 1:
        shortcut = "identity" if cin == cout else "conv"
    else:
        shortcut = "none"
    out = fused_block(x.reshape(n, h * w, cin), p, H=h, W=w,
                      stride=stride, shortcut=shortcut)
    out = out.reshape(n, ho, wo, cout)
    return jnp.transpose(out, (0, 3, 1, 2))  # NHWC -> NCHW


# ------------------------------ JAX reference ------------------------------ #

def reference_forward(x_nchw, p):
    stride = p["stride"]
    x = jnp.transpose(x_nchw, (0, 2, 3, 1)).astype(jnp.float32)
    cin = x.shape[-1]
    planes = p["w1"].shape[1]
    cout = p["w3"].shape[1]
    dn = ("NHWC", "HWIO", "NHWC")

    def conv1x1(a, w):
        return lax.conv_general_dilated(a, w.reshape(1, 1, *w.shape), (1, 1),
                                        "VALID", dimension_numbers=dn)

    o = jnp.maximum(conv1x1(x, p["w1"]) * p["s1"] + p["b1"], 0.0)
    kdw = p["w2"].reshape(3, 3, 1, planes)
    o = lax.conv_general_dilated(o, kdw, (stride, stride), ((1, 1), (1, 1)),
                                 dimension_numbers=dn, feature_group_count=planes)
    o = jnp.maximum(o * p["s2"] + p["b2"], 0.0)
    o = conv1x1(o, p["w3"]) * p["s3"] + p["b3"]
    if stride == 1:
        sc = x if cin == cout else conv1x1(x, p["ws"]) * p["ss"] + p["bs"]
        o = o + sc
    return jnp.transpose(o, (0, 3, 1, 2))


# ----------------------------------- main ----------------------------------- #

if __name__ == "__main__":
    key = jax.random.PRNGKey(0)
    kx, kx3, kp1, kp2, kp3 = jax.random.split(key, 5)
    x = jax.random.normal(kx, (2, 4, 16, 16), jnp.float32)   # NCHW, like PyTorch

    # stride=1, in_planes != out_planes -> fused conv+BN shortcut path
    p1 = init_params(kp1, in_planes=4, out_planes=8, expansion=4, stride=1)
    y1 = jax.block_until_ready(block_forward(x, p1))
    r1 = reference_forward(x, p1)
    assert y1.shape == (2, 8, 16, 16), y1.shape
    assert jnp.allclose(y1, r1, atol=1e-4, rtol=1e-4), float(jnp.max(jnp.abs(y1 - r1)))

    # stride=2 -> no residual branch, in-kernel subsampling via selection matmul
    p2 = init_params(kp2, in_planes=4, out_planes=8, expansion=4, stride=2)
    y2 = jax.block_until_ready(block_forward(x, p2))
    r2 = reference_forward(x, p2)
    assert y2.shape == (2, 8, 8, 8), y2.shape
    assert jnp.allclose(y2, r2, atol=1e-4, rtol=1e-4), float(jnp.max(jnp.abs(y2 - r2)))

    # stride=1, in_planes == out_planes -> identity shortcut
    x3 = jax.random.normal(kx3, (2, 8, 16, 16), jnp.float32)
    p3 = init_params(kp3, in_planes=8, out_planes=8, expansion=4, stride=1)
    y3 = jax.block_until_ready(block_forward(x3, p3))
    r3 = reference_forward(x3, p3)
    assert y3.shape == (2, 8, 16, 16), y3.shape
    assert jnp.allclose(y3, r3, atol=1e-4, rtol=1e-4), float(jnp.max(jnp.abs(y3 - r3)))

    print("KERNEL_OK")
</pallas_src>

<mosaic_0001>
module attributes {stable_mosaic.version = 11 : i64} {
  func.func @_fused_block_kernel(%arg0: i32, %arg1: memref<1x256x4xf32, #tpu.memory_space<vmem>>, %arg2: memref<4x16xf32, #tpu.memory_space<vmem>>, %arg3: memref<1x16xf32, #tpu.memory_space<vmem>>, %arg4: memref<1x16xf32, #tpu.memory_space<vmem>>, %arg5: memref<9x16xf32, #tpu.memory_space<vmem>>, %arg6: memref<1x16xf32, #tpu.memory_space<vmem>>, %arg7: memref<1x16xf32, #tpu.memory_space<vmem>>, %arg8: memref<16x8xf32, #tpu.memory_space<vmem>>, %arg9: memref<1x8xf32, #tpu.memory_space<vmem>>, %arg10: memref<1x8xf32, #tpu.memory_space<vmem>>, %arg11: memref<4x8xf32, #tpu.memory_space<vmem>>, %arg12: memref<1x8xf32, #tpu.memory_space<vmem>>, %arg13: memref<1x8xf32, #tpu.memory_space<vmem>>, %arg14: memref<1x256x8xf32, #tpu.memory_space<vmem>>, %arg15: memref<304x16xf32, #tpu.memory_space<vmem>>) attributes {dimension_semantics = [#tpu.dimension_semantics<parallel>], iteration_bounds = array<i64: 2>, scalar_prefetch = 0 : i64, scratch_operands = 1 : i64, tpu.core_type = #tpu.core_type<tc>, window_params = [{transform_indices = @transform_0, window_bounds = array<i64: 1, 256, 4>}, {pipeline_mode = #tpu.pipeline_mode<synchronous>, transform_indices = @transform_1, window_bounds = array<i64: 4, 16>}, {pipeline_mode = #tpu.pipeline_mode<synchronous>, transform_indices = @transform_2, window_bounds = array<i64: 1, 16>}, {pipeline_mode = #tpu.pipeline_mode<synchronous>, transform_indices = @transform_3, window_bounds = array<i64: 1, 16>}, {pipeline_mode = #tpu.pipeline_mode<synchronous>, transform_indices = @transform_4, window_bounds = array<i64: 9, 16>}, {pipeline_mode = #tpu.pipeline_mode<synchronous>, transform_indices = @transform_5, window_bounds = array<i64: 1, 16>}, {pipeline_mode = #tpu.pipeline_mode<synchronous>, transform_indices = @transform_6, window_bounds = array<i64: 1, 16>}, {pipeline_mode = #tpu.pipeline_mode<synchronous>, transform_indices = @transform_7, window_bounds = array<i64: 16, 8>}, {pipeline_mode = #tpu.pipeline_mode<synchronous>, transform_indices = @transform_8, window_bounds = array<i64: 1, 8>}, {pipeline_mode = #tpu.pipeline_mode<synchronous>, transform_indices = @transform_9, window_bounds = array<i64: 1, 8>}, {pipeline_mode = #tpu.pipeline_mode<synchronous>, transform_indices = @transform_10, window_bounds = array<i64: 4, 8>}, {pipeline_mode = #tpu.pipeline_mode<synchronous>, transform_indices = @transform_11, window_bounds = array<i64: 1, 8>}, {pipeline_mode = #tpu.pipeline_mode<synchronous>, transform_indices = @transform_12, window_bounds = array<i64: 1, 8>}, {transform_indices = @transform_13, window_bounds = array<i64: 1, 256, 8>}]} {
    %c0 = arith.constant 0 : index
    %c0_0 = arith.constant 0 : index
    %c0_1 = arith.constant 0 : index
    %0 = vector.load %arg1[%c0, %c0_0, %c0_1] : memref<1x256x4xf32, #tpu.memory_space<vmem>>, vector<1x256x4xf32>
    %1 = vector.shape_cast %0 : vector<1x256x4xf32> to vector<256x4xf32>
    %c0_2 = arith.constant 0 : index
    %c0_3 = arith.constant 0 : index
    %2 = vector.load %arg2[%c0_2, %c0_3] : memref<4x16xf32, #tpu.memory_space<vmem>>, vector<4x16xf32>
    %cst = arith.constant dense<0.000000e+00> : vector<256x16xf32>
    %3 = tpu.matmul %1, %2, %cst {dimension_numbers = #tpu.dot_dimension_numbers<[1], [0], [0], [1], [0, 0, 1, 1], [], []>} : vector<256x4xf32>, vector<4x16xf32>, vector<256x16xf32> -> vector<256x16xf32>
    %c0_4 = arith.constant 0 : index
    %c0_5 = arith.constant 0 : index
    %4 = vector.load %arg3[%c0_4, %c0_5] : memref<1x16xf32, #tpu.memory_space<vmem>>, vector<1x16xf32>
    %5 = vector.broadcast %4 : vector<1x16xf32> to vector<256x16xf32>
    %6 = arith.mulf %3, %5 : vector<256x16xf32>
    %c0_6 = arith.constant 0 : index
    %c0_7 = arith.constant 0 : index
    %7 = vector.load %arg4[%c0_6, %c0_7] : memref<1x16xf32, #tpu.memory_space<vmem>>, vector<1x16xf32>
    %8 = vector.broadcast %7 : vector<1x16xf32> to vector<256x16xf32>
    %9 = arith.addf %6, %8 : vector<256x16xf32>
    %cst_8 = arith.constant 0.000000e+00 : f32
    %10 = vector.broadcast %cst_8 : f32 to vector<256x16xf32>
    %11 = arith.maximumf %9, %10 : vector<256x16xf32>
    %cst_9 = arith.constant 0.000000e+00 : f32
    %12 = vector.broadcast %cst_9 : f32 to vector<24x16xf32>
    %c0_10 = arith.constant 0 : index
    %c0_11 = arith.constant 0 : index
    %13 = vector.load %arg15[%c0_10, %c0_11] : memref<304x16xf32, #tpu.memory_space<vmem>>, vector<24x16xf32>
    tpu.vector_store %arg15[%c0_10, %c0_11], %12 {strides = array<i32>} : memref<304x16xf32, #tpu.memory_space<vmem>>, vector<24x16xf32>,
    %c280 = arith.constant 280 : index
    %c0_12 = arith.constant 0 : index
    %14 = vector.load %arg15[%c280, %c0_12] : memref<304x16xf32, #tpu.memory_space<vmem>>, vector<24x16xf32>
    tpu.vector_store %arg15[%c280, %c0_12], %12 {strides = array<i32>} : memref<304x16xf32, #tpu.memory_space<vmem>>, vector<24x16xf32>,
    %c24 = arith.constant 24 : index
    %c0_13 = arith.constant 0 : index
    %15 = vector.load %arg15[%c24, %c0_13] : memref<304x16xf32, #tpu.memory_space<vmem>>, vector<256x16xf32>
    tpu.vector_store %arg15[%c24, %c0_13], %11 {strides = array<i32>} : memref<304x16xf32, #tpu.memory_space<vmem>>, vector<256x16xf32>,
    %16 = tpu.iota {dimensions = array<i32: 0>} : vector<256x16xi32>
    %c16_i32 = arith.constant 16 : i32
    %c0_i32 = arith.constant 0 : i32
    %17 = arith.cmpi eq, %c16_i32, %c0_i32 : i32
    %c1_i32 = arith.constant 1 : i32
    %18 = arith.select %17, %c1_i32, %c16_i32 : i32
    %19 = vector.broadcast %18 : i32 to vector<256x16xi32>
    %20 = arith.remsi %16, %19 : vector<256x16xi32>
    %c0_i32_14 = arith.constant 0 : i32
    %21 = vector.broadcast %c0_i32_14 : i32 to vector<256x16xi32>
    %22 = arith.cmpi ne, %20, %21 : vector<256x16xi32>
    %c0_i32_15 = arith.constant 0 : i32
    %23 = vector.broadcast %c0_i32_15 : i32 to vector<256x16xi32>
    %24 = arith.cmpi slt, %20, %23 : vector<256x16xi32>
    %c0_i32_16 = arith.constant 0 : i32
    %25 = arith.cmpi slt, %18, %c0_i32_16 : i32
    %26 = vector.broadcast %25 : i1 to vector<256x16xi1>
    %27 = vector.broadcast %26 : vector<256x16xi1> to vector<256x16xi1>
    %28 = arith.xori %24, %27 : vector<256x16xi1>
    %29 = arith.andi %28, %22 : vector<256x16xi1>
    %30 = vector.broadcast %18 : i32 to vector<256x16xi32>
    %31 = arith.addi %20, %30 : vector<256x16xi32>
    %32 = arith.select %29, %31, %20 : vector<256x16xi1>, vector<256x16xi32>
    %c0_i32_17 = arith.constant 0 : i32
    %33 = vector.broadcast %c0_i32_17 : i32 to vector<256x16xi32>
    %34 = arith.cmpi ne, %32, %33 : vector<256x16xi32>
    %c15_i32 = arith.constant 15 : i32
    %35 = vector.broadcast %c15_i32 : i32 to vector<256x16xi32>
    %36 = arith.cmpi ne, %32, %35 : vector<256x16xi32>
    %c0_18 = arith.constant 0 : index
    %c0_19 = arith.constant 0 : index
    %37 = vector.load %arg5[%c0_18, %c0_19] : memref<9x16xf32, #tpu.memory_space<vmem>>, vector<9x16xf32>
    %c0_20 = arith.constant 0 : index
    %c0_21 = arith.constant 0 : index
    %38 = vector.load %arg6[%c0_20, %c0_21] : memref<1x16xf32, #tpu.memory_space<vmem>>, vector<1x16xf32>
    %39 = vector.broadcast %38 : vector<1x16xf32> to vector<9x16xf32>
    %40 = arith.mulf %37, %39 : vector<9x16xf32>
    %c7 = arith.constant 7 : index
    %c0_22 = arith.constant 0 : index
    %41 = vector.load %arg15[%c7, %c0_22] : memref<304x16xf32, #tpu.memory_space<vmem>>, vector<256x16xf32>
    %42 = vector.extract_strided_slice %40 {offsets = [0, 0], sizes = [1, 16], strides = [1, 1]} : vector<9x16xf32> to vector<1x16xf32>
    %43 = vector.shape_cast %42 : vector<1x16xf32> to vector<16xf32>
    %44 = vector.shape_cast %43 : vector<16xf32> to vector<1x16xf32>
    %45 = vector.broadcast %44 : vector<1x16xf32> to vector<256x16xf32>
    %46 = arith.mulf %41, %45 : vector<256x16xf32>
    %cst_23 = arith.constant 0.000000e+00 : f32
    %47 = vector.broadcast %cst_23 : f32 to vector<256x16xf32>
    %48 = arith.select %34, %46, %47 : vector<256x16xi1>, vector<256x16xf32>
    %c8 = arith.constant 8 : index
    %c0_24 = arith.constant 0 : index
    %49 = vector.load %arg15[%c8, %c0_24] : memref<304x16xf32, #tpu.memory_space<vmem>>, vector<256x16xf32>
    %50 = vector.extract_strided_slice %40 {offsets = [1, 0], sizes = [1, 16], strides = [1, 1]} : vector<9x16xf32> to vector<1x16xf32>
    %51 = vector.shape_cast %50 : vector<1x16xf32> to vector<16xf32>
    %52 = vector.shape_cast %51 : vector<16xf32> to vector<1x16xf32>
    %53 = vector.broadcast %52 : vector<1x16xf32> to vector<256x16xf32>
    %54 = arith.mulf %49, %53 : vector<256x16xf32>
    %55 = arith.addf %48, %54 : vector<256x16xf32>
    %c9 = arith.constant 9 : index
    %c0_25 = arith.constant 0 : index
    %56 = vector.load %arg15[%c9, %c0_25] : memref<304x16xf32, #tpu.memory_space<vmem>>, vector<256x16xf32>
    %57 = vector.extract_strided_slice %40 {offsets = [2, 0], sizes = [1, 16], strides = [1, 1]} : vector<9x16xf32> to vector<1x16xf32>
    %58 = vector.shape_cast %57 : vector<1x16xf32> to vector<16xf32>
    %59 = vector.shape_cast %58 : vector<16xf32> to vector<1x16xf32>
    %60 = vector.broadcast %59 : vector<1x16xf32> to vector<256x16xf32>
    %61 = arith.mulf %56, %60 : vector<256x16xf32>
    %cst_26 = arith.constant 0.000000e+00 : f32
    %62 = vector.broadcast %cst_26 : f32 to vector<256x16xf32>
    %63 = arith.select %36, %61, %62 : vector<256x16xi1>, vector<256x16xf32>
    %64 = arith.addf %55, %63 : vector<256x16xf32>
    %c23 = arith.constant 23 : index
    %c0_27 = arith.constant 0 : index
    %65 = vector.load %arg15[%c23, %c0_27] : memref<304x16xf32, #tpu.memory_space<vmem>>, vector<256x16xf32>
    %66 = vector.extract_strided_slice %40 {offsets = [3, 0], sizes = [1, 16], strides = [1, 1]} : vector<9x16xf32> to vector<1x16xf32>
    %67 = vector.shape_cast %66 : vector<1x16xf32> to vector<16xf32>
    %68 = vector.shape_cast %67 : vector<16xf32> to vector<1x16xf32>
    %69 = vector.broadcast %68 : vector<1x16xf32> to vector<256x16xf32>
    %70 = arith.mulf %65, %69 : vector<256x16xf32>
    %cst_28 = arith.constant 0.000000e+00 : f32
    %71 = vector.broadcast %cst_28 : f32 to vector<256x16xf32>
    %72 = arith.select %34, %70, %71 : vector<256x16xi1>, vector<256x16xf32>
    %73 = arith.addf %64, %72 : vector<256x16xf32>
    %c24_29 = arith.constant 24 : index
    %c0_30 = arith.constant 0 : index
    %74 = vector.load %arg15[%c24_29, %c0_30] : memref<304x16xf32, #tpu.memory_space<vmem>>, vector<256x16xf32>
    %75 = vector.extract_strided_slice %40 {offsets = [4, 0], sizes = [1, 16], strides = [1, 1]} : vector<9x16xf32> to vector<1x16xf32>
    %76 = vector.shape_cast %75 : vector<1x16xf32> to vector<16xf32>
    %77 = vector.shape_cast %76 : vector<16xf32> to vector<1x16xf32>
    %78 = vector.broadcast %77 : vector<1x16xf32> to vector<256x16xf32>
    %79 = arith.mulf %74, %78 : vector<256x16xf32>
    %80 = arith.addf %73, %79 : vector<256x16xf32>
    %c25 = arith.constant 25 : index
    %c0_31 = arith.constant 0 : index
    %81 = vector.load %arg15[%c25, %c0_31] : memref<304x16xf32, #tpu.memory_space<vmem>>, vector<256x16xf32>
    %82 = vector.extract_strided_slice %40 {offsets = [5, 0], sizes = [1, 16], strides = [1, 1]} : vector<9x16xf32> to vector<1x16xf32>
    %83 = vector.shape_cast %82 : vector<1x16xf32> to vector<16xf32>
    %84 = vector.shape_cast %83 : vector<16xf32> to vector<1x16xf32>
    %85 = vector.broadcast %84 : vector<1x16xf32> to vector<256x16xf32>
    %86 = arith.mulf %81, %85 : vector<256x16xf32>
    %cst_32 = arith.constant 0.000000e+00 : f32
    %87 = vector.broadcast %cst_32 : f32 to vector<256x16xf32>
    %88 = arith.select %36, %86, %87 : vector<256x16xi1>, vector<256x16xf32>
    %89 = arith.addf %80, %88 : vector<256x16xf32>
    %c39 = arith.constant 39 : index
    %c0_33 = arith.constant 0 : index
    %90 = vector.load %arg15[%c39, %c0_33] : memref<304x16xf32, #tpu.memory_space<vmem>>, vector<256x16xf32>
    %91 = vector.extract_strided_slice %40 {offsets = [6, 0], sizes = [1, 16], strides = [1, 1]} : vector<9x16xf32> to vector<1x16xf32>
    %92 = vector.shape_cast %91 : vector<1x16xf32> to vector<16xf32>
    %93 = vector.shape_cast %92 : vector<16xf32> to vector<1x16xf32>
    %94 = vector.broadcast %93 : vector<1x16xf32> to vector<256x16xf32>
    %95 = arith.mulf %90, %94 : vector<256x16xf32>
    %cst_34 = arith.constant 0.000000e+00 : f32
    %96 = vector.broadcast %cst_34 : f32 to vector<256x16xf32>
    %97 = arith.select %34, %95, %96 : vector<256x16xi1>, vector<256x16xf32>
    %98 = arith.addf %89, %97 : vector<256x16xf32>
    %c40 = arith.constant 40 : index
    %c0_35 = arith.constant 0 : index
    %99 = vector.load %arg15[%c40, %c0_35] : memref<304x16xf32, #tpu.memory_space<vmem>>, vector<256x16xf32>
    %100 = vector.extract_strided_slice %40 {offsets = [7, 0], sizes = [1, 16], strides = [1, 1]} : vector<9x16xf32> to vector<1x16xf32>
    %101 = vector.shape_cast %100 : vector<1x16xf32> to vector<16xf32>
    %102 = vector.shape_cast %101 : vector<16xf32> to vector<1x16xf32>
    %103 = vector.broadcast %102 : vector<1x16xf32> to vector<256x16xf32>
    %104 = arith.mulf %99, %103 : vector<256x16xf32>
    %105 = arith.addf %98, %104 : vector<256x16xf32>
    %c41 = arith.constant 41 : index
    %c0_36 = arith.constant 0 : index
    %106 = vector.load %arg15[%c41, %c0_36] : memref<304x16xf32, #tpu.memory_space<vmem>>, vector<256x16xf32>
    %107 = vector.extract_strided_slice %40 {offsets = [8, 0], sizes = [1, 16], strides = [1, 1]} : vector<9x16xf32> to vector<1x16xf32>
    %108 = vector.shape_cast %107 : vector<1x16xf32> to vector<16xf32>
    %109 = vector.shape_cast %108 : vector<16xf32> to vector<1x16xf32>
    %110 = vector.broadcast %109 : vector<1x16xf32> to vector<256x16xf32>
    %111 = arith.mulf %106, %110 : vector<256x16xf32>
    %cst_37 = arith.constant 0.000000e+00 : f32
    %112 = vector.broadcast %cst_37 : f32 to vector<256x16xf32>
    %113 = arith.select %36, %111, %112 : vector<256x16xi1>, vector<256x16xf32>
    %114 = arith.addf %105, %113 : vector<256x16xf32>
    %c0_38 = arith.constant 0 : index
    %c0_39 = arith.constant 0 : index
    %115 = vector.load %arg7[%c0_38, %c0_39] : memref<1x16xf32, #tpu.memory_space<vmem>>, vector<1x16xf32>
    %116 = vector.broadcast %115 : vector<1x16xf32> to vector<256x16xf32>
    %117 = arith.addf %114, %116 : vector<256x16xf32>
    %cst_40 = arith.constant 0.000000e+00 : f32
    %118 = vector.broadcast %cst_40 : f32 to vector<256x16xf32>
    %119 = arith.maximumf %117, %118 : vector<256x16xf32>
    %c0_41 = arith.constant 0 : index
    %c0_42 = arith.constant 0 : index
    %120 = vector.load %arg8[%c0_41, %c0_42] : memref<16x8xf32, #tpu.memory_space<vmem>>, vector<16x8xf32>
    %cst_43 = arith.constant dense<0.000000e+00> : vector<256x8xf32>
    %121 = tpu.matmul %119, %120, %cst_43 {dimension_numbers = #tpu.dot_dimension_numbers<[1], [0], [0], [1], [0, 0, 1, 1], [], []>} : vector<256x16xf32>, vector<16x8xf32>, vector<256x8xf32> -> vector<256x8xf32>
    %c0_44 = arith.constant 0 : index
    %c0_45 = arith.constant 0 : index
    %122 = vector.load %arg9[%c0_44, %c0_45] : memref<1x8xf32, #tpu.memory_space<vmem>>, vector<1x8xf32>
    %123 = vector.broadcast %122 : vector<1x8xf32> to vector<256x8xf32>
    %124 = arith.mulf %121, %123 : vector<256x8xf32>
    %c0_46 = arith.constant 0 : index
    %c0_47 = arith.constant 0 : index
    %125 = vector.load %arg10[%c0_46, %c0_47] : memref<1x8xf32, #tpu.memory_space<vmem>>, vector<1x8xf32>
    %126 = vector.broadcast %125 : vector<1x8xf32> to vector<256x8xf32>
    %127 = arith.addf %124, %126 : vector<256x8xf32>
    %c0_48 = arith.constant 0 : index
    %c0_49 = arith.constant 0 : index
    %128 = vector.load %arg11[%c0_48, %c0_49] : memref<4x8xf32, #tpu.memory_space<vmem>>, vector<4x8xf32>
    %cst_50 = arith.constant dense<0.000000e+00> : vector<256x8xf32>
    %129 = tpu.matmul %1, %128, %cst_50 {dimension_numbers = #tpu.dot_dimension_numbers<[1], [0], [0], [1], [0, 0, 1, 1], [], []>} : vector<256x4xf32>, vector<4x8xf32>, vector<256x8xf32> -> vector<256x8xf32>
    %c0_51 = arith.constant 0 : index
    %c0_52 = arith.constant 0 : index
    %130 = vector.load %arg12[%c0_51, %c0_52] : memref<1x8xf32, #tpu.memory_space<vmem>>, vector<1x8xf32>
    %131 = vector.broadcast %130 : vector<1x8xf32> to vector<256x8xf32>
    %132 = arith.mulf %129, %131 : vector<256x8xf32>
    %c0_53 = arith.constant 0 : index
    %c0_54 = arith.constant 0 : index
    %133 = vector.load %arg13[%c0_53, %c0_54] : memref<1x8xf32, #tpu.memory_space<vmem>>, vector<1x8xf32>
    %134 = vector.broadcast %133 : vector<1x8xf32> to vector<256x8xf32>
    %135 = arith.addf %132, %134 : vector<256x8xf32>
    %136 = arith.addf %127, %135 : vector<256x8xf32>
    %c0_55 = arith.constant 0 : index
    %c0_56 = arith.constant 0 : index
    %c0_57 = arith.constant 0 : index
    %137 = vector.load %arg14[%c0_55, %c0_56, %c0_57] : memref<1x256x8xf32, #tpu.memory_space<vmem>>, vector<1x256x8xf32>
    %138 = vector.shape_cast %137 : vector<1x256x8xf32> to vector<256x8xf32>
    %139 = vector.shape_cast %136 : vector<256x8xf32> to vector<1x256x8xf32>
    tpu.vector_store %arg14[%c0_55, %c0_56, %c0_57], %139 {strides = array<i32>} : memref<1x256x8xf32, #tpu.memory_space<vmem>>, vector<1x256x8xf32>,
    return
  }
  func.func @transform_0(%arg0: i32) -> (i32, i32, i32) {
    %c0_i32 = arith.constant 0 : i32
    %c0_i32_0 = arith.constant 0 : i32
    %c0_i32_1 = arith.constant 0 : i32
    return %arg0, %c0_i32, %c0_i32_0 : i32, i32, i32
  }
  func.func @transform_1(%arg0: i32) -> (i32, i32) {
    %c0_i32 = arith.constant 0 : i32
    %c0_i32_0 = arith.constant 0 : i32
    %c0_i32_1 = arith.constant 0 : i32
    return %c0_i32, %c0_i32_0 : i32, i32
  }
  func.func @transform_2(%arg0: i32) -> (i32, i32) {
    %c0_i32 = arith.constant 0 : i32
    %c0_i32_0 = arith.constant 0 : i32
    %c0_i32_1 = arith.constant 0 : i32
    return %c0_i32, %c0_i32_0 : i32, i32
  }
  func.func @transform_3(%arg0: i32) -> (i32, i32) {
    %c0_i32 = arith.constant 0 : i32
    %c0_i32_0 = arith.constant 0 : i32
    %c0_i32_1 = arith.constant 0 : i32
    return %c0_i32, %c0_i32_0 : i32, i32
  }
  func.func @transform_4(%arg0: i32) -> (i32, i32) {
    %c0_i32 = arith.constant 0 : i32
    %c0_i32_0 = arith.constant 0 : i32
    %c0_i32_1 = arith.constant 0 : i32
    return %c0_i32, %c0_i32_0 : i32, i32
  }
  func.func @transform_5(%arg0: i32) -> (i32, i32) {
    %c0_i32 = arith.constant 0 : i32
    %c0_i32_0 = arith.constant 0 : i32
    %c0_i32_1 = arith.constant 0 : i32
    return %c0_i32, %c0_i32_0 : i32, i32
  }
  func.func @transform_6(%arg0: i32) -> (i32, i32) {
    %c0_i32 = arith.constant 0 : i32
    %c0_i32_0 = arith.constant 0 : i32
    %c0_i32_1 = arith.constant 0 : i32
    return %c0_i32, %c0_i32_0 : i32, i32
  }
  func.func @transform_7(%arg0: i32) -> (i32, i32) {
    %c0_i32 = arith.constant 0 : i32
    %c0_i32_0 = arith.constant 0 : i32
    %c0_i32_1 = arith.constant 0 : i32
    return %c0_i32, %c0_i32_0 : i32, i32
  }
  func.func @transform_8(%arg0: i32) -> (i32, i32) {
    %c0_i32 = arith.constant 0 : i32
    %c0_i32_0 = arith.constant 0 : i32
    %c0_i32_1 = arith.constant 0 : i32
    return %c0_i32, %c0_i32_0 : i32, i32
  }
  func.func @transform_9(%arg0: i32) -> (i32, i32) {
    %c0_i32 = arith.constant 0 : i32
    %c0_i32_0 = arith.constant 0 : i32
    %c0_i32_1 = arith.constant 0 : i32
    return %c0_i32, %c0_i32_0 : i32, i32
  }
  func.func @transform_10(%arg0: i32) -> (i32, i32) {
    %c0_i32 = arith.constant 0 : i32
    %c0_i32_0 = arith.constant 0 : i32
    %c0_i32_1 = arith.constant 0 : i32
    return %c0_i32, %c0_i32_0 : i32, i32
  }
  func.func @transform_11(%arg0: i32) -> (i32, i32) {
    %c0_i32 = arith.constant 0 : i32
    %c0_i32_0 = arith.constant 0 : i32
    %c0_i32_1 = arith.constant 0 : i32
    return %c0_i32, %c0_i32_0 : i32, i32
  }
  func.func @transform_12(%arg0: i32) -> (i32, i32) {
    %c0_i32 = arith.constant 0 : i32
    %c0_i32_0 = arith.constant 0 : i32
    %c0_i32_1 = arith.constant 0 : i32
    return %c0_i32, %c0_i32_0 : i32, i32
  }
  func.func @transform_13(%arg0: i32) -> (i32, i32, i32) {
    %c0_i32 = arith.constant 0 : i32
    %c0_i32_0 = arith.constant 0 : i32
    %c0_i32_1 = arith.constant 0 : i32
    return %arg0, %c0_i32, %c0_i32_0 : i32, i32, i32
  }
}

</mosaic_0001>

<llo_original>
// kernel: tpu_custom_call.1
$region0: #{tpu_custom_call.1}
  #allocation0 [shape = 'u32[]', space=smem, size = 0x4, offset = 0x4, fixed_abs, tag = 'smem constant byte address 0x4 - core index']
  #allocation1 [shape = 'u32[72,128]{1,0:T(1,128)}', space=vmem, size = 0x9000, scoped, tag = 'internal scratch']
  #allocation2 [shape = 'f32[304,16]{1,0:T(8,128)}', space=vmem, size = 0x26000, scoped, tag = 'scratch operand']
  %s0 = inlined_call_operand.vmem [shape: f32[2,256,4], index: 0, kind: input, shape index: {}]
  %s1 = inlined_call_operand.vmem [shape: f32[4,16], index: 1, kind: input, shape index: {}]
  %s2 = inlined_call_operand.vmem [shape: f32[1,16], index: 2, kind: input, shape index: {}]
  %s3 = inlined_call_operand.vmem [shape: f32[1,16], index: 3, kind: input, shape index: {}]
  %s4 = inlined_call_operand.vmem [shape: f32[9,16], index: 4, kind: input, shape index: {}]
  %s5 = inlined_call_operand.vmem [shape: f32[1,16], index: 5, kind: input, shape index: {}]
  %s6 = inlined_call_operand.vmem [shape: f32[1,16], index: 6, kind: input, shape index: {}]
  %s7 = inlined_call_operand.vmem [shape: f32[16,8], index: 7, kind: input, shape index: {}]
  %s8 = inlined_call_operand.vmem [shape: f32[1,8], index: 8, kind: input, shape index: {}]
  %s9 = inlined_call_operand.vmem [shape: f32[1,8], index: 9, kind: input, shape index: {}]
  %s10 = inlined_call_operand.vmem [shape: f32[4,8], index: 10, kind: input, shape index: {}]
  %s11 = inlined_call_operand.vmem [shape: f32[1,8], index: 11, kind: input, shape index: {}]
  %s12 = inlined_call_operand.vmem [shape: f32[1,8], index: 12, kind: input, shape index: {}]
  %s13 = inlined_call_operand.vmem [shape: f32[2,256,8], index: 13, kind: output, shape index: {}]
  %s14 = sld [smem:[#allocation0]]
  $region85: #{tpu_custom_call.1} parent=0
    _
  %s16 = ssub.s32 1, %s14
  %s17 = scalar_select 0, %s16, %s14
  loop: start=0, step=1, limit=4
  $region2: #{tpu_custom_call.1} parent=0 // loop_pre_header
    _
  $region3: #{tpu_custom_call.1} parent=0 // loop_header
    %s19 = sphi 0, %s23
    %p20 = scmp.ge.s32.totalorder %s19, 4
    %s29 = sphi 0, %s31
    %s32 = sphi 0, %s29
    %s33 = sphi 0, %s32
    %s49 = sphi 0, %s33
    %s53 = sphi 0, %s53
    %s55 = sphi 0, %s53
    %s56 = sphi 0, %s55
    %s70 = sphi 0, %s56
    %s74 = sphi 0, %s74
    %s76 = sphi 0, %s74
    %s77 = sphi 0, %s76
    %s91 = sphi 0, %s77
    %s95 = sphi 0, %s95
    %s97 = sphi 0, %s95
    %s98 = sphi 0, %s97
    %s112 = sphi 0, %s98
    %s116 = sphi 0, %s116
    %s118 = sphi 0, %s116
    %s119 = sphi 0, %s118
    %s133 = sphi 0, %s119
    %s137 = sphi 0, %s137
    %s139 = sphi 0, %s137
    %s140 = sphi 0, %s139
    %s154 = sphi 0, %s140
    %s158 = sphi 0, %s158
    %s160 = sphi 0, %s158
    %s161 = sphi 0, %s160
    %s175 = sphi 0, %s161
    %s179 = sphi 0, %s179
    %s181 = sphi 0, %s179
    %s182 = sphi 0, %s181
    %s196 = sphi 0, %s182
    %s200 = sphi 0, %s200
    %s202 = sphi 0, %s200
    %s203 = sphi 0, %s202
    %s217 = sphi 0, %s203
    %s221 = sphi 0, %s221
    %s223 = sphi 0, %s221
    %s224 = sphi 0, %s223
    %s238 = sphi 0, %s224
    %s242 = sphi 0, %s242
    %s244 = sphi 0, %s242
    %s245 = sphi 0, %s244
    %s259 = sphi 0, %s245
    %s263 = sphi 0, %s263
    %s265 = sphi 0, %s263
    %s266 = sphi 0, %s265
    %s280 = sphi 0, %s266
    %s284 = sphi 0, %s284
    %s286 = sphi 0, %s284
    %s287 = sphi 0, %s286
    %s301 = sphi 0, %s287
    %s307 = sphi 0, %s309
    %s310 = sphi 0, %s307
    %s311 = sphi 0, %s310
    %s327 = sphi 0, %s311
  $region4: #{tpu_custom_call.1} parent=0 // loop_header_branch
    %22 = sbr.rel (%p20) target = $region8
  $region5: #{tpu_custom_call.1} parent=0 // loop_body
    %s24 = ssub.s32 %s19, 1
    %s25 = ssub.s32 %s19, 2
    %s26 = sadd.s32 %s19, 1
    %s27 = ssub.s32 %s19, %s26
    %p28 = scmp.eq.s32.totalorder %s27, 0
    %s30 = sadd.s32 %s29, 1
    %s31 = scalar_select %p28, %s29, %s30
    %p34 = pneg %p28
    %p35 = scmp.eq.s32.totalorder %s19, 1
    %p36 = por %p34, %p35
    %p37 = scmp.ne.s32.totalorder %s29, %s32
    %p38 = scmp.eq.s32.totalorder %s19, 0
    %p39 = por %p37, %p38
    %p40 = scmp.ne.s32.totalorder %s29, %s32
    %p41 = scmp.eq.s32.totalorder %s24, 1
    %p42 = por %p40, %p41
    %p43 = scmp.ne.s32.totalorder %s32, %s33
    %p44 = scmp.eq.s32.totalorder %s24, 0
    %p45 = por %p43, %p44
    %p46 = scmp.ne.s32.totalorder %s32, %s33
    %p47 = scmp.eq.s32.totalorder %s25, 1
    %p48 = por %p46, %p47
    %p50 = scmp.ne.s32.totalorder %s33, %s49
    %p51 = scmp.eq.s32.totalorder %s25, 0
    %p52 = por %p50, %p51
    %s54 = sadd.s32 %s53, 1
    %p57 = scmp.eq.s32.totalorder %s19, 1
    %p58 = scmp.ne.s32.totalorder %s53, %s55
    %p59 = scmp.eq.s32.totalorder %s19, 0
    %p60 = por %p58, %p59
    %p61 = scmp.ne.s32.totalorder %s53, %s55
    %p62 = scmp.eq.s32.totalorder %s24, 1
    %p63 = por %p61, %p62
    %p64 = scmp.ne.s32.totalorder %s55, %s56
    %p65 = scmp.eq.s32.totalorder %s24, 0
    %p66 = por %p64, %p65
    %p67 = scmp.ne.s32.totalorder %s55, %s56
    %p68 = scmp.eq.s32.totalorder %s25, 1
    %p69 = por %p67, %p68
    %p71 = scmp.ne.s32.totalorder %s56, %s70
    %p72 = scmp.eq.s32.totalorder %s25, 0
    %p73 = por %p71, %p72
    %s75 = sadd.s32 %s74, 1
    %p78 = scmp.eq.s32.totalorder %s19, 1
    %p79 = scmp.ne.s32.totalorder %s74, %s76
    %p80 = scmp.eq.s32.totalorder %s19, 0
    %p81 = por %p79, %p80
    %p82 = scmp.ne.s32.totalorder %s74, %s76
    %p83 = scmp.eq.s32.totalorder %s24, 1
    %p84 = por %p82, %p83
    %p85 = scmp.ne.s32.totalorder %s76, %s77
    %p86 = scmp.eq.s32.totalorder %s24, 0
    %p87 = por %p85, %p86
    %p88 = scmp.ne.s32.totalorder %s76, %s77
    %p89 = scmp.eq.s32.totalorder %s25, 1
    %p90 = por %p88, %p89
    %p92 = scmp.ne.s32.totalorder %s77, %s91
    %p93 = scmp.eq.s32.totalorder %s25, 0
    %p94 = por %p92, %p93
    %s96 = sadd.s32 %s95, 1
    %p99 = scmp.eq.s32.totalorder %s19, 1
    %p100 = scmp.ne.s32.totalorder %s95, %s97
    %p101 = scmp.eq.s32.totalorder %s19, 0
    %p102 = por %p100, %p101
    %p103 = scmp.ne.s32.totalorder %s95, %s97
    %p104 = scmp.eq.s32.totalorder %s24, 1
    %p105 = por %p103, %p104
    %p106 = scmp.ne.s32.totalorder %s97, %s98
    %p107 = scmp.eq.s32.totalorder %s24, 0
    %p108 = por %p106, %p107
    %p109 = scmp.ne.s32.totalorder %s97, %s98
    %p110 = scmp.eq.s32.totalorder %s25, 1
    %p111 = por %p109, %p110
    %p113 = scmp.ne.s32.totalorder %s98, %s112
    %p114 = scmp.eq.s32.totalorder %s25, 0
    %p115 = por %p113, %p114
    %s117 = sadd.s32 %s116, 1
    %p120 = scmp.eq.s32.totalorder %s19, 1
    %p121 = scmp.ne.s32.totalorder %s116, %s118
    %p122 = scmp.eq.s32.totalorder %s19, 0
    %p123 = por %p121, %p122
    %p124 = scmp.ne.s32.totalorder %s116, %s118
    %p125 = scmp.eq.s32.totalorder %s24, 1
    %p126 = por %p124, %p125
    %p127 = scmp.ne.s32.totalorder %s118, %s119
    %p128 = scmp.eq.s32.totalorder %s24, 0
    %p129 = por %p127, %p128
    %p130 = scmp.ne.s32.totalorder %s118, %s119
    %p131 = scmp.eq.s32.totalorder %s25, 1
    %p132 = por %p130, %p131
    %p134 = scmp.ne.s32.totalorder %s119, %s133
    %p135 = scmp.eq.s32.totalorder %s25, 0
    %p136 = por %p134, %p135
    %s138 = sadd.s32 %s137, 1
    %p141 = scmp.eq.s32.totalorder %s19, 1
    %p142 = scmp.ne.s32.totalorder %s137, %s139
    %p143 = scmp.eq.s32.totalorder %s19, 0
    %p144 = por %p142, %p143
    %p145 = scmp.ne.s32.totalorder %s137, %s139
    %p146 = scmp.eq.s32.totalorder %s24, 1
    %p147 = por %p145, %p146
    %p148 = scmp.ne.s32.totalorder %s139, %s140
    %p149 = scmp.eq.s32.totalorder %s24, 0
    %p150 = por %p148, %p149
    %p151 = scmp.ne.s32.totalorder %s139, %s140
    %p152 = scmp.eq.s32.totalorder %s25, 1
    %p153 = por %p151, %p152
    %p155 = scmp.ne.s32.totalorder %s140, %s154
    %p156 = scmp.eq.s32.totalorder %s25, 0
    %p157 = por %p155, %p156
    %s159 = sadd.s32 %s158, 1
    %p162 = scmp.eq.s32.totalorder %s19, 1
    %p163 = scmp.ne.s32.totalorder %s158, %s160
    %p164 = scmp.eq.s32.totalorder %s19, 0
    %p165 = por %p163, %p164
    %p166 = scmp.ne.s32.totalorder %s158, %s160
    %p167 = scmp.eq.s32.totalorder %s24, 1
    %p168 = por %p166, %p167
    %p169 = scmp.ne.s32.totalorder %s160, %s161
    %p170 = scmp.eq.s32.totalorder %s24, 0
    %p171 = por %p169, %p170
    %p172 = scmp.ne.s32.totalorder %s160, %s161
    %p173 = scmp.eq.s32.totalorder %s25, 1
    %p174 = por %p172, %p173
    %p176 = scmp.ne.s32.totalorder %s161, %s175
    %p177 = scmp.eq.s32.totalorder %s25, 0
    %p178 = por %p176, %p177
    %s180 = sadd.s32 %s179, 1
    %p183 = scmp.eq.s32.totalorder %s19, 1
    %p184 = scmp.ne.s32.totalorder %s179, %s181
    %p185 = scmp.eq.s32.totalorder %s19, 0
    %p186 = por %p184, %p185
    %p187 = scmp.ne.s32.totalorder %s179, %s181
    %p188 = scmp.eq.s32.totalorder %s24, 1
    %p189 = por %p187, %p188
    %p190 = scmp.ne.s32.totalorder %s181, %s182
    %p191 = scmp.eq.s32.totalorder %s24, 0
    %p192 = por %p190, %p191
    %p193 = scmp.ne.s32.totalorder %s181, %s182
    %p194 = scmp.eq.s32.totalorder %s25, 1
    %p195 = por %p193, %p194
    %p197 = scmp.ne.s32.totalorder %s182, %s196
    %p198 = scmp.eq.s32.totalorder %s25, 0
    %p199 = por %p197, %p198
    %s201 = sadd.s32 %s200, 1
    %p204 = scmp.eq.s32.totalorder %s19, 1
    %p205 = scmp.ne.s32.totalorder %s200, %s202
    %p206 = scmp.eq.s32.totalorder %s19, 0
    %p207 = por %p205, %p206
    %p208 = scmp.ne.s32.totalorder %s200, %s202
    %p209 = scmp.eq.s32.totalorder %s24, 1
    %p210 = por %p208, %p209
    %p211 = scmp.ne.s32.totalorder %s202, %s203
    %p212 = scmp.eq.s32.totalorder %s24, 0
    %p213 = por %p211, %p212
    %p214 = scmp.ne.s32.totalorder %s202, %s203
    %p215 = scmp.eq.s32.totalorder %s25, 1
    %p216 = por %p214, %p215
    %p218 = scmp.ne.s32.totalorder %s203, %s217
    %p219 = scmp.eq.s32.totalorder %s25, 0
    %p220 = por %p218, %p219
    %s222 = sadd.s32 %s221, 1
    %p225 = scmp.eq.s32.totalorder %s19, 1
    %p226 = scmp.ne.s32.totalorder %s221, %s223
    %p227 = scmp.eq.s32.totalorder %s19, 0
    %p228 = por %p226, %p227
    %p229 = scmp.ne.s32.totalorder %s221, %s223
    %p230 = scmp.eq.s32.totalorder %s24, 1
    %p231 = por %p229, %p230
    %p232 = scmp.ne.s32.totalorder %s223, %s224
    %p233 = scmp.eq.s32.totalorder %s24, 0
    %p234 = por %p232, %p233
    %p235 = scmp.ne.s32.totalorder %s223, %s224
    %p236 = scmp.eq.s32.totalorder %s25, 1
    %p237 = por %p235, %p236
    %p239 = scmp.ne.s32.totalorder %s224, %s238
    %p240 = scmp.eq.s32.totalorder %s25, 0
    %p241 = por %p239, %p240
    %s243 = sadd.s32 %s242, 1
    %p246 = scmp.eq.s32.totalorder %s19, 1
    %p247 = scmp.ne.s32.totalorder %s242, %s244
    %p248 = scmp.eq.s32.totalorder %s19, 0
    %p249 = por %p247, %p248
    %p250 = scmp.ne.s32.totalorder %s242, %s244
    %p251 = scmp.eq.s32.totalorder %s24, 1
    %p252 = por %p250, %p251
    %p253 = scmp.ne.s32.totalorder %s244, %s245
    %p254 = scmp.eq.s32.totalorder %s24, 0
    %p255 = por %p253, %p254
    %p256 = scmp.ne.s32.totalorder %s244, %s245
    %p257 = scmp.eq.s32.totalorder %s25, 1
    %p258 = por %p256, %p257
    %p260 = scmp.ne.s32.totalorder %s245, %s259
    %p261 = scmp.eq.s32.totalorder %s25, 0
    %p262 = por %p260, %p261
    %s264 = sadd.s32 %s263, 1
    %p267 = scmp.eq.s32.totalorder %s19, 1
    %p268 = scmp.ne.s32.totalorder %s263, %s265
    %p269 = scmp.eq.s32.totalorder %s19, 0
    %p270 = por %p268, %p269
    %p271 = scmp.ne.s32.totalorder %s263, %s265
    %p272 = scmp.eq.s32.totalorder %s24, 1
    %p273 = por %p271, %p272
    %p274 = scmp.ne.s32.totalorder %s265, %s266
    %p275 = scmp.eq.s32.totalorder %s24, 0
    %p276 = por %p274, %p275
    %p277 = scmp.ne.s32.totalorder %s265, %s266
    %p278 = scmp.eq.s32.totalorder %s25, 1
    %p279 = por %p277, %p278
    %p281 = scmp.ne.s32.totalorder %s266, %s280
    %p282 = scmp.eq.s32.totalorder %s25, 0
    %p283 = por %p281, %p282
    %s285 = sadd.s32 %s284, 1
    %p288 = scmp.eq.s32.totalorder %s19, 1
    %p289 = scmp.ne.s32.totalorder %s284, %s286
    %p290 = scmp.eq.s32.totalorder %s19, 0
    %p291 = por %p289, %p290
    %p292 = scmp.ne.s32.totalorder %s284, %s286
    %p293 = scmp.eq.s32.totalorder %s24, 1
    %p294 = por %p292, %p293
    %p295 = scmp.ne.s32.totalorder %s286, %s287
    %p296 = scmp.eq.s32.totalorder %s24, 0
    %p297 = por %p295, %p296
    %p298 = scmp.ne.s32.totalorder %s286, %s287
    %p299 = scmp.eq.s32.totalorder %s25, 1
    %p300 = por %p298, %p299
    %p302 = scmp.ne.s32.totalorder %s287, %s301
    %p303 = scmp.eq.s32.totalorder %s25, 0
    %p304 = por %p302, %p303
    %s305 = ssub.s32 %s19, %s26
    %p306 = scmp.eq.s32.totalorder %s305, 0
    %s308 = sadd.s32 %s307, 1
    %s309 = scalar_select %p306, %s307, %s308
    %p312 = pneg %p306
    %p313 = scmp.eq.s32.totalorder %s19, 1
    %p314 = por %p312, %p313
    %p315 = scmp.ne.s32.totalorder %s307, %s310
    %p316 = scmp.eq.s32.totalorder %s19, 0
    %p317 = por %p315, %p316
    %p318 = scmp.ne.s32.totalorder %s307, %s310
    %p319 = scmp.eq.s32.totalorder %s24, 1
    %p320 = por %p318, %p319
    %p321 = scmp.ne.s32.totalorder %s310, %s311
    %p322 = scmp.eq.s32.totalorder %s24, 0
    %p323 = por %p321, %p322
    %p324 = scmp.ne.s32.totalorder %s310, %s311
    %p325 = scmp.eq.s32.totalorder %s25, 1
    %p326 = por %p324, %p325
    %p328 = scmp.ne.s32.totalorder %s311, %s327
    %p329 = scmp.eq.s32.totalorder %s25, 0
    %p330 = por %p328, %p329
    %p331 = scmp.le.s32.totalorder 1, %s19
    %p332 = scmp.lt.s32.totalorder %s19, 3
    %p333 = pnand %p331, %p332
    %p334 = pneg %p333
    // Predicated region
    $region9: #{tpu_custom_call.1} parent=5 // pred_check
      _
    $region10: #{tpu_custom_call.1} parent=5 // pred_check_branch
      %336 = sbr.rel (%p333) target = $region12
    $region11: #{tpu_custom_call.1} parent=5 // pred_region
      %s337 = ssub.s32 %s19, 1
      // Predicated region
      $region13: #{tpu_custom_call.1} parent=11 // pred_check
        %p338 = pneg %p66
      $region14: #{tpu_custom_call.1} parent=11 // pred_check_branch
        %340 = sbr.rel (%p338) target = $region16
      $region15: #{tpu_custom_call.1} parent=11 // pred_region
        _
      $region16: #{tpu_custom_call.1} parent=11 // pred_fallthru
        _
      // Predicated region
      $region17: #{tpu_custom_call.1} parent=11 // pred_check
        %p341 = pneg %p87
      $region18: #{tpu_custom_call.1} parent=11 // pred_check_branch
        %343 = sbr.rel (%p341) target = $region20
      $region19: #{tpu_custom_call.1} parent=11 // pred_region
        _
      $region20: #{tpu_custom_call.1} parent=11 // pred_fallthru
        _
      // Predicated region
      $region21: #{tpu_custom_call.1} parent=11 // pred_check
        %p344 = pneg %p108
      $region22: #{tpu_custom_call.1} parent=11 // pred_check_branch
        %346 = sbr.rel (%p344) target = $region24
      $region23: #{tpu_custom_call.1} parent=11 // pred_region
        _
      $region24: #{tpu_custom_call.1} parent=11 // pred_fallthru
        _
      // Predicated region
      $region25: #{tpu_custom_call.1} parent=11 // pred_check
        %p347 = pneg %p129
      $region26: #{tpu_custom_call.1} parent=11 // pred_check_branch
        %349 = sbr.rel (%p347) target = $region28
      $region27: #{tpu_custom_call.1} parent=11 // pred_region
        _
      $region28: #{tpu_custom_call.1} parent=11 // pred_fallthru
        _
      // Predicated region
      $region29: #{tpu_custom_call.1} parent=11 // pred_check
        %p350 = pneg %p150
      $region30: #{tpu_custom_call.1} parent=11 // pred_check_branch
        %352 = sbr.rel (%p350) target = $region32
      $region31: #{tpu_custom_call.1} parent=11 // pred_region
        _
      $region32: #{tpu_custom_call.1} parent=11 // pred_fallthru
        _
      // Predicated region
      $region33: #{tpu_custom_call.1} parent=11 // pred_check
        %p353 = pneg %p171
      $region34: #{tpu_custom_call.1} parent=11 // pred_check_branch
        %355 = sbr.rel (%p353) target = $region36
      $region35: #{tpu_custom_call.1} parent=11 // pred_region
        _
      $region36: #{tpu_custom_call.1} parent=11 // pred_fallthru
        _
      // Predicated region
      $region37: #{tpu_custom_call.1} parent=11 // pred_check
        %p356 = pneg %p192
      $region38: #{tpu_custom_call.1} parent=11 // pred_check_branch
        %358 = sbr.rel (%p356) target = $region40
      $region39: #{tpu_custom_call.1} parent=11 // pred_region
        _
      $region40: #{tpu_custom_call.1} parent=11 // pred_fallthru
        _
      // Predicated region
      $region41: #{tpu_custom_call.1} parent=11 // pred_check
        %p359 = pneg %p213
      $region42: #{tpu_custom_call.1} parent=11 // pred_check_branch
        %361 = sbr.rel (%p359) target = $region44
      $region43: #{tpu_custom_call.1} parent=11 // pred_region
        _
      $region44: #{tpu_custom_call.1} parent=11 // pred_fallthru
        _
      // Predicated region
      $region45: #{tpu_custom_call.1} parent=11 // pred_check
        %p362 = pneg %p234
      $region46: #{tpu_custom_call.1} parent=11 // pred_check_branch
        %364 = sbr.rel (%p362) target = $region48
      $region47: #{tpu_custom_call.1} parent=11 // pred_region
        _
      $region48: #{tpu_custom_call.1} parent=11 // pred_fallthru
        _
      // Predicated region
      $region49: #{tpu_custom_call.1} parent=11 // pred_check
        %p365 = pneg %p255
      $region50: #{tpu_custom_call.1} parent=11 // pred_check_branch
        %367 = sbr.rel (%p365) target = $region52
      $region51: #{tpu_custom_call.1} parent=11 // pred_region
        _
      $region52: #{tpu_custom_call.1} parent=11 // pred_fallthru
        _
      // Predicated region
      $region53: #{tpu_custom_call.1} parent=11 // pred_check
        %p368 = pneg %p276
      $region54: #{tpu_custom_call.1} parent=11 // pred_check_branch
        %370 = sbr.rel (%p368) target = $region56
      $region55: #{tpu_custom_call.1} parent=11 // pred_region
        _
      $region56: #{tpu_custom_call.1} parent=11 // pred_fallthru
        _
      // Predicated region
      $region57: #{tpu_custom_call.1} parent=11 // pred_check
        %p371 = pneg %p297
      $region58: #{tpu_custom_call.1} parent=11 // pred_check_branch
        %373 = sbr.rel (%p371) target = $region60
      $region59: #{tpu_custom_call.1} parent=11 // pred_region
        _
      $region60: #{tpu_custom_call.1} parent=11 // pred_fallthru
        _
    $region12: #{tpu_custom_call.1} parent=5 // pred_fallthru
      _
    %p374 = scmp.lt.s32.totalorder %s19, 2
    // Predicated region
    $region61: #{tpu_custom_call.1} parent=5 // pred_check
      %p375 = pneg %p374
    $region62: #{tpu_custom_call.1} parent=5 // pred_check_branch
      %377 = sbr.rel (%p375) target = $region64
    $region63: #{tpu_custom_call.1} parent=5 // pred_region
      // Predicated region
      $region65: #{tpu_custom_call.1} parent=63 // pred_check
        %p378 = pneg %p39
      $region66: #{tpu_custom_call.1} parent=63 // pred_check_branch
        %380 = sbr.rel (%p378) target = $region68
      $region67: #{tpu_custom_call.1} parent=63 // pred_region
        %p381 = scmp.lt.s32.totalorder %s19, 1
        %s382 = scalar_select %p381, %s19, 1
        %s383 = smul.addr %s382, 32
        %s384 = smul.addr %s383, 8
        %s385 = scalar_lea.vmem %s0, %s384
      $region68: #{tpu_custom_call.1} parent=63 // pred_fallthru
        _
    $region64: #{tpu_custom_call.1} parent=5 // pred_fallthru
      _
    %p386 = scmp.le.s32.totalorder 1, %s19
    %p387 = scmp.lt.s32.totalorder %s19, 3
    %p388 = pnand %p386, %p387
    %p389 = pneg %p388
    // Predicated region
    $region69: #{tpu_custom_call.1} parent=5 // pred_check
      _
    $region70: #{tpu_custom_call.1} parent=5 // pred_check_branch
      %391 = sbr.rel (%p388) target = $region72
    $region71: #{tpu_custom_call.1} parent=5 // pred_region
      %s392 = ssub.s32 %s19, 1
      %p393 = scmp.lt.s32.totalorder %s24, 1
      %s394 = scalar_select %p393, %s24, 1
      %s395 = smul.addr %s394, 32
      %s396 = smul.addr %s395, 8
      %s397 = scalar_lea.vmem %s0, %s396
      %p398 = pneg %p45
      %p399 = pneg %p42
      %p400 = pneg %p66
      %p401 = pneg %p63
      %p402 = pneg %p87
      %p403 = pneg %p84
      %p404 = pneg %p108
      %p405 = pneg %p105
      %p406 = pneg %p129
      %p407 = pneg %p126
      %p408 = pneg %p150
      %p409 = pneg %p147
      %p410 = pneg %p171
      %p411 = pneg %p168
      %p412 = pneg %p192
      %p413 = pneg %p189
      %p414 = pneg %p213
      %p415 = pneg %p210
      %p416 = pneg %p234
      %p417 = pneg %p231
      %p418 = pneg %p255
      %p419 = pneg %p252
      %p420 = pneg %p276
      %p421 = pneg %p273
      %p422 = pneg %p297
      %p423 = pneg %p294
      %p424 = pneg %p323
      %p425 = pneg %p320
      %p426 = scmp.lt.s32.totalorder %s24, 1
      %s427 = scalar_select %p426, %s24, 1
      %s428 = smul.addr %s427, 32
      %s429 = smul.addr %s428, 8
      %s430 = scalar_lea.vmem %s13, %s429
      %p431 = scmp.lt.s32.totalorder %s24, 1
      %s432 = scalar_select %p431, %s24, 1
      %s433 = smul.addr %s432, 32
      %s434 = smul.addr %s433, 8
      %s435 = scalar_lea.vmem %s0, %s434
      %p436 = scmp.lt.s32.totalorder %s24, 1
      %s437 = scalar_select %p436, %s24, 1
      %s438 = smul.addr %s437, 32
      %s439 = smul.addr %s438, 8
      %s440 = scalar_lea.vmem %s13, %s439
      %v441 = vld [vmem:[%s435] sm:$0xff]
      %v442 = vld [vmem:[%s435 + $0x8] sm:$0xff]
      %v443 = vld [vmem:[%s435 + $0x10] sm:$0xff]
      %v444 = vld [vmem:[%s435 + $0x18] sm:$0xff]
      %v445 = vld [vmem:[%s435 + $0x20] sm:$0xff]
      %v446 = vld [vmem:[%s435 + $0x28] sm:$0xff]
      %v447 = vld [vmem:[%s435 + $0x30] sm:$0xff]
      %v448 = vld [vmem:[%s435 + $0x38] sm:$0xff]
      %v449 = vld [vmem:[%s435 + $0x40] sm:$0xff]
      %v450 = vld [vmem:[%s435 + $0x48] sm:$0xff]
      %v451 = vld [vmem:[%s435 + $0x50] sm:$0xff]
      %v452 = vld [vmem:[%s435 + $0x58] sm:$0xff]
      %v453 = vld [vmem:[%s435 + $0x60] sm:$0xff]
      %v454 = vld [vmem:[%s435 + $0x68] sm:$0xff]
      %v455 = vld [vmem:[%s435 + $0x70] sm:$0xff]
      %v456 = vld [vmem:[%s435 + $0x78] sm:$0xff]
      %v457 = vld [vmem:[%s435 + $0x80] sm:$0xff]
      %v458 = vld [vmem:[%s435 + $0x88] sm:$0xff]
      %v459 = vld [vmem:[%s435 + $0x90] sm:$0xff]
      %v460 = vld [vmem:[%s435 + $0x98] sm:$0xff]
      %v461 = vld [vmem:[%s435 + $0xa0] sm:$0xff]
      %v462 = vld [vmem:[%s435 + $0xa8] sm:$0xff]
      %v463 = vld [vmem:[%s435 + $0xb0] sm:$0xff]
      %v464 = vld [vmem:[%s435 + $0xb8] sm:$0xff]
      %v465 = vld [vmem:[%s435 + $0xc0] sm:$0xff]
      %v466 = vld [vmem:[%s435 + $0xc8] sm:$0xff]
      %v467 = vld [vmem:[%s435 + $0xd0] sm:$0xff]
      %v468 = vld [vmem:[%s435 + $0xd8] sm:$0xff]
      %v469 = vld [vmem:[%s435 + $0xe0] sm:$0xff]
      %v470 = vld [vmem:[%s435 + $0xe8] sm:$0xff]
      %v471 = vld [vmem:[%s435 + $0xf0] sm:$0xff]
      %v472 = vld [vmem:[%s435 + $0xf8] sm:$0xff]
      %v473 = vld [vmem:[%s1] sm:$0xf]
      %vm474 = vcmask 31744
      %v476 = vsel %vm474, %v441, 0
      %v479 = vsel %vm474, %v442, 0
      %v482 = vsel %vm474, %v443, 0
      %v485 = vsel %vm474, %v444, 0
      %v488 = vsel %vm474, %v445, 0
      %v491 = vsel %vm474, %v446, 0
      %v494 = vsel %vm474, %v447, 0
      %v497 = vsel %vm474, %v448, 0
      %v500 = vsel %vm474, %v449, 0
      %v503 = vsel %vm474, %v450, 0
      %v506 = vsel %vm474, %v451, 0
      %v509 = vsel %vm474, %v452, 0
      %v512 = vsel %vm474, %v453, 0
      %v515 = vsel %vm474, %v454, 0
      %v518 = vsel %vm474, %v455, 0
      %v521 = vsel %vm474, %v456, 0
      %v524 = vsel %vm474, %v457, 0
      %v527 = vsel %vm474, %v458, 0
      %v530 = vsel %vm474, %v459, 0
      %v533 = vsel %vm474, %v460, 0
      %v536 = vsel %vm474, %v461, 0
      %v539 = vsel %vm474, %v462, 0
      %v542 = vsel %vm474, %v463, 0
      %v545 = vsel %vm474, %v464, 0
      %v548 = vsel %vm474, %v465, 0
      %v551 = vsel %vm474, %v466, 0
      %v554 = vsel %vm474, %v467, 0
      %v557 = vsel %vm474, %v468, 0
      %v560 = vsel %vm474, %v469, 0
      %v563 = vsel %vm474, %v470, 0
      %v566 = vsel %vm474, %v471, 0
      %v569 = vsel %vm474, %v472, 0
      %vm571 = vcmask 1043456
      %v573 = vsel %vm571, %v473, 0
      %575 = vmatpush.msra.mxu0 0.0
      %576 = vmatpush.msra.mxu0 0.0
      %577 = vmatpush.msra.mxu0 0.0
      %578 = vmatpush.msra.mxu0 0.0
      %579 = vmatpush.msra.mxu0 0.0
      %580 = vmatpush.msra.mxu0 0.0
      %581 = vmatpush.msra.mxu0 0.0
      %582 = vmatpush.msra.mxu0 0.0
      %583 = vmatpush.msra.mxu0 0.0
      %584 = vmatpush.msra.mxu0 0.0
      %585 = vmatpush.msra.mxu0 0.0
      %586 = vmatpush.msra.mxu0 0.0
      %587 = vmatpush.msra.mxu0 0.0
      %588 = vmatpush.msra.mxu0 0.0
      %589 = vmatpush.msra.mxu0 0.0
      %590 = vmatpush.msra.mxu0 %v573
      %591 = vmatmul.f32.gmra.mxu0 %v476
      %v592 = vpop.f32.mrf.mxu0
      %v593 = vadd.f32 0.0, %v592
      %594 = vmatmul.f32.gmra.mxu0 %v479
      %v595 = vpop.f32.mrf.mxu0
      %v596 = vadd.f32 0.0, %v595
      %597 = vmatmul.f32.gmra.mxu0 %v482
      %v598 = vpop.f32.mrf.mxu0
      %v599 = vadd.f32 0.0, %v598
      %600 = vmatmul.f32.gmra.mxu0 %v485
      %v601 = vpop.f32.mrf.mxu0
      %v602 = vadd.f32 0.0, %v601
      %603 = vmatmul.f32.gmra.mxu0 %v488
      %v604 = vpop.f32.mrf.mxu0
      %v605 = vadd.f32 0.0, %v604
      %606 = vmatmul.f32.gmra.mxu0 %v491
      %v607 = vpop.f32.mrf.mxu0
      %v608 = vadd.f32 0.0, %v607
      %609 = vmatmul.f32.gmra.mxu0 %v494
      %v610 = vpop.f32.mrf.mxu0
      %v611 = vadd.f32 0.0, %v610
      %612 = vmatmul.f32.gmra.mxu0 %v497
      %v613 = vpop.f32.mrf.mxu0
      %v614 = vadd.f32 0.0, %v613
      %615 = vmatmul.f32.gmra.mxu0 %v500
      %v616 = vpop.f32.mrf.mxu0
      %v617 = vadd.f32 0.0, %v616
      %618 = vmatmul.f32.gmra.mxu0 %v503
      %v619 = vpop.f32.mrf.mxu0
      %v620 = vadd.f32 0.0, %v619
      %621 = vmatmul.f32.gmra.mxu0 %v506
      %v622 = vpop.f32.mrf.mxu0
      %v623 = vadd.f32 0.0, %v622
      %624 = vmatmul.f32.gmra.mxu0 %v509
      %v625 = vpop.f32.mrf.mxu0
      %v626 = vadd.f32 0.0, %v625
      %627 = vmatmul.f32.gmra.mxu0 %v512
      %v628 = vpop.f32.mrf.mxu0
      %v629 = vadd.f32 0.0, %v628
      %630 = vmatmul.f32.gmra.mxu0 %v515
      %v631 = vpop.f32.mrf.mxu0
      %v632 = vadd.f32 0.0, %v631
      %633 = vmatmul.f32.gmra.mxu0 %v518
      %v634 = vpop.f32.mrf.mxu0
      %v635 = vadd.f32 0.0, %v634
      %636 = vmatmul.f32.gmra.mxu0 %v521
      %v637 = vpop.f32.mrf.mxu0
      %v638 = vadd.f32 0.0, %v637
      %639 = vmatmul.f32.gmra.mxu0 %v524
      %v640 = vpop.f32.mrf.mxu0
      %v641 = vadd.f32 0.0, %v640
      %642 = vmatmul.f32.gmra.mxu0 %v527
      %v643 = vpop.f32.mrf.mxu0
      %v644 = vadd.f32 0.0, %v643
      %645 = vmatmul.f32.gmra.mxu0 %v530
      %v646 = vpop.f32.mrf.mxu0
      %v647 = vadd.f32 0.0, %v646
      %648 = vmatmul.f32.gmra.mxu0 %v533
      %v649 = vpop.f32.mrf.mxu0
      %v650 = vadd.f32 0.0, %v649
      %651 = vmatmul.f32.gmra.mxu0 %v536
      %v652 = vpop.f32.mrf.mxu0
      %v653 = vadd.f32 0.0, %v652
      %654 = vmatmul.f32.gmra.mxu0 %v539
      %v655 = vpop.f32.mrf.mxu0
      %v656 = vadd.f32 0.0, %v655
      %657 = vmatmul.f32.gmra.mxu0 %v542
      %v658 = vpop.f32.mrf.mxu0
      %v659 = vadd.f32 0.0, %v658
      %660 = vmatmul.f32.gmra.mxu0 %v545
      %v661 = vpop.f32.mrf.mxu0
      %v662 = vadd.f32 0.0, %v661
      %663 = vmatmul.f32.gmra.mxu0 %v548
      %v664 = vpop.f32.mrf.mxu0
      %v665 = vadd.f32 0.0, %v664
      %666 = vmatmul.f32.gmra.mxu0 %v551
      %v667 = vpop.f32.mrf.mxu0
      %v668 = vadd.f32 0.0, %v667
      %669 = vmatmul.f32.gmra.mxu0 %v554
      %v670 = vpop.f32.mrf.mxu0
      %v671 = vadd.f32 0.0, %v670
      %672 = vmatmul.f32.gmra.mxu0 %v557
      %v673 = vpop.f32.mrf.mxu0
      %v674 = vadd.f32 0.0, %v673
      %675 = vmatmul.f32.gmra.mxu0 %v560
      %v676 = vpop.f32.mrf.mxu0
      %v677 = vadd.f32 0.0, %v676
      %678 = vmatmul.f32.gmra.mxu0 %v563
      %v679 = vpop.f32.mrf.mxu0
      %v680 = vadd.f32 0.0, %v679
      %681 = vmatmul.f32.gmra.mxu0 %v566
      %v682 = vpop.f32.mrf.mxu0
      %v683 = vadd.f32 0.0, %v682
      %684 = vmatmul.f32.gmra.mxu0 %v569
      %v685 = vpop.f32.mrf.mxu0
      %v686 = vadd.f32 0.0, %v685
      %687 = vdwg.mxu0
      %v688 = vld [vmem:[%s2] sm:$0x1]
      %v690 = vperm.slane %v688, 0
      %v692 = vmul.f32 %v593, %v690
      %v693 = vmul.f32 %v596, %v690
      %v694 = vmul.f32 %v599, %v690
      %v695 = vmul.f32 %v602, %v690
      %v696 = vmul.f32 %v605, %v690
      %v697 = vmul.f32 %v608, %v690
      %v698 = vmul.f32 %v611, %v690
      %v699 = vmul.f32 %v614, %v690
      %v700 = vmul.f32 %v617, %v690
      %v701 = vmul.f32 %v620, %v690
      %v702 = vmul.f32 %v623, %v690
      %v703 = vmul.f32 %v626, %v690
      %v704 = vmul.f32 %v629, %v690
      %v705 = vmul.f32 %v632, %v690
      %v706 = vmul.f32 %v635, %v690
      %v707 = vmul.f32 %v638, %v690
      %v708 = vmul.f32 %v641, %v690
      %v709 = vmul.f32 %v644, %v690
      %v710 = vmul.f32 %v647, %v690
      %v711 = vmul.f32 %v650, %v690
      %v712 = vmul.f32 %v653, %v690
      %v713 = vmul.f32 %v656, %v690
      %v714 = vmul.f32 %v659, %v690
      %v715 = vmul.f32 %v662, %v690
      %v716 = vmul.f32 %v665, %v690
      %v717 = vmul.f32 %v668, %v690
      %v718 = vmul.f32 %v671, %v690
      %v719 = vmul.f32 %v674, %v690
      %v720 = vmul.f32 %v677, %v690
      %v721 = vmul.f32 %v680, %v690
      %v722 = vmul.f32 %v683, %v690
      %v723 = vmul.f32 %v686, %v690
      %v724 = vld [vmem:[%s3] sm:$0x1]
      %v726 = vperm.slane %v724, 0
      %v728 = vadd.f32 %v692, %v726
      %v729 = vadd.f32 %v693, %v726
      %v730 = vadd.f32 %v694, %v726
      %v731 = vadd.f32 %v695, %v726
      %v732 = vadd.f32 %v696, %v726
      %v733 = vadd.f32 %v697, %v726
      %v734 = vadd.f32 %v698, %v726
      %v735 = vadd.f32 %v699, %v726
      %v736 = vadd.f32 %v700, %v726
      %v737 = vadd.f32 %v701, %v726
      %v738 = vadd.f32 %v702, %v726
      %v739 = vadd.f32 %v703, %v726
      %v740 = vadd.f32 %v704, %v726
      %v741 = vadd.f32 %v705, %v726
      %v742 = vadd.f32 %v706, %v726
      %v743 = vadd.f32 %v707, %v726
      %v744 = vadd.f32 %v708, %v726
      %v745 = vadd.f32 %v709, %v726
      %v746 = vadd.f32 %v710, %v726
      %v747 = vadd.f32 %v711, %v726
      %v748 = vadd.f32 %v712, %v726
      %v749 = vadd.f32 %v713, %v726
      %v750 = vadd.f32 %v714, %v726
      %v751 = vadd.f32 %v715, %v726
      %v752 = vadd.f32 %v716, %v726
      %v753 = vadd.f32 %v717, %v726
      %v754 = vadd.f32 %v718, %v726
      %v755 = vadd.f32 %v719, %v726
      %v756 = vadd.f32 %v720, %v726
      %v757 = vadd.f32 %v721, %v726
      %v758 = vadd.f32 %v722, %v726
      %v759 = vadd.f32 %v723, %v726
      %v760 = vmax.f32 %v728, 0.0
      %v761 = vmax.f32 %v729, 0.0
      %v762 = vmax.f32 %v730, 0.0
      %v763 = vmax.f32 %v731, 0.0
      %v764 = vmax.f32 %v732, 0.0
      %v765 = vmax.f32 %v733, 0.0
      %v766 = vmax.f32 %v734, 0.0
      %v767 = vmax.f32 %v735, 0.0
      %v768 = vmax.f32 %v736, 0.0
      %v769 = vmax.f32 %v737, 0.0
      %v770 = vmax.f32 %v738, 0.0
      %v771 = vmax.f32 %v739, 0.0
      %v772 = vmax.f32 %v740, 0.0
      %v773 = vmax.f32 %v741, 0.0
      %v774 = vmax.f32 %v742, 0.0
      %v775 = vmax.f32 %v743, 0.0
      %v776 = vmax.f32 %v744, 0.0
      %v777 = vmax.f32 %v745, 0.0
      %v778 = vmax.f32 %v746, 0.0
      %v779 = vmax.f32 %v747, 0.0
      %v780 = vmax.f32 %v748, 0.0
      %v781 = vmax.f32 %v749, 0.0
      %v782 = vmax.f32 %v750, 0.0
      %v783 = vmax.f32 %v751, 0.0
      %v784 = vmax.f32 %v752, 0.0
      %v785 = vmax.f32 %v753, 0.0
      %v786 = vmax.f32 %v754, 0.0
      %v787 = vmax.f32 %v755, 0.0
      %v788 = vmax.f32 %v756, 0.0
      %v789 = vmax.f32 %v757, 0.0
      %v790 = vmax.f32 %v758, 0.0
      %v791 = vmax.f32 %v759, 0.0
      %vm792 = vcmask 130048
      %793 = vst.msk [vmem:[#allocation2] sm:$0xff] %vm792, 0.0
      %794 = vst.msk [vmem:[#allocation2 + $0x8] sm:$0xff] %vm792, 0.0
      %795 = vst.msk [vmem:[#allocation2 + $0x10] sm:$0xff] %vm792, 0.0
      %796 = vst.msk [vmem:[#allocation2 + $0x118] sm:$0xff] %vm792, 0.0
      %797 = vst.msk [vmem:[#allocation2 + $0x120] sm:$0xff] %vm792, 0.0
      %798 = vst.msk [vmem:[#allocation2 + $0x128] sm:$0xff] %vm792, 0.0
      %799 = vst.msk [vmem:[#allocation2 + $0x18] sm:$0xff] %vm792, %v760
      %800 = vst.msk [vmem:[#allocation2 + $0x20] sm:$0xff] %vm792, %v761
      %801 = vst.msk [vmem:[#allocation2 + $0x28] sm:$0xff] %vm792, %v762
      %802 = vst.msk [vmem:[#allocation2 + $0x30] sm:$0xff] %vm792, %v763
      %803 = vst.msk [vmem:[#allocation2 + $0x38] sm:$0xff] %vm792, %v764
      %804 = vst.msk [vmem:[#allocation2 + $0x40] sm:$0xff] %vm792, %v765
      %805 = vst.msk [vmem:[#allocation2 + $0x48] sm:$0xff] %vm792, %v766
      %806 = vst.msk [vmem:[#allocation2 + $0x50] sm:$0xff] %vm792, %v767
      %807 = vst.msk [vmem:[#allocation2 + $0x58] sm:$0xff] %vm792, %v768
      %808 = vst.msk [vmem:[#allocation2 + $0x60] sm:$0xff] %vm792, %v769
      %809 = vst.msk [vmem:[#allocation2 + $0x68] sm:$0xff] %vm792, %v770
      %810 = vst.msk [vmem:[#allocation2 + $0x70] sm:$0xff] %vm792, %v771
      %811 = vst.msk [vmem:[#allocation2 + $0x78] sm:$0xff] %vm792, %v772
      %812 = vst.msk [vmem:[#allocation2 + $0x80] sm:$0xff] %vm792, %v773
      %813 = vst.msk [vmem:[#allocation2 + $0x88] sm:$0xff] %vm792, %v774
      %814 = vst.msk [vmem:[#allocation2 + $0x90] sm:$0xff] %vm792, %v775
      %815 = vst.msk [vmem:[#allocation2 + $0x98] sm:$0xff] %vm792, %v776
      %816 = vst.msk [vmem:[#allocation2 + $0xa0] sm:$0xff] %vm792, %v777
      %817 = vst.msk [vmem:[#allocation2 + $0xa8] sm:$0xff] %vm792, %v778
      %818 = vst.msk [vmem:[#allocation2 + $0xb0] sm:$0xff] %vm792, %v779
      %819 = vst.msk [vmem:[#allocation2 + $0xb8] sm:$0xff] %vm792, %v780
      %820 = vst.msk [vmem:[#allocation2 + $0xc0] sm:$0xff] %vm792, %v781
      %821 = vst.msk [vmem:[#allocation2 + $0xc8] sm:$0xff] %vm792, %v782
      %822 = vst.msk [vmem:[#allocation2 + $0xd0] sm:$0xff] %vm792, %v783
      %823 = vst.msk [vmem:[#allocation2 + $0xd8] sm:$0xff] %vm792, %v784
      %824 = vst.msk [vmem:[#allocation2 + $0xe0] sm:$0xff] %vm792, %v785
      %825 = vst.msk [vmem:[#allocation2 + $0xe8] sm:$0xff] %vm792, %v786
      %826 = vst.msk [vmem:[#allocation2 + $0xf0] sm:$0xff] %vm792, %v787
      %827 = vst.msk [vmem:[#allocation2 + $0xf8] sm:$0xff] %vm792, %v788
      %828 = vst.msk [vmem:[#allocation2 + $0x100] sm:$0xff] %vm792, %v789
      %829 = vst.msk [vmem:[#allocation2 + $0x108] sm:$0xff] %vm792, %v790
      %830 = vst.msk [vmem:[#allocation2 + $0x110] sm:$0xff] %vm792, %v791
      %v831 = vlaneseq
      %v832 = vshrl.u32 %v831, 7
      %v833 = vadd.s32 %v832, 8
      %v834 = vadd.s32 %v832, 16
      %v835 = vadd.s32 %v832, 24
      %v836 = vadd.s32 %v832, 32
      %v837 = vadd.s32 %v832, 40
      %v838 = vadd.s32 %v832, 48
      %v839 = vadd.s32 %v832, 56
      %v840 = vadd.s32 %v832, 64
      %v841 = vadd.s32 %v832, 72
      %v842 = vadd.s32 %v832, 80
      %v843 = vadd.s32 %v832, 88
      %v844 = vadd.s32 %v832, 96
      %v845 = vadd.s32 %v832, 104
      %v846 = vadd.s32 %v832, 112
      %v847 = vadd.s32 %v832, 120
      %v848 = vadd.s32 %v832, 128
      %v849 = vadd.s32 %v832, 136
      %v850 = vadd.s32 %v832, 144
      %v851 = vadd.s32 %v832, 152
      %v852 = vadd.s32 %v832, 160
      %v853 = vadd.s32 %v832, 168
      %v854 = vadd.s32 %v832, 176
      %v855 = vadd.s32 %v832, 184
      %v856 = vadd.s32 %v832, 192
      %v857 = vadd.s32 %v832, 200
      %v858 = vadd.s32 %v832, 208
      %v859 = vadd.s32 %v832, 216
      %v860 = vadd.s32 %v832, 224
      %v861 = vadd.s32 %v832, 232
      %v862 = vadd.s32 %v832, 240
      %v863 = vadd.s32 %v832, 248
      %vm864 = vcmp.lt.s32.totalorder %v832, 0
      %v865 = vsub.s32 0, %v832
      %v866 = vsel %vm864, %v865, %v832
      %v867 = vshrl.u32 %v866, 4
      %v868 = vand.u32 %v866, 15
      %v869 = vsub.s32 0, %v868
      %v870 = vsel %vm864, %v869, %v868
      %vm871 = vcmp.lt.s32.totalorder %v833, 0
      %v872 = vsub.s32 0, %v833
      %v873 = vsel %vm871, %v872, %v833
      %v874 = vshrl.u32 %v873, 4
      %v875 = vand.u32 %v873, 15
      %v876 = vsub.s32 0, %v875
      %v877 = vsel %vm871, %v876, %v875
      %vm878 = vcmp.lt.s32.totalorder %v834, 0
      %v879 = vsub.s32 0, %v834
      %v880 = vsel %vm878, %v879, %v834
      %v881 = vshrl.u32 %v880, 4
      %v882 = vand.u32 %v880, 15
      %v883 = vsub.s32 0, %v882
      %v884 = vsel %vm878, %v883, %v882
      %vm885 = vcmp.lt.s32.totalorder %v835, 0
      %v886 = vsub.s32 0, %v835
      %v887 = vsel %vm885, %v886, %v835
      %v888 = vshrl.u32 %v887, 4
      %v889 = vand.u32 %v887, 15
      %v890 = vsub.s32 0, %v889
      %v891 = vsel %vm885, %v890, %v889
      %vm892 = vcmp.lt.s32.totalorder %v836, 0
      %v893 = vsub.s32 0, %v836
      %v894 = vsel %vm892, %v893, %v836
      %v895 = vshrl.u32 %v894, 4
      %v896 = vand.u32 %v894, 15
      %v897 = vsub.s32 0, %v896
      %v898 = vsel %vm892, %v897, %v896
      %vm899 = vcmp.lt.s32.totalorder %v837, 0
      %v900 = vsub.s32 0, %v837
      %v901 = vsel %vm899, %v900, %v837
      %v902 = vshrl.u32 %v901, 4
      %v903 = vand.u32 %v901, 15
      %v904 = vsub.s32 0, %v903
      %v905 = vsel %vm899, %v904, %v903
      %vm906 = vcmp.lt.s32.totalorder %v838, 0
      %v907 = vsub.s32 0, %v838
      %v908 = vsel %vm906, %v907, %v838
      %v909 = vshrl.u32 %v908, 4
      %v910 = vand.u32 %v908, 15
      %v911 = vsub.s32 0, %v910
      %v912 = vsel %vm906, %v911, %v910
      %vm913 = vcmp.lt.s32.totalorder %v839, 0
      %v914 = vsub.s32 0, %v839
      %v915 = vsel %vm913, %v914, %v839
      %v916 = vshrl.u32 %v915, 4
      %v917 = vand.u32 %v915, 15
      %v918 = vsub.s32 0, %v917
      %v919 = vsel %vm913, %v918, %v917
      %vm920 = vcmp.lt.s32.totalorder %v840, 0
      %v921 = vsub.s32 0, %v840
      %v922 = vsel %vm920, %v921, %v840
      %v923 = vshrl.u32 %v922, 4
      %v924 = vand.u32 %v922, 15
      %v925 = vsub.s32 0, %v924
      %v926 = vsel %vm920, %v925, %v924
      %vm927 = vcmp.lt.s32.totalorder %v841, 0
      %v928 = vsub.s32 0, %v841
      %v929 = vsel %vm927, %v928, %v841
      %v930 = vshrl.u32 %v929, 4
      %v931 = vand.u32 %v929, 15
      %v932 = vsub.s32 0, %v931
      %v933 = vsel %vm927, %v932, %v931
      %vm934 = vcmp.lt.s32.totalorder %v842, 0
      %v935 = vsub.s32 0, %v842
      %v936 = vsel %vm934, %v935, %v842
      %v937 = vshrl.u32 %v936, 4
      %v938 = vand.u32 %v936, 15
      %v939 = vsub.s32 0, %v938
      %v940 = vsel %vm934, %v939, %v938
      %vm941 = vcmp.lt.s32.totalorder %v843, 0
      %v942 = vsub.s32 0, %v843
      %v943 = vsel %vm941, %v942, %v843
      %v944 = vshrl.u32 %v943, 4
      %v945 = vand.u32 %v943, 15
      %v946 = vsub.s32 0, %v945
      %v947 = vsel %vm941, %v946, %v945
      %vm948 = vcmp.lt.s32.totalorder %v844, 0
      %v949 = vsub.s32 0, %v844
      %v950 = vsel %vm948, %v949, %v844
      %v951 = vshrl.u32 %v950, 4
      %v952 = vand.u32 %v950, 15
      %v953 = vsub.s32 0, %v952
      %v954 = vsel %vm948, %v953, %v952
      %vm955 = vcmp.lt.s32.totalorder %v845, 0
      %v956 = vsub.s32 0, %v845
      %v957 = vsel %vm955, %v956, %v845
      %v958 = vshrl.u32 %v957, 4
      %v959 = vand.u32 %v957, 15
      %v960 = vsub.s32 0, %v959
      %v961 = vsel %vm955, %v960, %v959
      %vm962 = vcmp.lt.s32.totalorder %v846, 0
      %v963 = vsub.s32 0, %v846
      %v964 = vsel %vm962, %v963, %v846
      %v965 = vshrl.u32 %v964, 4
      %v966 = vand.u32 %v964, 15
      %v967 = vsub.s32 0, %v966
      %v968 = vsel %vm962, %v967, %v966
      %vm969 = vcmp.lt.s32.totalorder %v847, 0
      %v970 = vsub.s32 0, %v847
      %v971 = vsel %vm969, %v970, %v847
      %v972 = vshrl.u32 %v971, 4
      %v973 = vand.u32 %v971, 15
      %v974 = vsub.s32 0, %v973
      %v975 = vsel %vm969, %v974, %v973
      %vm976 = vcmp.lt.s32.totalorder %v848, 0
      %v977 = vsub.s32 0, %v848
      %v978 = vsel %vm976, %v977, %v848
      %v979 = vshrl.u32 %v978, 4
      %v980 = vand.u32 %v978, 15
      %v981 = vsub.s32 0, %v980
      %v982 = vsel %vm976, %v981, %v980
      %vm983 = vcmp.lt.s32.totalorder %v849, 0
      %v984 = vsub.s32 0, %v849
      %v985 = vsel %vm983, %v984, %v849
      %v986 = vshrl.u32 %v985, 4
      %v987 = vand.u32 %v985, 15
      %v988 = vsub.s32 0, %v987
      %v989 = vsel %vm983, %v988, %v987
      %vm990 = vcmp.lt.s32.totalorder %v850, 0
      %v991 = vsub.s32 0, %v850
      %v992 = vsel %vm990, %v991, %v850
      %v993 = vshrl.u32 %v992, 4
      %v994 = vand.u32 %v992, 15
      %v995 = vsub.s32 0, %v994
      %v996 = vsel %vm990, %v995, %v994
      %vm997 = vcmp.lt.s32.totalorder %v851, 0
      %v998 = vsub.s32 0, %v851
      %v999 = vsel %vm997, %v998, %v851
      %v1000 = vshrl.u32 %v999, 4
      %v1001 = vand.u32 %v999, 15
      %v1002 = vsub.s32 0, %v1001
      %v1003 = vsel %vm997, %v1002, %v1001
      %vm1004 = vcmp.lt.s32.totalorder %v852, 0
      %v1005 = vsub.s32 0, %v852
      %v1006 = vsel %vm1004, %v1005, %v852
      %v1007 = vshrl.u32 %v1006, 4
      %v1008 = vand.u32 %v1006, 15
      %v1009 = vsub.s32 0, %v1008
      %v1010 = vsel %vm1004, %v1009, %v1008
      %vm1011 = vcmp.lt.s32.totalorder %v853, 0
      %v1012 = vsub.s32 0, %v853
      %v1013 = vsel %vm1011, %v1012, %v853
      %v1014 = vshrl.u32 %v1013, 4
      %v1015 = vand.u32 %v1013, 15
      %v1016 = vsub.s32 0, %v1015
      %v1017 = vsel %vm1011, %v1016, %v1015
      %vm1018 = vcmp.lt.s32.totalorder %v854, 0
      %v1019 = vsub.s32 0, %v854
      %v1020 = vsel %vm1018, %v1019, %v854
      %v1021 = vshrl.u32 %v1020, 4
      %v1022 = vand.u32 %v1020, 15
      %v1023 = vsub.s32 0, %v1022
      %v1024 = vsel %vm1018, %v1023, %v1022
      %vm1025 = vcmp.lt.s32.totalorder %v855, 0
      %v1026 = vsub.s32 0, %v855
      %v1027 = vsel %vm1025, %v1026, %v855
      %v1028 = vshrl.u32 %v1027, 4
      %v1029 = vand.u32 %v1027, 15
      %v1030 = vsub.s32 0, %v1029
      %v1031 = vsel %vm1025, %v1030, %v1029
      %vm1032 = vcmp.lt.s32.totalorder %v856, 0
      %v1033 = vsub.s32 0, %v856
      %v1034 = vsel %vm1032, %v1033, %v856
      %v1035 = vshrl.u32 %v1034, 4
      %v1036 = vand.u32 %v1034, 15
      %v1037 = vsub.s32 0, %v1036
      %v1038 = vsel %vm1032, %v1037, %v1036
      %vm1039 = vcmp.lt.s32.totalorder %v857, 0
      %v1040 = vsub.s32 0, %v857
      %v1041 = vsel %vm1039, %v1040, %v857
      %v1042 = vshrl.u32 %v1041, 4
      %v1043 = vand.u32 %v1041, 15
      %v1044 = vsub.s32 0, %v1043
      %v1045 = vsel %vm1039, %v1044, %v1043
      %vm1046 = vcmp.lt.s32.totalorder %v858, 0
      %v1047 = vsub.s32 0, %v858
      %v1048 = vsel %vm1046, %v1047, %v858
      %v1049 = vshrl.u32 %v1048, 4
      %v1050 = vand.u32 %v1048, 15
      %v1051 = vsub.s32 0, %v1050
      %v1052 = vsel %vm1046, %v1051, %v1050
      %vm1053 = vcmp.lt.s32.totalorder %v859, 0
      %v1054 = vsub.s32 0, %v859
      %v1055 = vsel %vm1053, %v1054, %v859
      %v1056 = vshrl.u32 %v1055, 4
      %v1057 = vand.u32 %v1055, 15
      %v1058 = vsub.s32 0, %v1057
      %v1059 = vsel %vm1053, %v1058, %v1057
      %vm1060 = vcmp.lt.s32.totalorder %v860, 0
      %v1061 = vsub.s32 0, %v860
      %v1062 = vsel %vm1060, %v1061, %v860
      %v1063 = vshrl.u32 %v1062, 4
      %v1064 = vand.u32 %v1062, 15
      %v1065 = vsub.s32 0, %v1064
      %v1066 = vsel %vm1060, %v1065, %v1064
      %vm1067 = vcmp.lt.s32.totalorder %v861, 0
      %v1068 = vsub.s32 0, %v861
      %v1069 = vsel %vm1067, %v1068, %v861
      %v1070 = vshrl.u32 %v1069, 4
      %v1071 = vand.u32 %v1069, 15
      %v1072 = vsub.s32 0, %v1071
      %v1073 = vsel %vm1067, %v1072, %v1071
      %vm1074 = vcmp.lt.s32.totalorder %v862, 0
      %v1075 = vsub.s32 0, %v862
      %v1076 = vsel %vm1074, %v1075, %v862
      %v1077 = vshrl.u32 %v1076, 4
      %v1078 = vand.u32 %v1076, 15
      %v1079 = vsub.s32 0, %v1078
      %v1080 = vsel %vm1074, %v1079, %v1078
      %vm1081 = vcmp.lt.s32.totalorder %v863, 0
      %v1082 = vsub.s32 0, %v863
      %v1083 = vsel %vm1081, %v1082, %v863
      %v1084 = vshrl.u32 %v1083, 4
      %v1085 = vand.u32 %v1083, 15
      %v1086 = vsub.s32 0, %v1085
      %v1087 = vsel %vm1081, %v1086, %v1085
      %vm1088 = vcmp.ne.s32.totalorder %v870, 0
      %vm1089 = vcmp.ne.s32.totalorder %v877, 0
      %vm1090 = vcmp.ne.s32.totalorder %v884, 0
      %vm1091 = vcmp.ne.s32.totalorder %v891, 0
      %vm1092 = vcmp.ne.s32.totalorder %v898, 0
      %vm1093 = vcmp.ne.s32.totalorder %v905, 0
      %vm1094 = vcmp.ne.s32.totalorder %v912, 0
      %vm1095 = vcmp.ne.s32.totalorder %v919, 0
      %vm1096 = vcmp.ne.s32.totalorder %v926, 0
      %vm1097 = vcmp.ne.s32.totalorder %v933, 0
      %vm1098 = vcmp.ne.s32.totalorder %v940, 0
      %vm1099 = vcmp.ne.s32.totalorder %v947, 0
      %vm1100 = vcmp.ne.s32.totalorder %v954, 0
      %vm1101 = vcmp.ne.s32.totalorder %v961, 0
      %vm1102 = vcmp.ne.s32.totalorder %v968, 0
      %vm1103 = vcmp.ne.s32.totalorder %v975, 0
      %vm1104 = vcmp.ne.s32.totalorder %v982, 0
      %vm1105 = vcmp.ne.s32.totalorder %v989, 0
      %vm1106 = vcmp.ne.s32.totalorder %v996, 0
      %vm1107 = vcmp.ne.s32.totalorder %v1003, 0
      %vm1108 = vcmp.ne.s32.totalorder %v1010, 0
      %vm1109 = vcmp.ne.s32.totalorder %v1017, 0
      %vm1110 = vcmp.ne.s32.totalorder %v1024, 0
      %vm1111 = vcmp.ne.s32.totalorder %v1031, 0
      %vm1112 = vcmp.ne.s32.totalorder %v1038, 0
      %vm1113 = vcmp.ne.s32.totalorder %v1045, 0
      %vm1114 = vcmp.ne.s32.totalorder %v1052, 0
      %vm1115 = vcmp.ne.s32.totalorder %v1059, 0
      %vm1116 = vcmp.ne.s32.totalorder %v1066, 0
      %vm1117 = vcmp.ne.s32.totalorder %v1073, 0
      %vm1118 = vcmp.ne.s32.totalorder %v1080, 0
      %vm1119 = vcmp.ne.s32.totalorder %v1087, 0
      %vm1120 = vcmp.lt.s32.totalorder %v870, 0
      %vm1121 = vcmp.lt.s32.totalorder %v877, 0
      %vm1122 = vcmp.lt.s32.totalorder %v884, 0
      %vm1123 = vcmp.lt.s32.totalorder %v891, 0
      %vm1124 = vcmp.lt.s32.totalorder %v898, 0
      %vm1125 = vcmp.lt.s32.totalorder %v905, 0
      %vm1126 = vcmp.lt.s32.totalorder %v912, 0
      %vm1127 = vcmp.lt.s32.totalorder %v919, 0
      %vm1128 = vcmp.lt.s32.totalorder %v926, 0
      %vm1129 = vcmp.lt.s32.totalorder %v933, 0
      %vm1130 = vcmp.lt.s32.totalorder %v940, 0
      %vm1131 = vcmp.lt.s32.totalorder %v947, 0
      %vm1132 = vcmp.lt.s32.totalorder %v954, 0
      %vm1133 = vcmp.lt.s32.totalorder %v961, 0
      %vm1134 = vcmp.lt.s32.totalorder %v968, 0
      %vm1135 = vcmp.lt.s32.totalorder %v975, 0
      %vm1136 = vcmp.lt.s32.totalorder %v982, 0
      %vm1137 = vcmp.lt.s32.totalorder %v989, 0
      %vm1138 = vcmp.lt.s32.totalorder %v996, 0
      %vm1139 = vcmp.lt.s32.totalorder %v1003, 0
      %vm1140 = vcmp.lt.s32.totalorder %v1010, 0
      %vm1141 = vcmp.lt.s32.totalorder %v1017, 0
      %vm1142 = vcmp.lt.s32.totalorder %v1024, 0
      %vm1143 = vcmp.lt.s32.totalorder %v1031, 0
      %vm1144 = vcmp.lt.s32.totalorder %v1038, 0
      %vm1145 = vcmp.lt.s32.totalorder %v1045, 0
      %vm1146 = vcmp.lt.s32.totalorder %v1052, 0
      %vm1147 = vcmp.lt.s32.totalorder %v1059, 0
      %vm1148 = vcmp.lt.s32.totalorder %v1066, 0
      %vm1149 = vcmp.lt.s32.totalorder %v1073, 0
      %vm1150 = vcmp.lt.s32.totalorder %v1080, 0
      %vm1151 = vcmp.lt.s32.totalorder %v1087, 0
      %vm1152 = vmand %vm1120, %vm1088
      %vm1153 = vmand %vm1121, %vm1089
      %vm1154 = vmand %vm1122, %vm1090
      %vm1155 = vmand %vm1123, %vm1091
      %vm1156 = vmand %vm1124, %vm1092
      %vm1157 = vmand %vm1125, %vm1093
      %vm1158 = vmand %vm1126, %vm1094
      %vm1159 = vmand %vm1127, %vm1095
      %vm1160 = vmand %vm1128, %vm1096
      %vm1161 = vmand %vm1129, %vm1097
      %vm1162 = vmand %vm1130, %vm1098
      %vm1163 = vmand %vm1131, %vm1099
      %vm1164 = vmand %vm1132, %vm1100
      %vm1165 = vmand %vm1133, %vm1101
      %vm1166 = vmand %vm1134, %vm1102
      %vm1167 = vmand %vm1135, %vm1103
      %vm1168 = vmand %vm1136, %vm1104
      %vm1169 = vmand %vm1137, %vm1105
      %vm1170 = vmand %vm1138, %vm1106
      %vm1171 = vmand %vm1139, %vm1107
      %vm1172 = vmand %vm1140, %vm1108
      %vm1173 = vmand %vm1141, %vm1109
      %vm1174 = vmand %vm1142, %vm1110
      %vm1175 = vmand %vm1143, %vm1111
      %vm1176 = vmand %vm1144, %vm1112
      %vm1177 = vmand %vm1145, %vm1113
      %vm1178 = vmand %vm1146, %vm1114
      %vm1179 = vmand %vm1147, %vm1115
      %vm1180 = vmand %vm1148, %vm1116
      %vm1181 = vmand %vm1149, %vm1117
      %vm1182 = vmand %vm1150, %vm1118
      %vm1183 = vmand %vm1151, %vm1119
      %v1184 = vadd.s32 %v870, 16
      %v1185 = vadd.s32 %v877, 16
      %v1186 = vadd.s32 %v884, 16
      %v1187 = vadd.s32 %v891, 16
      %v1188 = vadd.s32 %v898, 16
      %v1189 = vadd.s32 %v905, 16
      %v1190 = vadd.s32 %v912, 16
      %v1191 = vadd.s32 %v919, 16
      %v1192 = vadd.s32 %v926, 16
      %v1193 = vadd.s32 %v933, 16
      %v1194 = vadd.s32 %v940, 16
      %v1195 = vadd.s32 %v947, 16
      %v1196 = vadd.s32 %v954, 16
      %v1197 = vadd.s32 %v961, 16
      %v1198 = vadd.s32 %v968, 16
      %v1199 = vadd.s32 %v975, 16
      %v1200 = vadd.s32 %v982, 16
      %v1201 = vadd.s32 %v989, 16
      %v1202 = vadd.s32 %v996, 16
      %v1203 = vadd.s32 %v1003, 16
      %v1204 = vadd.s32 %v1010, 16
      %v1205 = vadd.s32 %v1017, 16
      %v1206 = vadd.s32 %v1024, 16
      %v1207 = vadd.s32 %v1031, 16
      %v1208 = vadd.s32 %v1038, 16
      %v1209 = vadd.s32 %v1045, 16
      %v1210 = vadd.s32 %v1052, 16
      %v1211 = vadd.s32 %v1059, 16
      %v1212 = vadd.s32 %v1066, 16
      %v1213 = vadd.s32 %v1073, 16
      %v1214 = vadd.s32 %v1080, 16
      %v1215 = vadd.s32 %v1087, 16
      %v1216 = vsel %vm1152, %v1184, %v870
      %v1217 = vsel %vm1153, %v1185, %v877
      %v1218 = vsel %vm1154, %v1186, %v884
      %v1219 = vsel %vm1155, %v1187, %v891
      %v1220 = vsel %vm1156, %v1188, %v898
      %v1221 = vsel %vm1157, %v1189, %v905
      %v1222 = vsel %vm1158, %v1190, %v912
      %v1223 = vsel %vm1159, %v1191, %v919
      %v1224 = vsel %vm1160, %v1192, %v926
      %v1225 = vsel %vm1161, %v1193, %v933
      %v1226 = vsel %vm1162, %v1194, %v940
      %v1227 = vsel %vm1163, %v1195, %v947
      %v1228 = vsel %vm1164, %v1196, %v954
      %v1229 = vsel %vm1165, %v1197, %v961
      %v1230 = vsel %vm1166, %v1198, %v968
      %v1231 = vsel %vm1167, %v1199, %v975
      %v1232 = vsel %vm1168, %v1200, %v982
      %v1233 = vsel %vm1169, %v1201, %v989
      %v1234 = vsel %vm1170, %v1202, %v996
      %v1235 = vsel %vm1171, %v1203, %v1003
      %v1236 = vsel %vm1172, %v1204, %v1010
      %v1237 = vsel %vm1173, %v1205, %v1017
      %v1238 = vsel %vm1174, %v1206, %v1024
      %v1239 = vsel %vm1175, %v1207, %v1031
      %v1240 = vsel %vm1176, %v1208, %v1038
      %v1241 = vsel %vm1177, %v1209, %v1045
      %v1242 = vsel %vm1178, %v1210, %v1052
      %v1243 = vsel %vm1179, %v1211, %v1059
      %v1244 = vsel %vm1180, %v1212, %v1066
      %v1245 = vsel %vm1181, %v1213, %v1073
      %v1246 = vsel %vm1182, %v1214, %v1080
      %v1247 = vsel %vm1183, %v1215, %v1087
      %vm1248 = vcmp.ne.s32.totalorder %v1216, 0
      %vm1249 = vcmp.ne.s32.totalorder %v1217, 0
      %vm1250 = vcmp.ne.s32.totalorder %v1218, 0
      %vm1251 = vcmp.ne.s32.totalorder %v1219, 0
      %vm1252 = vcmp.ne.s32.totalorder %v1220, 0
      %vm1253 = vcmp.ne.s32.totalorder %v1221, 0
      %vm1254 = vcmp.ne.s32.totalorder %v1222, 0
      %vm1255 = vcmp.ne.s32.totalorder %v1223, 0
      %vm1256 = vcmp.ne.s32.totalorder %v1224, 0
      %vm1257 = vcmp.ne.s32.totalorder %v1225, 0
      %vm1258 = vcmp.ne.s32.totalorder %v1226, 0
      %vm1259 = vcmp.ne.s32.totalorder %v1227, 0
      %vm1260 = vcmp.ne.s32.totalorder %v1228, 0
      %vm1261 = vcmp.ne.s32.totalorder %v1229, 0
      %vm1262 = vcmp.ne.s32.totalorder %v1230, 0
      %vm1263 = vcmp.ne.s32.totalorder %v1231, 0
      %vm1264 = vcmp.ne.s32.totalorder %v1232, 0
      %vm1265 = vcmp.ne.s32.totalorder %v1233, 0
      %vm1266 = vcmp.ne.s32.totalorder %v1234, 0
      %vm1267 = vcmp.ne.s32.totalorder %v1235, 0
      %vm1268 = vcmp.ne.s32.totalorder %v1236, 0
      %vm1269 = vcmp.ne.s32.totalorder %v1237, 0
      %vm1270 = vcmp.ne.s32.totalorder %v1238, 0
      %vm1271 = vcmp.ne.s32.totalorder %v1239, 0
      %vm1272 = vcmp.ne.s32.totalorder %v1240, 0
      %vm1273 = vcmp.ne.s32.totalorder %v1241, 0
      %vm1274 = vcmp.ne.s32.totalorder %v1242, 0
      %vm1275 = vcmp.ne.s32.totalorder %v1243, 0
      %vm1276 = vcmp.ne.s32.totalorder %v1244, 0
      %vm1277 = vcmp.ne.s32.totalorder %v1245, 0
      %vm1278 = vcmp.ne.s32.totalorder %v1246, 0
      %vm1279 = vcmp.ne.s32.totalorder %v1247, 0
      %vm1280 = vcmp.ne.s32.totalorder %v1216, 15
      %vm1281 = vcmp.ne.s32.totalorder %v1217, 15
      %vm1282 = vcmp.ne.s32.totalorder %v1218, 15
      %vm1283 = vcmp.ne.s32.totalorder %v1219, 15
      %vm1284 = vcmp.ne.s32.totalorder %v1220, 15
      %vm1285 = vcmp.ne.s32.totalorder %v1221, 15
      %vm1286 = vcmp.ne.s32.totalorder %v1222, 15
      %vm1287 = vcmp.ne.s32.totalorder %v1223, 15
      %vm1288 = vcmp.ne.s32.totalorder %v1224, 15
      %vm1289 = vcmp.ne.s32.totalorder %v1225, 15
      %vm1290 = vcmp.ne.s32.totalorder %v1226, 15
      %vm1291 = vcmp.ne.s32.totalorder %v1227, 15
      %vm1292 = vcmp.ne.s32.totalorder %v1228, 15
      %vm1293 = vcmp.ne.s32.totalorder %v1229, 15
      %vm1294 = vcmp.ne.s32.totalorder %v1230, 15
      %vm1295 = vcmp.ne.s32.totalorder %v1231, 15
      %vm1296 = vcmp.ne.s32.totalorder %v1232, 15
      %vm1297 = vcmp.ne.s32.totalorder %v1233, 15
      %vm1298 = vcmp.ne.s32.totalorder %v1234, 15
      %vm1299 = vcmp.ne.s32.totalorder %v1235, 15
      %vm1300 = vcmp.ne.s32.totalorder %v1236, 15
      %vm1301 = vcmp.ne.s32.totalorder %v1237, 15
      %vm1302 = vcmp.ne.s32.totalorder %v1238, 15
      %vm1303 = vcmp.ne.s32.totalorder %v1239, 15
      %vm1304 = vcmp.ne.s32.totalorder %v1240, 15
      %vm1305 = vcmp.ne.s32.totalorder %v1241, 15
      %vm1306 = vcmp.ne.s32.totalorder %v1242, 15
      %vm1307 = vcmp.ne.s32.totalorder %v1243, 15
      %vm1308 = vcmp.ne.s32.totalorder %v1244, 15
      %vm1309 = vcmp.ne.s32.totalorder %v1245, 15
      %vm1310 = vcmp.ne.s32.totalorder %v1246, 15
      %vm1311 = vcmp.ne.s32.totalorder %v1247, 15
      %v1312 = vld [vmem:[%s4] sm:$0xff]
      %v1313 = vld [vmem:[%s4 + $0x8] sm:$0x1]
      %v1314 = vld [vmem:[%s5] sm:$0x1]
      %v1316 = vperm.slane %v1314, 0
      %v1318 = vmul.f32 %v1312, %v1316
      %v1319 = vmul.f32 %v1313, %v1316
      %v1320 = vld [vmem:[#allocation2 + $0x7] sm:$0xff]
      %v1321 = vld [vmem:[#allocation2 + $0xf] sm:$0xff]
      %v1322 = vld [vmem:[#allocation2 + $0x17] sm:$0xff]
      %v1323 = vld [vmem:[#allocation2 + $0x1f] sm:$0xff]
      %v1324 = vld [vmem:[#allocation2 + $0x27] sm:$0xff]
      %v1325 = vld [vmem:[#allocation2 + $0x2f] sm:$0xff]
      %v1326 = vld [vmem:[#allocation2 + $0x37] sm:$0xff]
      %v1327 = vld [vmem:[#allocation2 + $0x3f] sm:$0xff]
      %v1328 = vld [vmem:[#allocation2 + $0x47] sm:$0xff]
      %v1329 = vld [vmem:[#allocation2 + $0x4f] sm:$0xff]
      %v1330 = vld [vmem:[#allocation2 + $0x57] sm:$0xff]
      %v1331 = vld [vmem:[#allocation2 + $0x5f] sm:$0xff]
      %v1332 = vld [vmem:[#allocation2 + $0x67] sm:$0xff]
      %v1333 = vld [vmem:[#allocation2 + $0x6f] sm:$0xff]
      %v1334 = vld [vmem:[#allocation2 + $0x77] sm:$0xff]
      %v1335 = vld [vmem:[#allocation2 + $0x7f] sm:$0xff]
      %v1336 = vld [vmem:[#allocation2 + $0x87] sm:$0xff]
      %v1337 = vld [vmem:[#allocation2 + $0x8f] sm:$0xff]
      %v1338 = vld [vmem:[#allocation2 + $0x97] sm:$0xff]
      %v1339 = vld [vmem:[#allocation2 + $0x9f] sm:$0xff]
      %v1340 = vld [vmem:[#allocation2 + $0xa7] sm:$0xff]
      %v1341 = vld [vmem:[#allocation2 + $0xaf] sm:$0xff]
      %v1342 = vld [vmem:[#allocation2 + $0xb7] sm:$0xff]
      %v1343 = vld [vmem:[#allocation2 + $0xbf] sm:$0xff]
      %v1344 = vld [vmem:[#allocation2 + $0xc7] sm:$0xff]
      %v1345 = vld [vmem:[#allocation2 + $0xcf] sm:$0xff]
      %v1346 = vld [vmem:[#allocation2 + $0xd7] sm:$0xff]
      %v1347 = vld [vmem:[#allocation2 + $0xdf] sm:$0xff]
      %v1348 = vld [vmem:[#allocation2 + $0xe7] sm:$0xff]
      %v1349 = vld [vmem:[#allocation2 + $0xef] sm:$0xff]
      %v1350 = vld [vmem:[#allocation2 + $0xf7] sm:$0xff]
      %v1351 = vld [vmem:[#allocation2 + $0xff] sm:$0xff]
      %v1352 = vperm.slane %v1318, 0
      %v1353 = vmul.f32 %v1320, %v1352
      %v1354 = vmul.f32 %v1321, %v1352
      %v1355 = vmul.f32 %v1322, %v1352
      %v1356 = vmul.f32 %v1323, %v1352
      %v1357 = vmul.f32 %v1324, %v1352
      %v1358 = vmul.f32 %v1325, %v1352
      %v1359 = vmul.f32 %v1326, %v1352
      %v1360 = vmul.f32 %v1327, %v1352
      %v1361 = vmul.f32 %v1328, %v1352
      %v1362 = vmul.f32 %v1329, %v1352
      %v1363 = vmul.f32 %v1330, %v1352
      %v1364 = vmul.f32 %v1331, %v1352
      %v1365 = vmul.f32 %v1332, %v1352
      %v1366 = vmul.f32 %v1333, %v1352
      %v1367 = vmul.f32 %v1334, %v1352
      %v1368 = vmul.f32 %v1335, %v1352
      %v1369 = vmul.f32 %v1336, %v1352
      %v1370 = vmul.f32 %v1337, %v1352
      %v1371 = vmul.f32 %v1338, %v1352
      %v1372 = vmul.f32 %v1339, %v1352
      %v1373 = vmul.f32 %v1340, %v1352
      %v1374 = vmul.f32 %v1341, %v1352
      %v1375 = vmul.f32 %v1342, %v1352
      %v1376 = vmul.f32 %v1343, %v1352
      %v1377 = vmul.f32 %v1344, %v1352
      %v1378 = vmul.f32 %v1345, %v1352
      %v1379 = vmul.f32 %v1346, %v1352
      %v1380 = vmul.f32 %v1347, %v1352
      %v1381 = vmul.f32 %v1348, %v1352
      %v1382 = vmul.f32 %v1349, %v1352
      %v1383 = vmul.f32 %v1350, %v1352
      %v1384 = vmul.f32 %v1351, %v1352
      %v1385 = vsel %vm1248, %v1353, 0.0
      %v1386 = vsel %vm1249, %v1354, 0.0
      %v1387 = vsel %vm1250, %v1355, 0.0
      %v1388 = vsel %vm1251, %v1356, 0.0
      %v1389 = vsel %vm1252, %v1357, 0.0
      %v1390 = vsel %vm1253, %v1358, 0.0
      %v1391 = vsel %vm1254, %v1359, 0.0
      %v1392 = vsel %vm1255, %v1360, 0.0
      %v1393 = vsel %vm1256, %v1361, 0.0
      %v1394 = vsel %vm1257, %v1362, 0.0
      %v1395 = vsel %vm1258, %v1363, 0.0
      %v1396 = vsel %vm1259, %v1364, 0.0
      %v1397 = vsel %vm1260, %v1365, 0.0
      %v1398 = vsel %vm1261, %v1366, 0.0
      %v1399 = vsel %vm1262, %v1367, 0.0
      %v1400 = vsel %vm1263, %v1368, 0.0
      %v1401 = vsel %vm1264, %v1369, 0.0
      %v1402 = vsel %vm1265, %v1370, 0.0
      %v1403 = vsel %vm1266, %v1371, 0.0
      %v1404 = vsel %vm1267, %v1372, 0.0
      %v1405 = vsel %vm1268, %v1373, 0.0
      %v1406 = vsel %vm1269, %v1374, 0.0
      %v1407 = vsel %vm1270, %v1375, 0.0
      %v1408 = vsel %vm1271, %v1376, 0.0
      %v1409 = vsel %vm1272, %v1377, 0.0
      %v1410 = vsel %vm1273, %v1378, 0.0
      %v1411 = vsel %vm1274, %v1379, 0.0
      %v1412 = vsel %vm1275, %v1380, 0.0
      %v1413 = vsel %vm1276, %v1381, 0.0
      %v1414 = vsel %vm1277, %v1382, 0.0
      %v1415 = vsel %vm1278, %v1383, 0.0
      %v1416 = vsel %vm1279, %v1384, 0.0
      %v1417 = vld [vmem:[#allocation2 + $0x8] sm:$0xff]
      %v1418 = vld [vmem:[#allocation2 + $0x10] sm:$0xff]
      %v1419 = vld [vmem:[#allocation2 + $0x18] sm:$0xff]
      %v1420 = vld [vmem:[#allocation2 + $0x20] sm:$0xff]
      %v1421 = vld [vmem:[#allocation2 + $0x28] sm:$0xff]
      %v1422 = vld [vmem:[#allocation2 + $0x30] sm:$0xff]
      %v1423 = vld [vmem:[#allocation2 + $0x38] sm:$0xff]
      %v1424 = vld [vmem:[#allocation2 + $0x40] sm:$0xff]
      %v1425 = vld [vmem:[#allocation2 + $0x48] sm:$0xff]
      %v1426 = vld [vmem:[#allocation2 + $0x50] sm:$0xff]
      %v1427 = vld [vmem:[#allocation2 + $0x58] sm:$0xff]
      %v1428 = vld [vmem:[#allocation2 + $0x60] sm:$0xff]
      %v1429 = vld [vmem:[#allocation2 + $0x68] sm:$0xff]
      %v1430 = vld [vmem:[#allocation2 + $0x70] sm:$0xff]
      %v1431 = vld [vmem:[#allocation2 + $0x78] sm:$0xff]
      %v1432 = vld [vmem:[#allocation2 + $0x80] sm:$0xff]
      %v1433 = vld [vmem:[#allocation2 + $0x88] sm:$0xff]
      %v1434 = vld [vmem:[#allocation2 + $0x90] sm:$0xff]
      %v1435 = vld [vmem:[#allocation2 + $0x98] sm:$0xff]
      %v1436 = vld [vmem:[#allocation2 + $0xa0] sm:$0xff]
      %v1437 = vld [vmem:[#allocation2 + $0xa8] sm:$0xff]
      %v1438 = vld [vmem:[#allocation2 + $0xb0] sm:$0xff]
      %v1439 = vld [vmem:[#allocation2 + $0xb8] sm:$0xff]
      %v1440 = vld [vmem:[#allocation2 + $0xc0] sm:$0xff]
      %v1441 = vld [vmem:[#allocation2 + $0xc8] sm:$0xff]
      %v1442 = vld [vmem:[#allocation2 + $0xd0] sm:$0xff]
      %v1443 = vld [vmem:[#allocation2 + $0xd8] sm:$0xff]
      %v1444 = vld [vmem:[#allocation2 + $0xe0] sm:$0xff]
      %v1445 = vld [vmem:[#allocation2 + $0xe8] sm:$0xff]
      %v1446 = vld [vmem:[#allocation2 + $0xf0] sm:$0xff]
      %v1447 = vld [vmem:[#allocation2 + $0xf8] sm:$0xff]
      %v1448 = vld [vmem:[#allocation2 + $0x100] sm:$0xff]
      %v1449 = vperm.slane %v1318, 1
      %v1450 = vmul.f32 %v1417, %v1449
      %v1451 = vmul.f32 %v1418, %v1449
      %v1452 = vmul.f32 %v1419, %v1449
      %v1453 = vmul.f32 %v1420, %v1449
      %v1454 = vmul.f32 %v1421, %v1449
      %v1455 = vmul.f32 %v1422, %v1449
      %v1456 = vmul.f32 %v1423, %v1449
      %v1457 = vmul.f32 %v1424, %v1449
      %v1458 = vmul.f32 %v1425, %v1449
      %v1459 = vmul.f32 %v1426, %v1449
      %v1460 = vmul.f32 %v1427, %v1449
      %v1461 = vmul.f32 %v1428, %v1449
      %v1462 = vmul.f32 %v1429, %v1449
      %v1463 = vmul.f32 %v1430, %v1449
      %v1464 = vmul.f32 %v1431, %v1449
      %v1465 = vmul.f32 %v1432, %v1449
      %v1466 = vmul.f32 %v1433, %v1449
      %v1467 = vmul.f32 %v1434, %v1449
      %v1468 = vmul.f32 %v1435, %v1449
      %v1469 = vmul.f32 %v1436, %v1449
      %v1470 = vmul.f32 %v1437, %v1449
      %v1471 = vmul.f32 %v1438, %v1449
      %v1472 = vmul.f32 %v1439, %v1449
      %v1473 = vmul.f32 %v1440, %v1449
      %v1474 = vmul.f32 %v1441, %v1449
      %v1475 = vmul.f32 %v1442, %v1449
      %v1476 = vmul.f32 %v1443, %v1449
      %v1477 = vmul.f32 %v1444, %v1449
      %v1478 = vmul.f32 %v1445, %v1449
      %v1479 = vmul.f32 %v1446, %v1449
      %v1480 = vmul.f32 %v1447, %v1449
      %v1481 = vmul.f32 %v1448, %v1449
      %v1482 = vadd.f32 %v1385, %v1450
      %v1483 = vadd.f32 %v1386, %v1451
      %v1484 = vadd.f32 %v1387, %v1452
      %v1485 = vadd.f32 %v1388, %v1453
      %v1486 = vadd.f32 %v1389, %v1454
      %v1487 = vadd.f32 %v1390, %v1455
      %v1488 = vadd.f32 %v1391, %v1456
      %v1489 = vadd.f32 %v1392, %v1457
      %v1490 = vadd.f32 %v1393, %v1458
      %v1491 = vadd.f32 %v1394, %v1459
      %v1492 = vadd.f32 %v1395, %v1460
      %v1493 = vadd.f32 %v1396, %v1461
      %v1494 = vadd.f32 %v1397, %v1462
      %v1495 = vadd.f32 %v1398, %v1463
      %v1496 = vadd.f32 %v1399, %v1464
      %v1497 = vadd.f32 %v1400, %v1465
      %v1498 = vadd.f32 %v1401, %v1466
      %v1499 = vadd.f32 %v1402, %v1467
      %v1500 = vadd.f32 %v1403, %v1468
      %v1501 = vadd.f32 %v1404, %v1469
      %v1502 = vadd.f32 %v1405, %v1470
      %v1503 = vadd.f32 %v1406, %v1471
      %v1504 = vadd.f32 %v1407, %v1472
      %v1505 = vadd.f32 %v1408, %v1473
      %v1506 = vadd.f32 %v1409, %v1474
      %v1507 = vadd.f32 %v1410, %v1475
      %v1508 = vadd.f32 %v1411, %v1476
      %v1509 = vadd.f32 %v1412, %v1477
      %v1510 = vadd.f32 %v1413, %v1478
      %v1511 = vadd.f32 %v1414, %v1479
      %v1512 = vadd.f32 %v1415, %v1480
      %v1513 = vadd.f32 %v1416, %v1481
      %v1514 = vld [vmem:[#allocation2 + $0x9] sm:$0xff]
      %v1515 = vld [vmem:[#allocation2 + $0x11] sm:$0xff]
      %v1516 = vld [vmem:[#allocation2 + $0x19] sm:$0xff]
      %v1517 = vld [vmem:[#allocation2 + $0x21] sm:$0xff]
      %v1518 = vld [vmem:[#allocation2 + $0x29] sm:$0xff]
      %v1519 = vld [vmem:[#allocation2 + $0x31] sm:$0xff]
      %v1520 = vld [vmem:[#allocation2 + $0x39] sm:$0xff]
      %v1521 = vld [vmem:[#allocation2 + $0x41] sm:$0xff]
      %v1522 = vld [vmem:[#allocation2 + $0x49] sm:$0xff]
      %v1523 = vld [vmem:[#allocation2 + $0x51] sm:$0xff]
      %v1524 = vld [vmem:[#allocation2 + $0x59] sm:$0xff]
      %v1525 = vld [vmem:[#allocation2 + $0x61] sm:$0xff]
      %v1526 = vld [vmem:[#allocation2 + $0x69] sm:$0xff]
      %v1527 = vld [vmem:[#allocation2 + $0x71] sm:$0xff]
      %v1528 = vld [vmem:[#allocation2 + $0x79] sm:$0xff]
      %v1529 = vld [vmem:[#allocation2 + $0x81] sm:$0xff]
      %v1530 = vld [vmem:[#allocation2 + $0x89] sm:$0xff]
      %v1531 = vld [vmem:[#allocation2 + $0x91] sm:$0xff]
      %v1532 = vld [vmem:[#allocation2 + $0x99] sm:$0xff]
      %v1533 = vld [vmem:[#allocation2 + $0xa1] sm:$0xff]
      %v1534 = vld [vmem:[#allocation2 + $0xa9] sm:$0xff]
      %v1535 = vld [vmem:[#allocation2 + $0xb1] sm:$0xff]
      %v1536 = vld [vmem:[#allocation2 + $0xb9] sm:$0xff]
      %v1537 = vld [vmem:[#allocation2 + $0xc1] sm:$0xff]
      %v1538 = vld [vmem:[#allocation2 + $0xc9] sm:$0xff]
      %v1539 = vld [vmem:[#allocation2 + $0xd1] sm:$0xff]
      %v1540 = vld [vmem:[#allocation2 + $0xd9] sm:$0xff]
      %v1541 = vld [vmem:[#allocation2 + $0xe1] sm:$0xff]
      %v1542 = vld [vmem:[#allocation2 + $0xe9] sm:$0xff]
      %v1543 = vld [vmem:[#allocation2 + $0xf1] sm:$0xff]
      %v1544 = vld [vmem:[#allocation2 + $0xf9] sm:$0xff]
      %v1545 = vld [vmem:[#allocation2 + $0x101] sm:$0xff]
      %v1546 = vperm.slane %v1318, 2
      %v1547 = vmul.f32 %v1514, %v1546
      %v1548 = vmul.f32 %v1515, %v1546
      %v1549 = vmul.f32 %v1516, %v1546
      %v1550 = vmul.f32 %v1517, %v1546
      %v1551 = vmul.f32 %v1518, %v1546
      %v1552 = vmul.f32 %v1519, %v1546
      %v1553 = vmul.f32 %v1520, %v1546
      %v1554 = vmul.f32 %v1521, %v1546
      %v1555 = vmul.f32 %v1522, %v1546
      %v1556 = vmul.f32 %v1523, %v1546
      %v1557 = vmul.f32 %v1524, %v1546
      %v1558 = vmul.f32 %v1525, %v1546
      %v1559 = vmul.f32 %v1526, %v1546
      %v1560 = vmul.f32 %v1527, %v1546
      %v1561 = vmul.f32 %v1528, %v1546
      %v1562 = vmul.f32 %v1529, %v1546
      %v1563 = vmul.f32 %v1530, %v1546
      %v1564 = vmul.f32 %v1531, %v1546
      %v1565 = vmul.f32 %v1532, %v1546
      %v1566 = vmul.f32 %v1533, %v1546
      %v1567 = vmul.f32 %v1534, %v1546
      %v1568 = vmul.f32 %v1535, %v1546
      %v1569 = vmul.f32 %v1536, %v1546
      %v1570 = vmul.f32 %v1537, %v1546
      %v1571 = vmul.f32 %v1538, %v1546
      %v1572 = vmul.f32 %v1539, %v1546
      %v1573 = vmul.f32 %v1540, %v1546
      %v1574 = vmul.f32 %v1541, %v1546
      %v1575 = vmul.f32 %v1542, %v1546
      %v1576 = vmul.f32 %v1543, %v1546
      %v1577 = vmul.f32 %v1544, %v1546
      %v1578 = vmul.f32 %v1545, %v1546
      %v1579 = vsel %vm1280, %v1547, 0.0
      %v1580 = vsel %vm1281, %v1548, 0.0
      %v1581 = vsel %vm1282, %v1549, 0.0
      %v1582 = vsel %vm1283, %v1550, 0.0
      %v1583 = vsel %vm1284, %v1551, 0.0
      %v1584 = vsel %vm1285, %v1552, 0.0
      %v1585 = vsel %vm1286, %v1553, 0.0
      %v1586 = vsel %vm1287, %v1554, 0.0
      %v1587 = vsel %vm1288, %v1555, 0.0
      %v1588 = vsel %vm1289, %v1556, 0.0
      %v1589 = vsel %vm1290, %v1557, 0.0
      %v1590 = vsel %vm1291, %v1558, 0.0
      %v1591 = vsel %vm1292, %v1559, 0.0
      %v1592 = vsel %vm1293, %v1560, 0.0
      %v1593 = vsel %vm1294, %v1561, 0.0
      %v1594 = vsel %vm1295, %v1562, 0.0
      %v1595 = vsel %vm1296, %v1563, 0.0
      %v1596 = vsel %vm1297, %v1564, 0.0
      %v1597 = vsel %vm1298, %v1565, 0.0
      %v1598 = vsel %vm1299, %v1566, 0.0
      %v1599 = vsel %vm1300, %v1567, 0.0
      %v1600 = vsel %vm1301, %v1568, 0.0
      %v1601 = vsel %vm1302, %v1569, 0.0
      %v1602 = vsel %vm1303, %v1570, 0.0
      %v1603 = vsel %vm1304, %v1571, 0.0
      %v1604 = vsel %vm1305, %v1572, 0.0
      %v1605 = vsel %vm1306, %v1573, 0.0
      %v1606 = vsel %vm1307, %v1574, 0.0
      %v1607 = vsel %vm1308, %v1575, 0.0
      %v1608 = vsel %vm1309, %v1576, 0.0
      %v1609 = vsel %vm1310, %v1577, 0.0
      %v1610 = vsel %vm1311, %v1578, 0.0
      %v1611 = vadd.f32 %v1482, %v1579
      %v1612 = vadd.f32 %v1483, %v1580
      %v1613 = vadd.f32 %v1484, %v1581
      %v1614 = vadd.f32 %v1485, %v1582
      %v1615 = vadd.f32 %v1486, %v1583
      %v1616 = vadd.f32 %v1487, %v1584
      %v1617 = vadd.f32 %v1488, %v1585
      %v1618 = vadd.f32 %v1489, %v1586
      %v1619 = vadd.f32 %v1490, %v1587
      %v1620 = vadd.f32 %v1491, %v1588
      %v1621 = vadd.f32 %v1492, %v1589
      %v1622 = vadd.f32 %v1493, %v1590
      %v1623 = vadd.f32 %v1494, %v1591
      %v1624 = vadd.f32 %v1495, %v1592
      %v1625 = vadd.f32 %v1496, %v1593
      %v1626 = vadd.f32 %v1497, %v1594
      %v1627 = vadd.f32 %v1498, %v1595
      %v1628 = vadd.f32 %v1499, %v1596
      %v1629 = vadd.f32 %v1500, %v1597
      %v1630 = vadd.f32 %v1501, %v1598
      %v1631 = vadd.f32 %v1502, %v1599
      %v1632 = vadd.f32 %v1503, %v1600
      %v1633 = vadd.f32 %v1504, %v1601
      %v1634 = vadd.f32 %v1505, %v1602
      %v1635 = vadd.f32 %v1506, %v1603
      %v1636 = vadd.f32 %v1507, %v1604
      %v1637 = vadd.f32 %v1508, %v1605
      %v1638 = vadd.f32 %v1509, %v1606
      %v1639 = vadd.f32 %v1510, %v1607
      %v1640 = vadd.f32 %v1511, %v1608
      %v1641 = vadd.f32 %v1512, %v1609
      %v1642 = vadd.f32 %v1513, %v1610
      %v1643 = vld [vmem:[#allocation2 + $0x107] sm:$0xff]
      %v1644 = vld [vmem:[#allocation2 + $0x10f] sm:$0xff]
      %v1645 = vperm.slane %v1318, 3
      %v1646 = vmul.f32 %v1322, %v1645
      %v1647 = vmul.f32 %v1323, %v1645
      %v1648 = vmul.f32 %v1324, %v1645
      %v1649 = vmul.f32 %v1325, %v1645
      %v1650 = vmul.f32 %v1326, %v1645
      %v1651 = vmul.f32 %v1327, %v1645
      %v1652 = vmul.f32 %v1328, %v1645
      %v1653 = vmul.f32 %v1329, %v1645
      %v1654 = vmul.f32 %v1330, %v1645
      %v1655 = vmul.f32 %v1331, %v1645
      %v1656 = vmul.f32 %v1332, %v1645
      %v1657 = vmul.f32 %v1333, %v1645
      %v1658 = vmul.f32 %v1334, %v1645
      %v1659 = vmul.f32 %v1335, %v1645
      %v1660 = vmul.f32 %v1336, %v1645
      %v1661 = vmul.f32 %v1337, %v1645
      %v1662 = vmul.f32 %v1338, %v1645
      %v1663 = vmul.f32 %v1339, %v1645
      %v1664 = vmul.f32 %v1340, %v1645
      %v1665 = vmul.f32 %v1341, %v1645
      %v1666 = vmul.f32 %v1342, %v1645
      %v1667 = vmul.f32 %v1343, %v1645
      %v1668 = vmul.f32 %v1344, %v1645
      %v1669 = vmul.f32 %v1345, %v1645
      %v1670 = vmul.f32 %v1346, %v1645
      %v1671 = vmul.f32 %v1347, %v1645
      %v1672 = vmul.f32 %v1348, %v1645
      %v1673 = vmul.f32 %v1349, %v1645
      %v1674 = vmul.f32 %v1350, %v1645
      %v1675 = vmul.f32 %v1351, %v1645
      %v1676 = vmul.f32 %v1643, %v1645
      %v1677 = vmul.f32 %v1644, %v1645
      %v1678 = vsel %vm1248, %v1646, 0.0
      %v1679 = vsel %vm1249, %v1647, 0.0
      %v1680 = vsel %vm1250, %v1648, 0.0
      %v1681 = vsel %vm1251, %v1649, 0.0
      %v1682 = vsel %vm1252, %v1650, 0.0
      %v1683 = vsel %vm1253, %v1651, 0.0
      %v1684 = vsel %vm1254, %v1652, 0.0
      %v1685 = vsel %vm1255, %v1653, 0.0
      %v1686 = vsel %vm1256, %v1654, 0.0
      %v1687 = vsel %vm1257, %v1655, 0.0
      %v1688 = vsel %vm1258, %v1656, 0.0
      %v1689 = vsel %vm1259, %v1657, 0.0
      %v1690 = vsel %vm1260, %v1658, 0.0
      %v1691 = vsel %vm1261, %v1659, 0.0
      %v1692 = vsel %vm1262, %v1660, 0.0
      %v1693 = vsel %vm1263, %v1661, 0.0
      %v1694 = vsel %vm1264, %v1662, 0.0
      %v1695 = vsel %vm1265, %v1663, 0.0
      %v1696 = vsel %vm1266, %v1664, 0.0
      %v1697 = vsel %vm1267, %v1665, 0.0
      %v1698 = vsel %vm1268, %v1666, 0.0
      %v1699 = vsel %vm1269, %v1667, 0.0
      %v1700 = vsel %vm1270, %v1668, 0.0
      %v1701 = vsel %vm1271, %v1669, 0.0
      %v1702 = vsel %vm1272, %v1670, 0.0
      %v1703 = vsel %vm1273, %v1671, 0.0
      %v1704 = vsel %vm1274, %v1672, 0.0
      %v1705 = vsel %vm1275, %v1673, 0.0
      %v1706 = vsel %vm1276, %v1674, 0.0
      %v1707 = vsel %vm1277, %v1675, 0.0
      %v1708 = vsel %vm1278, %v1676, 0.0
      %v1709 = vsel %vm1279, %v1677, 0.0
      %v1710 = vadd.f32 %v1611, %v1678
      %v1711 = vadd.f32 %v1612, %v1679
      %v1712 = vadd.f32 %v1613, %v1680
      %v1713 = vadd.f32 %v1614, %v1681
      %v1714 = vadd.f32 %v1615, %v1682
      %v1715 = vadd.f32 %v1616, %v1683
      %v1716 = vadd.f32 %v1617, %v1684
      %v1717 = vadd.f32 %v1618, %v1685
      %v1718 = vadd.f32 %v1619, %v1686
      %v1719 = vadd.f32 %v1620, %v1687
      %v1720 = vadd.f32 %v1621, %v1688
      %v1721 = vadd.f32 %v1622, %v1689
      %v1722 = vadd.f32 %v1623, %v1690
      %v1723 = vadd.f32 %v1624, %v1691
      %v1724 = vadd.f32 %v1625, %v1692
      %v1725 = vadd.f32 %v1626, %v1693
      %v1726 = vadd.f32 %v1627, %v1694
      %v1727 = vadd.f32 %v1628, %v1695
      %v1728 = vadd.f32 %v1629, %v1696
      %v1729 = vadd.f32 %v1630, %v1697
      %v1730 = vadd.f32 %v1631, %v1698
      %v1731 = vadd.f32 %v1632, %v1699
      %v1732 = vadd.f32 %v1633, %v1700
      %v1733 = vadd.f32 %v1634, %v1701
      %v1734 = vadd.f32 %v1635, %v1702
      %v1735 = vadd.f32 %v1636, %v1703
      %v1736 = vadd.f32 %v1637, %v1704
      %v1737 = vadd.f32 %v1638, %v1705
      %v1738 = vadd.f32 %v1639, %v1706
      %v1739 = vadd.f32 %v1640, %v1707
      %v1740 = vadd.f32 %v1641, %v1708
      %v1741 = vadd.f32 %v1642, %v1709
      %v1742 = vld [vmem:[#allocation2 + $0x108] sm:$0xff]
      %v1743 = vld [vmem:[#allocation2 + $0x110] sm:$0xff]
      %v1744 = vperm.slane %v1318, 4
      %v1745 = vmul.f32 %v1419, %v1744
      %v1746 = vmul.f32 %v1420, %v1744
      %v1747 = vmul.f32 %v1421, %v1744
      %v1748 = vmul.f32 %v1422, %v1744
      %v1749 = vmul.f32 %v1423, %v1744
      %v1750 = vmul.f32 %v1424, %v1744
      %v1751 = vmul.f32 %v1425, %v1744
      %v1752 = vmul.f32 %v1426, %v1744
      %v1753 = vmul.f32 %v1427, %v1744
      %v1754 = vmul.f32 %v1428, %v1744
      %v1755 = vmul.f32 %v1429, %v1744
      %v1756 = vmul.f32 %v1430, %v1744
      %v1757 = vmul.f32 %v1431, %v1744
      %v1758 = vmul.f32 %v1432, %v1744
      %v1759 = vmul.f32 %v1433, %v1744
      %v1760 = vmul.f32 %v1434, %v1744
      %v1761 = vmul.f32 %v1435, %v1744
      %v1762 = vmul.f32 %v1436, %v1744
      %v1763 = vmul.f32 %v1437, %v1744
      %v1764 = vmul.f32 %v1438, %v1744
      %v1765 = vmul.f32 %v1439, %v1744
      %v1766 = vmul.f32 %v1440, %v1744
      %v1767 = vmul.f32 %v1441, %v1744
      %v1768 = vmul.f32 %v1442, %v1744
      %v1769 = vmul.f32 %v1443, %v1744
      %v1770 = vmul.f32 %v1444, %v1744
      %v1771 = vmul.f32 %v1445, %v1744
      %v1772 = vmul.f32 %v1446, %v1744
      %v1773 = vmul.f32 %v1447, %v1744
      %v1774 = vmul.f32 %v1448, %v1744
      %v1775 = vmul.f32 %v1742, %v1744
      %v1776 = vmul.f32 %v1743, %v1744
      %v1777 = vadd.f32 %v1710, %v1745
      %v1778 = vadd.f32 %v1711, %v1746
      %v1779 = vadd.f32 %v1712, %v1747
      %v1780 = vadd.f32 %v1713, %v1748
      %v1781 = vadd.f32 %v1714, %v1749
      %v1782 = vadd.f32 %v1715, %v1750
      %v1783 = vadd.f32 %v1716, %v1751
      %v1784 = vadd.f32 %v1717, %v1752
      %v1785 = vadd.f32 %v1718, %v1753
      %v1786 = vadd.f32 %v1719, %v1754
      %v1787 = vadd.f32 %v1720, %v1755
      %v1788 = vadd.f32 %v1721, %v1756
      %v1789 = vadd.f32 %v1722, %v1757
      %v1790 = vadd.f32 %v1723, %v1758
      %v1791 = vadd.f32 %v1724, %v1759
      %v1792 = vadd.f32 %v1725, %v1760
      %v1793 = vadd.f32 %v1726, %v1761
      %v1794 = vadd.f32 %v1727, %v1762
      %v1795 = vadd.f32 %v1728, %v1763
      %v1796 = vadd.f32 %v1729, %v1764
      %v1797 = vadd.f32 %v1730, %v1765
      %v1798 = vadd.f32 %v1731, %v1766
      %v1799 = vadd.f32 %v1732, %v1767
      %v1800 = vadd.f32 %v1733, %v1768
      %v1801 = vadd.f32 %v1734, %v1769
      %v1802 = vadd.f32 %v1735, %v1770
      %v1803 = vadd.f32 %v1736, %v1771
      %v1804 = vadd.f32 %v1737, %v1772
      %v1805 = vadd.f32 %v1738, %v1773
      %v1806 = vadd.f32 %v1739, %v1774
      %v1807 = vadd.f32 %v1740, %v1775
      %v1808 = vadd.f32 %v1741, %v1776
      %v1809 = vld [vmem:[#allocation2 + $0x109] sm:$0xff]
      %v1810 = vld [vmem:[#allocation2 + $0x111] sm:$0xff]
      %v1811 = vperm.slane %v1318, 5
      %v1812 = vmul.f32 %v1516, %v1811
      %v1813 = vmul.f32 %v1517, %v1811
      %v1814 = vmul.f32 %v1518, %v1811
      %v1815 = vmul.f32 %v1519, %v1811
      %v1816 = vmul.f32 %v1520, %v1811
      %v1817 = vmul.f32 %v1521, %v1811
      %v1818 = vmul.f32 %v1522, %v1811
      %v1819 = vmul.f32 %v1523, %v1811
      %v1820 = vmul.f32 %v1524, %v1811
      %v1821 = vmul.f32 %v1525, %v1811
      %v1822 = vmul.f32 %v1526, %v1811
      %v1823 = vmul.f32 %v1527, %v1811
      %v1824 = vmul.f32 %v1528, %v1811
      %v1825 = vmul.f32 %v1529, %v1811
      %v1826 = vmul.f32 %v1530, %v1811
      %v1827 = vmul.f32 %v1531, %v1811
      %v1828 = vmul.f32 %v1532, %v1811
      %v1829 = vmul.f32 %v1533, %v1811
      %v1830 = vmul.f32 %v1534, %v1811
      %v1831 = vmul.f32 %v1535, %v1811
      %v1832 = vmul.f32 %v1536, %v1811
      %v1833 = vmul.f32 %v1537, %v1811
      %v1834 = vmul.f32 %v1538, %v1811
      %v1835 = vmul.f32 %v1539, %v1811
      %v1836 = vmul.f32 %v1540, %v1811
      %v1837 = vmul.f32 %v1541, %v1811
      %v1838 = vmul.f32 %v1542, %v1811
      %v1839 = vmul.f32 %v1543, %v1811
      %v1840 = vmul.f32 %v1544, %v1811
      %v1841 = vmul.f32 %v1545, %v1811
      %v1842 = vmul.f32 %v1809, %v1811
      %v1843 = vmul.f32 %v1810, %v1811
      %v1844 = vsel %vm1280, %v1812, 0.0
      %v1845 = vsel %vm1281, %v1813, 0.0
      %v1846 = vsel %vm1282, %v1814, 0.0
      %v1847 = vsel %vm1283, %v1815, 0.0
      %v1848 = vsel %vm1284, %v1816, 0.0
      %v1849 = vsel %vm1285, %v1817, 0.0
      %v1850 = vsel %vm1286, %v1818, 0.0
      %v1851 = vsel %vm1287, %v1819, 0.0
      %v1852 = vsel %vm1288, %v1820, 0.0
      %v1853 = vsel %vm1289, %v1821, 0.0
      %v1854 = vsel %vm1290, %v1822, 0.0
      %v1855 = vsel %vm1291, %v1823, 0.0
      %v1856 = vsel %vm1292, %v1824, 0.0
      %v1857 = vsel %vm1293, %v1825, 0.0
      %v1858 = vsel %vm1294, %v1826, 0.0
      %v1859 = vsel %vm1295, %v1827, 0.0
      %v1860 = vsel %vm1296, %v1828, 0.0
      %v1861 = vsel %vm1297, %v1829, 0.0
      %v1862 = vsel %vm1298, %v1830, 0.0
      %v1863 = vsel %vm1299, %v1831, 0.0
      %v1864 = vsel %vm1300, %v1832, 0.0
      %v1865 = vsel %vm1301, %v1833, 0.0
      %v1866 = vsel %vm1302, %v1834, 0.0
      %v1867 = vsel %vm1303, %v1835, 0.0
      %v1868 = vsel %vm1304, %v1836, 0.0
      %v1869 = vsel %vm1305, %v1837, 0.0
      %v1870 = vsel %vm1306, %v1838, 0.0
      %v1871 = vsel %vm1307, %v1839, 0.0
      %v1872 = vsel %vm1308, %v1840, 0.0
      %v1873 = vsel %vm1309, %v1841, 0.0
      %v1874 = vsel %vm1310, %v1842, 0.0
      %v1875 = vsel %vm1311, %v1843, 0.0
      %v1876 = vadd.f32 %v1777, %v1844
      %v1877 = vadd.f32 %v1778, %v1845
      %v1878 = vadd.f32 %v1779, %v1846
      %v1879 = vadd.f32 %v1780, %v1847
      %v1880 = vadd.f32 %v1781, %v1848
      %v1881 = vadd.f32 %v1782, %v1849
      %v1882 = vadd.f32 %v1783, %v1850
      %v1883 = vadd.f32 %v1784, %v1851
      %v1884 = vadd.f32 %v1785, %v1852
      %v1885 = vadd.f32 %v1786, %v1853
      %v1886 = vadd.f32 %v1787, %v1854
      %v1887 = vadd.f32 %v1788, %v1855
      %v1888 = vadd.f32 %v1789, %v1856
      %v1889 = vadd.f32 %v1790, %v1857
      %v1890 = vadd.f32 %v1791, %v1858
      %v1891 = vadd.f32 %v1792, %v1859
      %v1892 = vadd.f32 %v1793, %v1860
      %v1893 = vadd.f32 %v1794, %v1861
      %v1894 = vadd.f32 %v1795, %v1862
      %v1895 = vadd.f32 %v1796, %v1863
      %v1896 = vadd.f32 %v1797, %v1864
      %v1897 = vadd.f32 %v1798, %v1865
      %v1898 = vadd.f32 %v1799, %v1866
      %v1899 = vadd.f32 %v1800, %v1867
      %v1900 = vadd.f32 %v1801, %v1868
      %v1901 = vadd.f32 %v1802, %v1869
      %v1902 = vadd.f32 %v1803, %v1870
      %v1903 = vadd.f32 %v1804, %v1871
      %v1904 = vadd.f32 %v1805, %v1872
      %v1905 = vadd.f32 %v1806, %v1873
      %v1906 = vadd.f32 %v1807, %v1874
      %v1907 = vadd.f32 %v1808, %v1875
      %v1908 = vld [vmem:[#allocation2 + $0x117] sm:$0xff]
      %v1909 = vld [vmem:[#allocation2 + $0x11f] sm:$0xff]
      %v1910 = vperm.slane %v1318, 6
      %v1911 = vmul.f32 %v1324, %v1910
      %v1912 = vmul.f32 %v1325, %v1910
      %v1913 = vmul.f32 %v1326, %v1910
      %v1914 = vmul.f32 %v1327, %v1910
      %v1915 = vmul.f32 %v1328, %v1910
      %v1916 = vmul.f32 %v1329, %v1910
      %v1917 = vmul.f32 %v1330, %v1910
      %v1918 = vmul.f32 %v1331, %v1910
      %v1919 = vmul.f32 %v1332, %v1910
      %v1920 = vmul.f32 %v1333, %v1910
      %v1921 = vmul.f32 %v1334, %v1910
      %v1922 = vmul.f32 %v1335, %v1910
      %v1923 = vmul.f32 %v1336, %v1910
      %v1924 = vmul.f32 %v1337, %v1910
      %v1925 = vmul.f32 %v1338, %v1910
      %v1926 = vmul.f32 %v1339, %v1910
      %v1927 = vmul.f32 %v1340, %v1910
      %v1928 = vmul.f32 %v1341, %v1910
      %v1929 = vmul.f32 %v1342, %v1910
      %v1930 = vmul.f32 %v1343, %v1910
      %v1931 = vmul.f32 %v1344, %v1910
      %v1932 = vmul.f32 %v1345, %v1910
      %v1933 = vmul.f32 %v1346, %v1910
      %v1934 = vmul.f32 %v1347, %v1910
      %v1935 = vmul.f32 %v1348, %v1910
      %v1936 = vmul.f32 %v1349, %v1910
      %v1937 = vmul.f32 %v1350, %v1910
      %v1938 = vmul.f32 %v1351, %v1910
      %v1939 = vmul.f32 %v1643, %v1910
      %v1940 = vmul.f32 %v1644, %v1910
      %v1941 = vmul.f32 %v1908, %v1910
      %v1942 = vmul.f32 %v1909, %v1910
      %v1943 = vsel %vm1248, %v1911, 0.0
      %v1944 = vsel %vm1249, %v1912, 0.0
      %v1945 = vsel %vm1250, %v1913, 0.0
      %v1946 = vsel %vm1251, %v1914, 0.0
      %v1947 = vsel %vm1252, %v1915, 0.0
      %v1948 = vsel %vm1253, %v1916, 0.0
      %v1949 = vsel %vm1254, %v1917, 0.0
      %v1950 = vsel %vm1255, %v1918, 0.0
      %v1951 = vsel %vm1256, %v1919, 0.0
      %v1952 = vsel %vm1257, %v1920, 0.0
      %v1953 = vsel %vm1258, %v1921, 0.0
      %v1954 = vsel %vm1259, %v1922, 0.0
      %v1955 = vsel %vm1260, %v1923, 0.0
      %v1956 = vsel %vm1261, %v1924, 0.0
      %v1957 = vsel %vm1262, %v1925, 0.0
      %v1958 = vsel %vm1263, %v1926, 0.0
      %v1959 = vsel %vm1264, %v1927, 0.0
      %v1960 = vsel %vm1265, %v1928, 0.0
      %v1961 = vsel %vm1266, %v1929, 0.0
      %v1962 = vsel %vm1267, %v1930, 0.0
      %v1963 = vsel %vm1268, %v1931, 0.0
      %v1964 = vsel %vm1269, %v1932, 0.0
      %v1965 = vsel %vm1270, %v1933, 0.0
      %v1966 = vsel %vm1271, %v1934, 0.0
      %v1967 = vsel %vm1272, %v1935, 0.0
      %v1968 = vsel %vm1273, %v1936, 0.0
      %v1969 = vsel %vm1274, %v1937, 0.0
      %v1970 = vsel %vm1275, %v1938, 0.0
      %v1971 = vsel %vm1276, %v1939, 0.0
      %v1972 = vsel %vm1277, %v1940, 0.0
      %v1973 = vsel %vm1278, %v1941, 0.0
      %v1974 = vsel %vm1279, %v1942, 0.0
      %v1975 = vadd.f32 %v1876, %v1943
      %v1976 = vadd.f32 %v1877, %v1944
      %v1977 = vadd.f32 %v1878, %v1945
      %v1978 = vadd.f32 %v1879, %v1946
      %v1979 = vadd.f32 %v1880, %v1947
      %v1980 = vadd.f32 %v1881, %v1948
      %v1981 = vadd.f32 %v1882, %v1949
      %v1982 = vadd.f32 %v1883, %v1950
      %v1983 = vadd.f32 %v1884, %v1951
      %v1984 = vadd.f32 %v1885, %v1952
      %v1985 = vadd.f32 %v1886, %v1953
      %v1986 = vadd.f32 %v1887, %v1954
      %v1987 = vadd.f32 %v1888, %v1955
      %v1988 = vadd.f32 %v1889, %v1956
      %v1989 = vadd.f32 %v1890, %v1957
      %v1990 = vadd.f32 %v1891, %v1958
      %v1991 = vadd.f32 %v1892, %v1959
      %v1992 = vadd.f32 %v1893, %v1960
      %v1993 = vadd.f32 %v1894, %v1961
      %v1994 = vadd.f32 %v1895, %v1962
      %v1995 = vadd.f32 %v1896, %v1963
      %v1996 = vadd.f32 %v1897, %v1964
      %v1997 = vadd.f32 %v1898, %v1965
      %v1998 = vadd.f32 %v1899, %v1966
      %v1999 = vadd.f32 %v1900, %v1967
      %v2000 = vadd.f32 %v1901, %v1968
      %v2001 = vadd.f32 %v1902, %v1969
      %v2002 = vadd.f32 %v1903, %v1970
      %v2003 = vadd.f32 %v1904, %v1971
      %v2004 = vadd.f32 %v1905, %v1972
      %v2005 = vadd.f32 %v1906, %v1973
      %v2006 = vadd.f32 %v1907, %v1974
      %v2007 = vld [vmem:[#allocation2 + $0x118] sm:$0xff]
      %v2008 = vld [vmem:[#allocation2 + $0x120] sm:$0xff]
      %v2009 = vperm.slane %v1318, 7
      %v2010 = vmul.f32 %v1421, %v2009
      %v2011 = vmul.f32 %v1422, %v2009
      %v2012 = vmul.f32 %v1423, %v2009
      %v2013 = vmul.f32 %v1424, %v2009
      %v2014 = vmul.f32 %v1425, %v2009
      %v2015 = vmul.f32 %v1426, %v2009
      %v2016 = vmul.f32 %v1427, %v2009
      %v2017 = vmul.f32 %v1428, %v2009
      %v2018 = vmul.f32 %v1429, %v2009
      %v2019 = vmul.f32 %v1430, %v2009
      %v2020 = vmul.f32 %v1431, %v2009
      %v2021 = vmul.f32 %v1432, %v2009
      %v2022 = vmul.f32 %v1433, %v2009
      %v2023 = vmul.f32 %v1434, %v2009
      %v2024 = vmul.f32 %v1435, %v2009
      %v2025 = vmul.f32 %v1436, %v2009
      %v2026 = vmul.f32 %v1437, %v2009
      %v2027 = vmul.f32 %v1438, %v2009
      %v2028 = vmul.f32 %v1439, %v2009
      %v2029 = vmul.f32 %v1440, %v2009
      %v2030 = vmul.f32 %v1441, %v2009
      %v2031 = vmul.f32 %v1442, %v2009
      %v2032 = vmul.f32 %v1443, %v2009
      %v2033 = vmul.f32 %v1444, %v2009
      %v2034 = vmul.f32 %v1445, %v2009
      %v2035 = vmul.f32 %v1446, %v2009
      %v2036 = vmul.f32 %v1447, %v2009
      %v2037 = vmul.f32 %v1448, %v2009
      %v2038 = vmul.f32 %v1742, %v2009
      %v2039 = vmul.f32 %v1743, %v2009
      %v2040 = vmul.f32 %v2007, %v2009
      %v2041 = vmul.f32 %v2008, %v2009
      %v2042 = vadd.f32 %v1975, %v2010
      %v2043 = vadd.f32 %v1976, %v2011
      %v2044 = vadd.f32 %v1977, %v2012
      %v2045 = vadd.f32 %v1978, %v2013
      %v2046 = vadd.f32 %v1979, %v2014
      %v2047 = vadd.f32 %v1980, %v2015
      %v2048 = vadd.f32 %v1981, %v2016
      %v2049 = vadd.f32 %v1982, %v2017
      %v2050 = vadd.f32 %v1983, %v2018
      %v2051 = vadd.f32 %v1984, %v2019
      %v2052 = vadd.f32 %v1985, %v2020
      %v2053 = vadd.f32 %v1986, %v2021
      %v2054 = vadd.f32 %v1987, %v2022
      %v2055 = vadd.f32 %v1988, %v2023
      %v2056 = vadd.f32 %v1989, %v2024
      %v2057 = vadd.f32 %v1990, %v2025
      %v2058 = vadd.f32 %v1991, %v2026
      %v2059 = vadd.f32 %v1992, %v2027
      %v2060 = vadd.f32 %v1993, %v2028
      %v2061 = vadd.f32 %v1994, %v2029
      %v2062 = vadd.f32 %v1995, %v2030
      %v2063 = vadd.f32 %v1996, %v2031
      %v2064 = vadd.f32 %v1997, %v2032
      %v2065 = vadd.f32 %v1998, %v2033
      %v2066 = vadd.f32 %v1999, %v2034
      %v2067 = vadd.f32 %v2000, %v2035
      %v2068 = vadd.f32 %v2001, %v2036
      %v2069 = vadd.f32 %v2002, %v2037
      %v2070 = vadd.f32 %v2003, %v2038
      %v2071 = vadd.f32 %v2004, %v2039
      %v2072 = vadd.f32 %v2005, %v2040
      %v2073 = vadd.f32 %v2006, %v2041
      %v2074 = vld [vmem:[#allocation2 + $0x119] sm:$0xff]
      %v2075 = vld [vmem:[#allocation2 + $0x121] sm:$0xff]
      %v2076 = vperm.slane %v1319, 0
      %v2077 = vmul.f32 %v1518, %v2076
      %v2078 = vmul.f32 %v1519, %v2076
      %v2079 = vmul.f32 %v1520, %v2076
      %v2080 = vmul.f32 %v1521, %v2076
      %v2081 = vmul.f32 %v1522, %v2076
      %v2082 = vmul.f32 %v1523, %v2076
      %v2083 = vmul.f32 %v1524, %v2076
      %v2084 = vmul.f32 %v1525, %v2076
      %v2085 = vmul.f32 %v1526, %v2076
      %v2086 = vmul.f32 %v1527, %v2076
      %v2087 = vmul.f32 %v1528, %v2076
      %v2088 = vmul.f32 %v1529, %v2076
      %v2089 = vmul.f32 %v1530, %v2076
      %v2090 = vmul.f32 %v1531, %v2076
      %v2091 = vmul.f32 %v1532, %v2076
      %v2092 = vmul.f32 %v1533, %v2076
      %v2093 = vmul.f32 %v1534, %v2076
      %v2094 = vmul.f32 %v1535, %v2076
      %v2095 = vmul.f32 %v1536, %v2076
      %v2096 = vmul.f32 %v1537, %v2076
      %v2097 = vmul.f32 %v1538, %v2076
      %v2098 = vmul.f32 %v1539, %v2076
      %v2099 = vmul.f32 %v1540, %v2076
      %v2100 = vmul.f32 %v1541, %v2076
      %v2101 = vmul.f32 %v1542, %v2076
      %v2102 = vmul.f32 %v1543, %v2076
      %v2103 = vmul.f32 %v1544, %v2076
      %v2104 = vmul.f32 %v1545, %v2076
      %v2105 = vmul.f32 %v1809, %v2076
      %v2106 = vmul.f32 %v1810, %v2076
      %v2107 = vmul.f32 %v2074, %v2076
      %v2108 = vmul.f32 %v2075, %v2076
      %v2109 = vsel %vm1280, %v2077, 0.0
      %v2110 = vsel %vm1281, %v2078, 0.0
      %v2111 = vsel %vm1282, %v2079, 0.0
      %v2112 = vsel %vm1283, %v2080, 0.0
      %v2113 = vsel %vm1284, %v2081, 0.0
      %v2114 = vsel %vm1285, %v2082, 0.0
      %v2115 = vsel %vm1286, %v2083, 0.0
      %v2116 = vsel %vm1287, %v2084, 0.0
      %v2117 = vsel %vm1288, %v2085, 0.0
      %v2118 = vsel %vm1289, %v2086, 0.0
      %v2119 = vsel %vm1290, %v2087, 0.0
      %v2120 = vsel %vm1291, %v2088, 0.0
      %v2121 = vsel %vm1292, %v2089, 0.0
      %v2122 = vsel %vm1293, %v2090, 0.0
      %v2123 = vsel %vm1294, %v2091, 0.0
      %v2124 = vsel %vm1295, %v2092, 0.0
      %v2125 = vsel %vm1296, %v2093, 0.0
      %v2126 = vsel %vm1297, %v2094, 0.0
      %v2127 = vsel %vm1298, %v2095, 0.0
      %v2128 = vsel %vm1299, %v2096, 0.0
      %v2129 = vsel %vm1300, %v2097, 0.0
      %v2130 = vsel %vm1301, %v2098, 0.0
      %v2131 = vsel %vm1302, %v2099, 0.0
      %v2132 = vsel %vm1303, %v2100, 0.0
      %v2133 = vsel %vm1304, %v2101, 0.0
      %v2134 = vsel %vm1305, %v2102, 0.0
      %v2135 = vsel %vm1306, %v2103, 0.0
      %v2136 = vsel %vm1307, %v2104, 0.0
      %v2137 = vsel %vm1308, %v2105, 0.0
      %v2138 = vsel %vm1309, %v2106, 0.0
      %v2139 = vsel %vm1310, %v2107, 0.0
      %v2140 = vsel %vm1311, %v2108, 0.0
      %v2141 = vadd.f32 %v2042, %v2109
      %v2142 = vadd.f32 %v2043, %v2110
      %v2143 = vadd.f32 %v2044, %v2111
      %v2144 = vadd.f32 %v2045, %v2112
      %v2145 = vadd.f32 %v2046, %v2113
      %v2146 = vadd.f32 %v2047, %v2114
      %v2147 = vadd.f32 %v2048, %v2115
      %v2148 = vadd.f32 %v2049, %v2116
      %v2149 = vadd.f32 %v2050, %v2117
      %v2150 = vadd.f32 %v2051, %v2118
      %v2151 = vadd.f32 %v2052, %v2119
      %v2152 = vadd.f32 %v2053, %v2120
      %v2153 = vadd.f32 %v2054, %v2121
      %v2154 = vadd.f32 %v2055, %v2122
      %v2155 = vadd.f32 %v2056, %v2123
      %v2156 = vadd.f32 %v2057, %v2124
      %v2157 = vadd.f32 %v2058, %v2125
      %v2158 = vadd.f32 %v2059, %v2126
      %v2159 = vadd.f32 %v2060, %v2127
      %v2160 = vadd.f32 %v2061, %v2128
      %v2161 = vadd.f32 %v2062, %v2129
      %v2162 = vadd.f32 %v2063, %v2130
      %v2163 = vadd.f32 %v2064, %v2131
      %v2164 = vadd.f32 %v2065, %v2132
      %v2165 = vadd.f32 %v2066, %v2133
      %v2166 = vadd.f32 %v2067, %v2134
      %v2167 = vadd.f32 %v2068, %v2135
      %v2168 = vadd.f32 %v2069, %v2136
      %v2169 = vadd.f32 %v2070, %v2137
      %v2170 = vadd.f32 %v2071, %v2138
      %v2171 = vadd.f32 %v2072, %v2139
      %v2172 = vadd.f32 %v2073, %v2140
      %v2173 = vld [vmem:[%s6] sm:$0x1]
      %v2175 = vperm.slane %v2173, 0
      %v2177 = vadd.f32 %v2141, %v2175
      %v2178 = vadd.f32 %v2142, %v2175
      %v2179 = vadd.f32 %v2143, %v2175
      %v2180 = vadd.f32 %v2144, %v2175
      %v2181 = vadd.f32 %v2145, %v2175
      %v2182 = vadd.f32 %v2146, %v2175
      %v2183 = vadd.f32 %v2147, %v2175
      %v2184 = vadd.f32 %v2148, %v2175
      %v2185 = vadd.f32 %v2149, %v2175
      %v2186 = vadd.f32 %v2150, %v2175
      %v2187 = vadd.f32 %v2151, %v2175
      %v2188 = vadd.f32 %v2152, %v2175
      %v2189 = vadd.f32 %v2153, %v2175
      %v2190 = vadd.f32 %v2154, %v2175
      %v2191 = vadd.f32 %v2155, %v2175
      %v2192 = vadd.f32 %v2156, %v2175
      %v2193 = vadd.f32 %v2157, %v2175
      %v2194 = vadd.f32 %v2158, %v2175
      %v2195 = vadd.f32 %v2159, %v2175
      %v2196 = vadd.f32 %v2160, %v2175
      %v2197 = vadd.f32 %v2161, %v2175
      %v2198 = vadd.f32 %v2162, %v2175
      %v2199 = vadd.f32 %v2163, %v2175
      %v2200 = vadd.f32 %v2164, %v2175
      %v2201 = vadd.f32 %v2165, %v2175
      %v2202 = vadd.f32 %v2166, %v2175
      %v2203 = vadd.f32 %v2167, %v2175
      %v2204 = vadd.f32 %v2168, %v2175
      %v2205 = vadd.f32 %v2169, %v2175
      %v2206 = vadd.f32 %v2170, %v2175
      %v2207 = vadd.f32 %v2171, %v2175
      %v2208 = vadd.f32 %v2172, %v2175
      %v2209 = vmax.f32 %v2177, 0.0
      %v2210 = vmax.f32 %v2178, 0.0
      %v2211 = vmax.f32 %v2179, 0.0
      %v2212 = vmax.f32 %v2180, 0.0
      %v2213 = vmax.f32 %v2181, 0.0
      %v2214 = vmax.f32 %v2182, 0.0
      %v2215 = vmax.f32 %v2183, 0.0
      %v2216 = vmax.f32 %v2184, 0.0
      %v2217 = vmax.f32 %v2185, 0.0
      %v2218 = vmax.f32 %v2186, 0.0
      %v2219 = vmax.f32 %v2187, 0.0
      %v2220 = vmax.f32 %v2188, 0.0
      %v2221 = vmax.f32 %v2189, 0.0
      %v2222 = vmax.f32 %v2190, 0.0
      %v2223 = vmax.f32 %v2191, 0.0
      %v2224 = vmax.f32 %v2192, 0.0
      %v2225 = vmax.f32 %v2193, 0.0
      %v2226 = vmax.f32 %v2194, 0.0
      %v2227 = vmax.f32 %v2195, 0.0
      %v2228 = vmax.f32 %v2196, 0.0
      %v2229 = vmax.f32 %v2197, 0.0
      %v2230 = vmax.f32 %v2198, 0.0
      %v2231 = vmax.f32 %v2199, 0.0
      %v2232 = vmax.f32 %v2200, 0.0
      %v2233 = vmax.f32 %v2201, 0.0
      %v2234 = vmax.f32 %v2202, 0.0
      %v2235 = vmax.f32 %v2203, 0.0
      %v2236 = vmax.f32 %v2204, 0.0
      %v2237 = vmax.f32 %v2205, 0.0
      %v2238 = vmax.f32 %v2206, 0.0
      %v2239 = vmax.f32 %v2207, 0.0
      %v2240 = vmax.f32 %v2208, 0.0
      %v2241 = vld [vmem:[%s7] sm:$0xff]
      %v2242 = vld [vmem:[%s7 + $0x8] sm:$0xff]
      %v2244 = vsel %vm792, %v2209, 0
      %v2247 = vsel %vm792, %v2210, 0
      %v2250 = vsel %vm792, %v2211, 0
      %v2253 = vsel %vm792, %v2212, 0
      %v2256 = vsel %vm792, %v2213, 0
      %v2259 = vsel %vm792, %v2214, 0
      %v2262 = vsel %vm792, %v2215, 0
      %v2265 = vsel %vm792, %v2216, 0
      %v2268 = vsel %vm792, %v2217, 0
      %v2271 = vsel %vm792, %v2218, 0
      %v2274 = vsel %vm792, %v2219, 0
      %v2277 = vsel %vm792, %v2220, 0
      %v2280 = vsel %vm792, %v2221, 0
      %v2283 = vsel %vm792, %v2222, 0
      %v2286 = vsel %vm792, %v2223, 0
      %v2289 = vsel %vm792, %v2224, 0
      %v2292 = vsel %vm792, %v2225, 0
      %v2295 = vsel %vm792, %v2226, 0
      %v2298 = vsel %vm792, %v2227, 0
      %v2301 = vsel %vm792, %v2228, 0
      %v2304 = vsel %vm792, %v2229, 0
      %v2307 = vsel %vm792, %v2230, 0
      %v2310 = vsel %vm792, %v2231, 0
      %v2313 = vsel %vm792, %v2232, 0
      %v2316 = vsel %vm792, %v2233, 0
      %v2319 = vsel %vm792, %v2234, 0
      %v2322 = vsel %vm792, %v2235, 0
      %v2325 = vsel %vm792, %v2236, 0
      %v2328 = vsel %vm792, %v2237, 0
      %v2331 = vsel %vm792, %v2238, 0
      %v2334 = vsel %vm792, %v2239, 0
      %v2337 = vsel %vm792, %v2240, 0
      %2339 = vmatpush.msra.mxu0 0.0
      %2340 = vmatpush.msra.mxu0 0.0
      %2341 = vmatpush.msra.mxu0 0.0
      %2342 = vmatpush.msra.mxu0 0.0
      %2343 = vmatpush.msra.mxu0 0.0
      %2344 = vmatpush.msra.mxu0 0.0
      %2345 = vmatpush.msra.mxu0 0.0
      %2346 = vmatpush.msra.mxu0 0.0
      %2347 = vmatpush.msra.mxu0 0.0
      %2348 = vmatpush.msra.mxu0 0.0
      %2349 = vmatpush.msra.mxu0 0.0
      %2350 = vmatpush.msra.mxu0 0.0
      %2351 = vmatpush.msra.mxu0 0.0
      %2352 = vmatpush.msra.mxu0 0.0
      %2353 = vmatpush.msra.mxu0 %v2242
      %2354 = vmatpush.msra.mxu0 %v2241
      %2355 = vmatmul.f32.gmra.mxu0 %v2244
      %v2356 = vpop.f32.mrf.mxu0
      %v2357 = vadd.f32 0.0, %v2356
      %2358 = vmatmul.f32.gmra.mxu0 %v2247
      %v2359 = vpop.f32.mrf.mxu0
      %v2360 = vadd.f32 0.0, %v2359
      %2361 = vmatmul.f32.gmra.mxu0 %v2250
      %v2362 = vpop.f32.mrf.mxu0
      %v2363 = vadd.f32 0.0, %v2362
      %2364 = vmatmul.f32.gmra.mxu0 %v2253
      %v2365 = vpop.f32.mrf.mxu0
      %v2366 = vadd.f32 0.0, %v2365
      %2367 = vmatmul.f32.gmra.mxu0 %v2256
      %v2368 = vpop.f32.mrf.mxu0
      %v2369 = vadd.f32 0.0, %v2368
      %2370 = vmatmul.f32.gmra.mxu0 %v2259
      %v2371 = vpop.f32.mrf.mxu0
      %v2372 = vadd.f32 0.0, %v2371
      %2373 = vmatmul.f32.gmra.mxu0 %v2262
      %v2374 = vpop.f32.mrf.mxu0
      %v2375 = vadd.f32 0.0, %v2374
      %2376 = vmatmul.f32.gmra.mxu0 %v2265
      %v2377 = vpop.f32.mrf.mxu0
      %v2378 = vadd.f32 0.0, %v2377
      %2379 = vmatmul.f32.gmra.mxu0 %v2268
      %v2380 = vpop.f32.mrf.mxu0
      %v2381 = vadd.f32 0.0, %v2380
      %2382 = vmatmul.f32.gmra.mxu0 %v2271
      %v2383 = vpop.f32.mrf.mxu0
      %v2384 = vadd.f32 0.0, %v2383
      %2385 = vmatmul.f32.gmra.mxu0 %v2274
      %v2386 = vpop.f32.mrf.mxu0
      %v2387 = vadd.f32 0.0, %v2386
      %2388 = vmatmul.f32.gmra.mxu0 %v2277
      %v2389 = vpop.f32.mrf.mxu0
      %v2390 = vadd.f32 0.0, %v2389
      %2391 = vmatmul.f32.gmra.mxu0 %v2280
      %v2392 = vpop.f32.mrf.mxu0
      %v2393 = vadd.f32 0.0, %v2392
      %2394 = vmatmul.f32.gmra.mxu0 %v2283
      %v2395 = vpop.f32.mrf.mxu0
      %v2396 = vadd.f32 0.0, %v2395
      %2397 = vmatmul.f32.gmra.mxu0 %v2286
      %v2398 = vpop.f32.mrf.mxu0
      %v2399 = vadd.f32 0.0, %v2398
      %2400 = vmatmul.f32.gmra.mxu0 %v2289
      %v2401 = vpop.f32.mrf.mxu0
      %v2402 = vadd.f32 0.0, %v2401
      %2403 = vmatmul.f32.gmra.mxu0 %v2292
      %v2404 = vpop.f32.mrf.mxu0
      %v2405 = vadd.f32 0.0, %v2404
      %2406 = vmatmul.f32.gmra.mxu0 %v2295
      %v2407 = vpop.f32.mrf.mxu0
      %v2408 = vadd.f32 0.0, %v2407
      %2409 = vmatmul.f32.gmra.mxu0 %v2298
      %v2410 = vpop.f32.mrf.mxu0
      %v2411 = vadd.f32 0.0, %v2410
      %2412 = vmatmul.f32.gmra.mxu0 %v2301
      %v2413 = vpop.f32.mrf.mxu0
      %v2414 = vadd.f32 0.0, %v2413
      %2415 = vmatmul.f32.gmra.mxu0 %v2304
      %v2416 = vpop.f32.mrf.mxu0
      %v2417 = vadd.f32 0.0, %v2416
      %2418 = vmatmul.f32.gmra.mxu0 %v2307
      %v2419 = vpop.f32.mrf.mxu0
      %v2420 = vadd.f32 0.0, %v2419
      %2421 = vmatmul.f32.gmra.mxu0 %v2310
      %v2422 = vpop.f32.mrf.mxu0
      %v2423 = vadd.f32 0.0, %v2422
      %2424 = vmatmul.f32.gmra.mxu0 %v2313
      %v2425 = vpop.f32.mrf.mxu0
      %v2426 = vadd.f32 0.0, %v2425
      %2427 = vmatmul.f32.gmra.mxu0 %v2316
      %v2428 = vpop.f32.mrf.mxu0
      %v2429 = vadd.f32 0.0, %v2428
      %2430 = vmatmul.f32.gmra.mxu0 %v2319
      %v2431 = vpop.f32.mrf.mxu0
      %v2432 = vadd.f32 0.0, %v2431
      %2433 = vmatmul.f32.gmra.mxu0 %v2322
      %v2434 = vpop.f32.mrf.mxu0
      %v2435 = vadd.f32 0.0, %v2434
      %2436 = vmatmul.f32.gmra.mxu0 %v2325
      %v2437 = vpop.f32.mrf.mxu0
      %v2438 = vadd.f32 0.0, %v2437
      %2439 = vmatmul.f32.gmra.mxu0 %v2328
      %v2440 = vpop.f32.mrf.mxu0
      %v2441 = vadd.f32 0.0, %v2440
      %2442 = vmatmul.f32.gmra.mxu0 %v2331
      %v2443 = vpop.f32.mrf.mxu0
      %v2444 = vadd.f32 0.0, %v2443
      %2445 = vmatmul.f32.gmra.mxu0 %v2334
      %v2446 = vpop.f32.mrf.mxu0
      %v2447 = vadd.f32 0.0, %v2446
      %2448 = vmatmul.f32.gmra.mxu0 %v2337
      %v2449 = vpop.f32.mrf.mxu0
      %v2450 = vadd.f32 0.0, %v2449
      %2451 = vdwg.mxu0
      %v2452 = vld [vmem:[%s8] sm:$0x1]
      %v2454 = vperm.slane %v2452, 0
      %v2456 = vmul.f32 %v2357, %v2454
      %v2457 = vmul.f32 %v2360, %v2454
      %v2458 = vmul.f32 %v2363, %v2454
      %v2459 = vmul.f32 %v2366, %v2454
      %v2460 = vmul.f32 %v2369, %v2454
      %v2461 = vmul.f32 %v2372, %v2454
      %v2462 = vmul.f32 %v2375, %v2454
      %v2463 = vmul.f32 %v2378, %v2454
      %v2464 = vmul.f32 %v2381, %v2454
      %v2465 = vmul.f32 %v2384, %v2454
      %v2466 = vmul.f32 %v2387, %v2454
      %v2467 = vmul.f32 %v2390, %v2454
      %v2468 = vmul.f32 %v2393, %v2454
      %v2469 = vmul.f32 %v2396, %v2454
      %v2470 = vmul.f32 %v2399, %v2454
      %v2471 = vmul.f32 %v2402, %v2454
      %v2472 = vmul.f32 %v2405, %v2454
      %v2473 = vmul.f32 %v2408, %v2454
      %v2474 = vmul.f32 %v2411, %v2454
      %v2475 = vmul.f32 %v2414, %v2454
      %v2476 = vmul.f32 %v2417, %v2454
      %v2477 = vmul.f32 %v2420, %v2454
      %v2478 = vmul.f32 %v2423, %v2454
      %v2479 = vmul.f32 %v2426, %v2454
      %v2480 = vmul.f32 %v2429, %v2454
      %v2481 = vmul.f32 %v2432, %v2454
      %v2482 = vmul.f32 %v2435, %v2454
      %v2483 = vmul.f32 %v2438, %v2454
      %v2484 = vmul.f32 %v2441, %v2454
      %v2485 = vmul.f32 %v2444, %v2454
      %v2486 = vmul.f32 %v2447, %v2454
      %v2487 = vmul.f32 %v2450, %v2454
      %v2488 = vld [vmem:[%s9] sm:$0x1]
      %v2490 = vperm.slane %v2488, 0
      %v2492 = vadd.f32 %v2456, %v2490
      %v2493 = vadd.f32 %v2457, %v2490
      %v2494 = vadd.f32 %v2458, %v2490
      %v2495 = vadd.f32 %v2459, %v2490
      %v2496 = vadd.f32 %v2460, %v2490
      %v2497 = vadd.f32 %v2461, %v2490
      %v2498 = vadd.f32 %v2462, %v2490
      %v2499 = vadd.f32 %v2463, %v2490
      %v2500 = vadd.f32 %v2464, %v2490
      %v2501 = vadd.f32 %v2465, %v2490
      %v2502 = vadd.f32 %v2466, %v2490
      %v2503 = vadd.f32 %v2467, %v2490
      %v2504 = vadd.f32 %v2468, %v2490
      %v2505 = vadd.f32 %v2469, %v2490
      %v2506 = vadd.f32 %v2470, %v2490
      %v2507 = vadd.f32 %v2471, %v2490
      %v2508 = vadd.f32 %v2472, %v2490
      %v2509 = vadd.f32 %v2473, %v2490
      %v2510 = vadd.f32 %v2474, %v2490
      %v2511 = vadd.f32 %v2475, %v2490
      %v2512 = vadd.f32 %v2476, %v2490
      %v2513 = vadd.f32 %v2477, %v2490
      %v2514 = vadd.f32 %v2478, %v2490
      %v2515 = vadd.f32 %v2479, %v2490
      %v2516 = vadd.f32 %v2480, %v2490
      %v2517 = vadd.f32 %v2481, %v2490
      %v2518 = vadd.f32 %v2482, %v2490
      %v2519 = vadd.f32 %v2483, %v2490
      %v2520 = vadd.f32 %v2484, %v2490
      %v2521 = vadd.f32 %v2485, %v2490
      %v2522 = vadd.f32 %v2486, %v2490
      %v2523 = vadd.f32 %v2487, %v2490
      %v2524 = vld [vmem:[%s10] sm:$0xf]
      %v2526 = vsel %vm571, %v2524, 0
      %2528 = vmatpush.msra.mxu0 0.0
      %2529 = vmatpush.msra.mxu0 0.0
      %2530 = vmatpush.msra.mxu0 0.0
      %2531 = vmatpush.msra.mxu0 0.0
      %2532 = vmatpush.msra.mxu0 0.0
      %2533 = vmatpush.msra.mxu0 0.0
      %2534 = vmatpush.msra.mxu0 0.0
      %2535 = vmatpush.msra.mxu0 0.0
      %2536 = vmatpush.msra.mxu0 0.0
      %2537 = vmatpush.msra.mxu0 0.0
      %2538 = vmatpush.msra.mxu0 0.0
      %2539 = vmatpush.msra.mxu0 0.0
      %2540 = vmatpush.msra.mxu0 0.0
      %2541 = vmatpush.msra.mxu0 0.0
      %2542 = vmatpush.msra.mxu0 0.0
      %2543 = vmatpush.msra.mxu0 %v2526
      %2544 = vmatmul.f32.gmra.mxu0 %v476
      %v2545 = vpop.f32.mrf.mxu0
      %v2546 = vadd.f32 0.0, %v2545
      %2547 = vmatmul.f32.gmra.mxu0 %v479
      %v2548 = vpop.f32.mrf.mxu0
      %v2549 = vadd.f32 0.0, %v2548
      %2550 = vmatmul.f32.gmra.mxu0 %v482
      %v2551 = vpop.f32.mrf.mxu0
      %v2552 = vadd.f32 0.0, %v2551
      %2553 = vmatmul.f32.gmra.mxu0 %v485
      %v2554 = vpop.f32.mrf.mxu0
      %v2555 = vadd.f32 0.0, %v2554
      %2556 = vmatmul.f32.gmra.mxu0 %v488
      %v2557 = vpop.f32.mrf.mxu0
      %v2558 = vadd.f32 0.0, %v2557
      %2559 = vmatmul.f32.gmra.mxu0 %v491
      %v2560 = vpop.f32.mrf.mxu0
      %v2561 = vadd.f32 0.0, %v2560
      %2562 = vmatmul.f32.gmra.mxu0 %v494
      %v2563 = vpop.f32.mrf.mxu0
      %v2564 = vadd.f32 0.0, %v2563
      %2565 = vmatmul.f32.gmra.mxu0 %v497
      %v2566 = vpop.f32.mrf.mxu0
      %v2567 = vadd.f32 0.0, %v2566
      %2568 = vmatmul.f32.gmra.mxu0 %v500
      %v2569 = vpop.f32.mrf.mxu0
      %v2570 = vadd.f32 0.0, %v2569
      %2571 = vmatmul.f32.gmra.mxu0 %v503
      %v2572 = vpop.f32.mrf.mxu0
      %v2573 = vadd.f32 0.0, %v2572
      %2574 = vmatmul.f32.gmra.mxu0 %v506
      %v2575 = vpop.f32.mrf.mxu0
      %v2576 = vadd.f32 0.0, %v2575
      %2577 = vmatmul.f32.gmra.mxu0 %v509
      %v2578 = vpop.f32.mrf.mxu0
      %v2579 = vadd.f32 0.0, %v2578
      %2580 = vmatmul.f32.gmra.mxu0 %v512
      %v2581 = vpop.f32.mrf.mxu0
      %v2582 = vadd.f32 0.0, %v2581
      %2583 = vmatmul.f32.gmra.mxu0 %v515
      %v2584 = vpop.f32.mrf.mxu0
      %v2585 = vadd.f32 0.0, %v2584
      %2586 = vmatmul.f32.gmra.mxu0 %v518
      %v2587 = vpop.f32.mrf.mxu0
      %v2588 = vadd.f32 0.0, %v2587
      %2589 = vmatmul.f32.gmra.mxu0 %v521
      %v2590 = vpop.f32.mrf.mxu0
      %v2591 = vadd.f32 0.0, %v2590
      %2592 = vmatmul.f32.gmra.mxu0 %v524
      %v2593 = vpop.f32.mrf.mxu0
      %v2594 = vadd.f32 0.0, %v2593
      %2595 = vmatmul.f32.gmra.mxu0 %v527
      %v2596 = vpop.f32.mrf.mxu0
      %v2597 = vadd.f32 0.0, %v2596
      %2598 = vmatmul.f32.gmra.mxu0 %v530
      %v2599 = vpop.f32.mrf.mxu0
      %v2600 = vadd.f32 0.0, %v2599
      %2601 = vmatmul.f32.gmra.mxu0 %v533
      %v2602 = vpop.f32.mrf.mxu0
      %v2603 = vadd.f32 0.0, %v2602
      %2604 = vmatmul.f32.gmra.mxu0 %v536
      %v2605 = vpop.f32.mrf.mxu0
      %v2606 = vadd.f32 0.0, %v2605
      %2607 = vmatmul.f32.gmra.mxu0 %v539
      %v2608 = vpop.f32.mrf.mxu0
      %v2609 = vadd.f32 0.0, %v2608
      %2610 = vmatmul.f32.gmra.mxu0 %v542
      %v2611 = vpop.f32.mrf.mxu0
      %v2612 = vadd.f32 0.0, %v2611
      %2613 = vmatmul.f32.gmra.mxu0 %v545
      %v2614 = vpop.f32.mrf.mxu0
      %v2615 = vadd.f32 0.0, %v2614
      %2616 = vmatmul.f32.gmra.mxu0 %v548
      %v2617 = vpop.f32.mrf.mxu0
      %v2618 = vadd.f32 0.0, %v2617
      %2619 = vmatmul.f32.gmra.mxu0 %v551
      %v2620 = vpop.f32.mrf.mxu0
      %v2621 = vadd.f32 0.0, %v2620
      %2622 = vmatmul.f32.gmra.mxu0 %v554
      %v2623 = vpop.f32.mrf.mxu0
      %v2624 = vadd.f32 0.0, %v2623
      %2625 = vmatmul.f32.gmra.mxu0 %v557
      %v2626 = vpop.f32.mrf.mxu0
      %v2627 = vadd.f32 0.0, %v2626
      %2628 = vmatmul.f32.gmra.mxu0 %v560
      %v2629 = vpop.f32.mrf.mxu0
      %v2630 = vadd.f32 0.0, %v2629
      %2631 = vmatmul.f32.gmra.mxu0 %v563
      %v2632 = vpop.f32.mrf.mxu0
      %v2633 = vadd.f32 0.0, %v2632
      %2634 = vmatmul.f32.gmra.mxu0 %v566
      %v2635 = vpop.f32.mrf.mxu0
      %v2636 = vadd.f32 0.0, %v2635
      %2637 = vmatmul.f32.gmra.mxu0 %v569
      %v2638 = vpop.f32.mrf.mxu0
      %v2639 = vadd.f32 0.0, %v2638
      %2640 = vdwg.mxu0
      %v2641 = vld [vmem:[%s11] sm:$0x1]
      %v2643 = vperm.slane %v2641, 0
      %v2645 = vmul.f32 %v2546, %v2643
      %v2646 = vmul.f32 %v2549, %v2643
      %v2647 = vmul.f32 %v2552, %v2643
      %v2648 = vmul.f32 %v2555, %v2643
      %v2649 = vmul.f32 %v2558, %v2643
      %v2650 = vmul.f32 %v2561, %v2643
      %v2651 = vmul.f32 %v2564, %v2643
      %v2652 = vmul.f32 %v2567, %v2643
      %v2653 = vmul.f32 %v2570, %v2643
      %v2654 = vmul.f32 %v2573, %v2643
      %v2655 = vmul.f32 %v2576, %v2643
      %v2656 = vmul.f32 %v2579, %v2643
      %v2657 = vmul.f32 %v2582, %v2643
      %v2658 = vmul.f32 %v2585, %v2643
      %v2659 = vmul.f32 %v2588, %v2643
      %v2660 = vmul.f32 %v2591, %v2643
      %v2661 = vmul.f32 %v2594, %v2643
      %v2662 = vmul.f32 %v2597, %v2643
      %v2663 = vmul.f32 %v2600, %v2643
      %v2664 = vmul.f32 %v2603, %v2643
      %v2665 = vmul.f32 %v2606, %v2643
      %v2666 = vmul.f32 %v2609, %v2643
      %v2667 = vmul.f32 %v2612, %v2643
      %v2668 = vmul.f32 %v2615, %v2643
      %v2669 = vmul.f32 %v2618, %v2643
      %v2670 = vmul.f32 %v2621, %v2643
      %v2671 = vmul.f32 %v2624, %v2643
      %v2672 = vmul.f32 %v2627, %v2643
      %v2673 = vmul.f32 %v2630, %v2643
      %v2674 = vmul.f32 %v2633, %v2643
      %v2675 = vmul.f32 %v2636, %v2643
      %v2676 = vmul.f32 %v2639, %v2643
      %v2677 = vld [vmem:[%s12] sm:$0x1]
      %v2679 = vperm.slane %v2677, 0
      %v2681 = vadd.f32 %v2645, %v2679
      %v2682 = vadd.f32 %v2646, %v2679
      %v2683 = vadd.f32 %v2647, %v2679
      %v2684 = vadd.f32 %v2648, %v2679
      %v2685 = vadd.f32 %v2649, %v2679
      %v2686 = vadd.f32 %v2650, %v2679
      %v2687 = vadd.f32 %v2651, %v2679
      %v2688 = vadd.f32 %v2652, %v2679
      %v2689 = vadd.f32 %v2653, %v2679
      %v2690 = vadd.f32 %v2654, %v2679
      %v2691 = vadd.f32 %v2655, %v2679
      %v2692 = vadd.f32 %v2656, %v2679
      %v2693 = vadd.f32 %v2657, %v2679
      %v2694 = vadd.f32 %v2658, %v2679
      %v2695 = vadd.f32 %v2659, %v2679
      %v2696 = vadd.f32 %v2660, %v2679
      %v2697 = vadd.f32 %v2661, %v2679
      %v2698 = vadd.f32 %v2662, %v2679
      %v2699 = vadd.f32 %v2663, %v2679
      %v2700 = vadd.f32 %v2664, %v2679
      %v2701 = vadd.f32 %v2665, %v2679
      %v2702 = vadd.f32 %v2666, %v2679
      %v2703 = vadd.f32 %v2667, %v2679
      %v2704 = vadd.f32 %v2668, %v2679
      %v2705 = vadd.f32 %v2669, %v2679
      %v2706 = vadd.f32 %v2670, %v2679
      %v2707 = vadd.f32 %v2671, %v2679
      %v2708 = vadd.f32 %v2672, %v2679
      %v2709 = vadd.f32 %v2673, %v2679
      %v2710 = vadd.f32 %v2674, %v2679
      %v2711 = vadd.f32 %v2675, %v2679
      %v2712 = vadd.f32 %v2676, %v2679
      %v2713 = vadd.f32 %v2492, %v2681
      %v2714 = vadd.f32 %v2493, %v2682
      %v2715 = vadd.f32 %v2494, %v2683
      %v2716 = vadd.f32 %v2495, %v2684
      %v2717 = vadd.f32 %v2496, %v2685
      %v2718 = vadd.f32 %v2497, %v2686
      %v2719 = vadd.f32 %v2498, %v2687
      %v2720 = vadd.f32 %v2499, %v2688
      %v2721 = vadd.f32 %v2500, %v2689
      %v2722 = vadd.f32 %v2501, %v2690
      %v2723 = vadd.f32 %v2502, %v2691
      %v2724 = vadd.f32 %v2503, %v2692
      %v2725 = vadd.f32 %v2504, %v2693
      %v2726 = vadd.f32 %v2505, %v2694
      %v2727 = vadd.f32 %v2506, %v2695
      %v2728 = vadd.f32 %v2507, %v2696
      %v2729 = vadd.f32 %v2508, %v2697
      %v2730 = vadd.f32 %v2509, %v2698
      %v2731 = vadd.f32 %v2510, %v2699
      %v2732 = vadd.f32 %v2511, %v2700
      %v2733 = vadd.f32 %v2512, %v2701
      %v2734 = vadd.f32 %v2513, %v2702
      %v2735 = vadd.f32 %v2514, %v2703
      %v2736 = vadd.f32 %v2515, %v2704
      %v2737 = vadd.f32 %v2516, %v2705
      %v2738 = vadd.f32 %v2517, %v2706
      %v2739 = vadd.f32 %v2518, %v2707
      %v2740 = vadd.f32 %v2519, %v2708
      %v2741 = vadd.f32 %v2520, %v2709
      %v2742 = vadd.f32 %v2521, %v2710
      %v2743 = vadd.f32 %v2522, %v2711
      %v2744 = vadd.f32 %v2523, %v2712
      %vm2745 = vcmask 64512
      %2746 = vst.msk [vmem:[%s440] sm:$0xff] %vm2745, %v2713
      %2747 = vst.msk [vmem:[%s440 + $0x8] sm:$0xff] %vm2745, %v2714
      %2748 = vst.msk [vmem:[%s440 + $0x10] sm:$0xff] %vm2745, %v2715
      %2749 = vst.msk [vmem:[%s440 + $0x18] sm:$0xff] %vm2745, %v2716
      %2750 = vst.msk [vmem:[%s440 + $0x20] sm:$0xff] %vm2745, %v2717
      %2751 = vst.msk [vmem:[%s440 + $0x28] sm:$0xff] %vm2745, %v2718
      %2752 = vst.msk [vmem:[%s440 + $0x30] sm:$0xff] %vm2745, %v2719
      %2753 = vst.msk [vmem:[%s440 + $0x38] sm:$0xff] %vm2745, %v2720
      %2754 = vst.msk [vmem:[%s440 + $0x40] sm:$0xff] %vm2745, %v2721
      %2755 = vst.msk [vmem:[%s440 + $0x48] sm:$0xff] %vm2745, %v2722
      %2756 = vst.msk [vmem:[%s440 + $0x50] sm:$0xff] %vm2745, %v2723
      %2757 = vst.msk [vmem:[%s440 + $0x58] sm:$0xff] %vm2745, %v2724
      %2758 = vst.msk [vmem:[%s440 + $0x60] sm:$0xff] %vm2745, %v2725
      %2759 = vst.msk [vmem:[%s440 + $0x68] sm:$0xff] %vm2745, %v2726
      %2760 = vst.msk [vmem:[%s440 + $0x70] sm:$0xff] %vm2745, %v2727
      %2761 = vst.msk [vmem:[%s440 + $0x78] sm:$0xff] %vm2745, %v2728
      %2762 = vst.msk [vmem:[%s440 + $0x80] sm:$0xff] %vm2745, %v2729
      %2763 = vst.msk [vmem:[%s440 + $0x88] sm:$0xff] %vm2745, %v2730
      %2764 = vst.msk [vmem:[%s440 + $0x90] sm:$0xff] %vm2745, %v2731
      %2765 = vst.msk [vmem:[%s440 + $0x98] sm:$0xff] %vm2745, %v2732
      %2766 = vst.msk [vmem:[%s440 + $0xa0] sm:$0xff] %vm2745, %v2733
      %2767 = vst.msk [vmem:[%s440 + $0xa8] sm:$0xff] %vm2745, %v2734
      %2768 = vst.msk [vmem:[%s440 + $0xb0] sm:$0xff] %vm2745, %v2735
      %2769 = vst.msk [vmem:[%s440 + $0xb8] sm:$0xff] %vm2745, %v2736
      %2770 = vst.msk [vmem:[%s440 + $0xc0] sm:$0xff] %vm2745, %v2737
      %2771 = vst.msk [vmem:[%s440 + $0xc8] sm:$0xff] %vm2745, %v2738
      %2772 = vst.msk [vmem:[%s440 + $0xd0] sm:$0xff] %vm2745, %v2739
      %2773 = vst.msk [vmem:[%s440 + $0xd8] sm:$0xff] %vm2745, %v2740
      %2774 = vst.msk [vmem:[%s440 + $0xe0] sm:$0xff] %vm2745, %v2741
      %2775 = vst.msk [vmem:[%s440 + $0xe8] sm:$0xff] %vm2745, %v2742
      %2776 = vst.msk [vmem:[%s440 + $0xf0] sm:$0xff] %vm2745, %v2743
      %2777 = vst.msk [vmem:[%s440 + $0xf8] sm:$0xff] %vm2745, %v2744
      %p2778 = scmp.lt.s32.totalorder %s24, 1
      %s2779 = scalar_select %p2778, %s24, 1
      %s2780 = smul.addr %s2779, 32
      %s2781 = smul.addr %s2780, 8
      %s2782 = scalar_lea.vmem %s13, %s2781
      // Predicated region
      $region73: #{tpu_custom_call.1} parent=71 // pred_check
        %p2783 = pneg %p320
      $region74: #{tpu_custom_call.1} parent=71 // pred_check_branch
        %2785 = sbr.rel (%p2783) target = $region76
      $region75: #{tpu_custom_call.1} parent=71 // pred_region
        _
      $region76: #{tpu_custom_call.1} parent=71 // pred_fallthru
        _
    $region72: #{tpu_custom_call.1} parent=5 // pred_fallthru
      _
    %p2786 = scmp.le.s32.totalorder 2, %s19
    // Predicated region
    $region77: #{tpu_custom_call.1} parent=5 // pred_check
      %p2787 = pneg %p2786
    $region78: #{tpu_custom_call.1} parent=5 // pred_check_branch
      %2789 = sbr.rel (%p2787) target = $region80
    $region79: #{tpu_custom_call.1} parent=5 // pred_region
      %s2790 = ssub.s32 %s19, 2
      // Predicated region
      $region81: #{tpu_custom_call.1} parent=79 // pred_check
        %p2791 = pneg %p326
      $region82: #{tpu_custom_call.1} parent=79 // pred_check_branch
        %2793 = sbr.rel (%p2791) target = $region84
      $region83: #{tpu_custom_call.1} parent=79 // pred_region
        %p2794 = scmp.lt.s32.totalorder %s25, 1
        %s2795 = scalar_select %p2794, %s25, 1
        %s2796 = smul.addr %s2795, 32
        %s2797 = smul.addr %s2796, 8
        %s2798 = scalar_lea.vmem %s13, %s2797
      $region84: #{tpu_custom_call.1} parent=79 // pred_fallthru
        _
    $region80: #{tpu_custom_call.1} parent=5 // pred_fallthru
      _
  $region6: #{tpu_custom_call.1} parent=0 // loop_footer
    %s23 = sadd.s32 1, %s19
  $region7: #{tpu_custom_call.1} parent=0 // loop_footer_branch
    %18 = sbr.rel target = $region3
  $region8: #{tpu_custom_call.1} parent=0 // loop_exit
    _

</llo_original>
